<compile_context>
chip_gen: v7x
topology: tpu7x:2x2x1
jax: 0.10.0
libtpu: 0.0.40
codegen_flags: <defaults>
</compile_context>

<pallas_src>
import functools

import jax
import jax.numpy as jnp
from jax import lax
from jax.experimental import pallas as pl
from jax.experimental.pallas import tpu as pltpu

NEG_INF = -1000000000000000.0   # matches mask_logits constant in the reference
_MXU_DTYPE = jnp.bfloat16       # bf16 MXU inputs, f32 accumulation


# --------------------------------------------------------------------------
# Fused multi-head-attention kernel (a block of batch elements per grid step)
# --------------------------------------------------------------------------

def _mha_kernel(x_ref, m_ref, wqkv_ref, bqkv_ref, wfc_ref, bfc_ref, o_ref, *,
                num_heads):
    bb, L, D = x_ref.shape
    dk = D // num_heads

    # One fused QKV projection over all bb*L rows (keeps the wide MXU fed).
    x2 = x_ref[...].reshape(bb * L, D)                          # bf16
    qkv = jnp.dot(x2, wqkv_ref[...],
                  preferred_element_type=jnp.float32)           # (bb*L, 3D) f32
    qkv = qkv + bqkv_ref[...]
    qkv_b = qkv.astype(_MXU_DTYPE)

    wfc = wfc_ref[...]                                          # (D, D) bf16
    bfc = bfc_ref[...]                                          # (1, D) f32

    for b in range(bb):                                         # static loop
        rows = slice(b * L, (b + 1) * L)
        q = qkv_b[rows, 0 * D:1 * D]                            # pre-scaled
        k = qkv_b[rows, 1 * D:2 * D]
        v = qkv_b[rows, 2 * D:3 * D]

        # Mask math hoisted out of the head loop (computed once per batch).
        m_row = m_ref[b]                                        # (1, L) f32
        m_full = jnp.broadcast_to(m_row, (L, L))
        m_bias = NEG_INF * (1.0 - m_full)

        out_acc = jnp.zeros((L, D), jnp.float32)
        for h in range(num_heads):                              # static loop
            cl = slice(h * dk, (h + 1) * dk)
            logits = lax.dot_general(q[:, cl], k[:, cl],
                                     (((1,), (1,)), ((), ())),
                                     preferred_element_type=jnp.float32)
            logits = logits * m_full + m_bias                   # mask_logits
            logits = logits - jnp.max(logits, axis=-1, keepdims=True)
            e = jnp.exp(logits)
            p = e / jnp.sum(e, axis=-1, keepdims=True)          # exact softmax
            head = jnp.dot(p.astype(_MXU_DTYPE), v[:, cl],
                           preferred_element_type=jnp.float32)  # (L, dk)
            # Per-head fc accumulation (no lane-axis concat).
            out_acc = out_acc + jnp.dot(head.astype(_MXU_DTYPE), wfc[cl, :],
                                        preferred_element_type=jnp.float32)

        o_ref[b] = out_acc + bfc                                # (L, D) f32


# --------------------------------------------------------------------------
# One-time parameter preparation (outside the per-call path)
# --------------------------------------------------------------------------

def prepare_params(params, num_heads):
    D = params["wq"].shape[0]
    dk = D // num_heads
    scaling = 1.0 / (dk ** 0.5)

    # nn.Linear stores W as (out, in); pre-transpose so the kernel does x @ W.
    # Attention scaling is folded into the Q weights/bias (f32, then bf16).
    wq = (params["wq"].T.astype(jnp.float32) * scaling).astype(_MXU_DTYPE)
    wk = params["wk"].T.astype(_MXU_DTYPE)
    wv = params["wv"].T.astype(_MXU_DTYPE)
    wqkv = jnp.concatenate([wq, wk, wv], axis=1)                # (D, 3D) bf16
    bqkv = jnp.concatenate([params["bq"].astype(jnp.float32) * scaling,
                            params["bk"].astype(jnp.float32),
                            params["bv"].astype(jnp.float32)]).reshape(1, 3 * D)
    wfc = params["wfc"].T.astype(_MXU_DTYPE)                    # (D, D) bf16
    bfc = params["bfc"].reshape(1, D).astype(jnp.float32)
    return {"wqkv": wqkv, "bqkv": bqkv, "wfc": wfc, "bfc": bfc}


def _default_batch_block(batch):
    """Whole batch per grid step on 1-TC chips; split across TCs on v7x."""
    try:
        kind = jax.devices()[0].device_kind.lower()
    except Exception:
        kind = ""
    n_tc = 2 if "v7" in kind else 1
    if n_tc > 1 and batch % n_tc == 0:
        return batch // n_tc
    return batch


# --------------------------------------------------------------------------
# Wrapper
# --------------------------------------------------------------------------

def multi_head_attention(x, mask, prepped, *, num_heads, batch_block=None):
    """x: (B, D, L) float32 (PyTorch NCL), mask: (B, L).  Returns (B, D, L)."""
    B, D, L = x.shape
    bb = B if batch_block is None else batch_block
    assert B % bb == 0

    # lane-dense layout + bf16 staging (halves the DMA bytes for x)
    x_ld = jnp.transpose(x, (0, 2, 1)).astype(_MXU_DTYPE)       # (B, L, D)
    m = mask.reshape(B, 1, L).astype(jnp.float32)

    out = pl.pallas_call(
        functools.partial(_mha_kernel, num_heads=num_heads),
        out_shape=jax.ShapeDtypeStruct((B, L, D), jnp.float32),
        grid=(B // bb,),
        in_specs=[pl.BlockSpec((bb, L, D), lambda i: (i, 0, 0)),     # x
                  pl.BlockSpec((bb, 1, L), lambda i: (i, 0, 0)),     # mask
                  pl.BlockSpec((D, 3 * D), lambda i: (0, 0)),        # Wqkv
                  pl.BlockSpec((1, 3 * D), lambda i: (0, 0)),        # bqkv
                  pl.BlockSpec((D, D), lambda i: (0, 0)),            # Wfc
                  pl.BlockSpec((1, D), lambda i: (0, 0))],           # bfc
        out_specs=pl.BlockSpec((bb, L, D), lambda i: (i, 0, 0)),
        compiler_params=pltpu.CompilerParams(
            dimension_semantics=("parallel",)),
    )(x_ld, m, prepped["wqkv"], prepped["bqkv"], prepped["wfc"], prepped["bfc"])

    return jnp.transpose(out, (0, 2, 1))                        # back to (B, D, L)


# --------------------------------------------------------------------------
# Pure-JAX f32 reference (mirrors the PyTorch forward) for a sanity check
# --------------------------------------------------------------------------

def mha_reference(x, mask, params, num_heads):
    B, D, L = x.shape
    dk = D // num_heads
    xt = jnp.transpose(x, (0, 2, 1))                            # (B, L, D)

    def lin(w, b):
        return xt @ w.T + b

    Q = lin(params["wq"], params["bq"])
    K = lin(params["wk"], params["bk"])
    V = lin(params["wv"], params["bv"])

    def split(t):                                               # -> (B, H, L, dk)
        return jnp.transpose(t.reshape(B, L, num_heads, dk), (0, 2, 1, 3))

    Qh, Kh, Vh = split(Q), split(K), split(V)
    logits = jnp.einsum('bhqd,bhkd->bhqk', Qh, Kh) * (1.0 / dk ** 0.5)
    m = mask[:, None, None, :]
    logits = logits * m + NEG_INF * (1.0 - m)
    p = jax.nn.softmax(logits, axis=-1)
    o = jnp.einsum('bhqk,bhkd->bhqd', p, Vh)
    o = jnp.transpose(o, (0, 2, 1, 3)).reshape(B, L, D)
    out = o @ params["wfc"].T + params["bfc"]
    return jnp.transpose(out, (0, 2, 1))


# --------------------------------------------------------------------------

if __name__ == "__main__":
    B, L, D, H = 2, 16, 128, 8                                  # dim_model=128, 8 heads

    key = jax.random.PRNGKey(0)
    kx, *wkeys = jax.random.split(key, 10)

    def nrm(k, shape, scale=0.08):
        return (scale * jax.random.normal(k, shape)).astype(jnp.float32)

    params = {
        "wq": nrm(wkeys[0], (D, D)), "bq": nrm(wkeys[1], (D,)),
        "wk": nrm(wkeys[2], (D, D)), "bk": nrm(wkeys[3], (D,)),
        "wv": nrm(wkeys[4], (D, D)), "bv": nrm(wkeys[5], (D,)),
        "wfc": nrm(wkeys[6], (D, D)), "bfc": nrm(wkeys[7], (D,)),
    }

    x = jax.random.normal(kx, (B, D, L), jnp.float32)
    mask = jnp.ones((B, L), jnp.float32)
    mask = mask.at[0, -3:].set(0.0).at[1, -5:].set(0.0)         # padded key positions

    prepped = prepare_params(params, H)                         # one-time prep
    bb = _default_batch_block(B)

    fwd = jax.jit(functools.partial(multi_head_attention,
                                    num_heads=H, batch_block=bb))
    out = fwd(x, mask, prepped)
    jax.block_until_ready(out)

    assert out.shape == (B, D, L)
    assert bool(jnp.all(jnp.isfinite(out)))

    ref = mha_reference(x, mask, params, H)
    err = float(jnp.max(jnp.abs(out - ref)))
    tol = 0.02 + 0.05 * float(jnp.max(jnp.abs(ref)))            # bf16 MXU tolerance
    assert err < tol, f"max abs err {err} exceeds tol {tol}"

    print("KERNEL_OK")
</pallas_src>

<mosaic_0001>
module attributes {stable_mosaic.version = 11 : i64} {
  func.func @_mha_kernel(%arg0: i32, %arg1: memref<2x16x128xbf16, #tpu.memory_space<vmem>>, %arg2: memref<2x1x16xf32, #tpu.memory_space<vmem>>, %arg3: memref<128x384xbf16, #tpu.memory_space<vmem>>, %arg4: memref<1x384xf32, #tpu.memory_space<vmem>>, %arg5: memref<128x128xbf16, #tpu.memory_space<vmem>>, %arg6: memref<1x128xf32, #tpu.memory_space<vmem>>, %arg7: memref<2x16x128xf32, #tpu.memory_space<vmem>>) attributes {dimension_semantics = [#tpu.dimension_semantics<parallel>], iteration_bounds = array<i64: 1>, scalar_prefetch = 0 : i64, scratch_operands = 0 : i64, tpu.core_type = #tpu.core_type<tc>, window_params = [{transform_indices = @transform_0, window_bounds = array<i64: 2, 16, 128>}, {transform_indices = @transform_1, window_bounds = array<i64: 2, 1, 16>}, {pipeline_mode = #tpu.pipeline_mode<synchronous>, transform_indices = @transform_2, window_bounds = array<i64: 128, 384>}, {pipeline_mode = #tpu.pipeline_mode<synchronous>, transform_indices = @transform_3, window_bounds = array<i64: 1, 384>}, {pipeline_mode = #tpu.pipeline_mode<synchronous>, transform_indices = @transform_4, window_bounds = array<i64: 128, 128>}, {pipeline_mode = #tpu.pipeline_mode<synchronous>, transform_indices = @transform_5, window_bounds = array<i64: 1, 128>}, {transform_indices = @transform_6, window_bounds = array<i64: 2, 16, 128>}]} {
    %c0 = arith.constant 0 : index
    %c0_0 = arith.constant 0 : index
    %c0_1 = arith.constant 0 : index
    %0 = vector.load %arg1[%c0, %c0_0, %c0_1] : memref<2x16x128xbf16, #tpu.memory_space<vmem>>, vector<2x16x128xbf16>
    %1 = vector.shape_cast %0 : vector<2x16x128xbf16> to vector<32x128xbf16>
    %c0_2 = arith.constant 0 : index
    %c0_3 = arith.constant 0 : index
    %2 = vector.load %arg3[%c0_2, %c0_3] : memref<128x384xbf16, #tpu.memory_space<vmem>>, vector<128x384xbf16>
    %cst = arith.constant dense<0.000000e+00> : vector<32x384xf32>
    %3 = tpu.matmul %1, %2, %cst {dimension_numbers = #tpu.dot_dimension_numbers<[1], [0], [0], [1], [0, 0, 1, 1], [], []>} : vector<32x128xbf16>, vector<128x384xbf16>, vector<32x384xf32> -> vector<32x384xf32>
    %c0_4 = arith.constant 0 : index
    %c0_5 = arith.constant 0 : index
    %4 = vector.load %arg4[%c0_4, %c0_5] : memref<1x384xf32, #tpu.memory_space<vmem>>, vector<1x384xf32>
    %5 = vector.broadcast %4 : vector<1x384xf32> to vector<32x384xf32>
    %6 = arith.addf %3, %5 : vector<32x384xf32>
    %7 = arith.truncf %6 : vector<32x384xf32> to vector<32x384xbf16>
    %c0_6 = arith.constant 0 : index
    %c0_7 = arith.constant 0 : index
    %8 = vector.load %arg5[%c0_6, %c0_7] : memref<128x128xbf16, #tpu.memory_space<vmem>>, vector<128x128xbf16>
    %c0_8 = arith.constant 0 : index
    %c0_9 = arith.constant 0 : index
    %9 = vector.load %arg6[%c0_8, %c0_9] : memref<1x128xf32, #tpu.memory_space<vmem>>, vector<1x128xf32>
    %10 = vector.extract_strided_slice %7 {offsets = [0, 0], sizes = [16, 128], strides = [1, 1]} : vector<32x384xbf16> to vector<16x128xbf16>
    %11 = vector.extract_strided_slice %7 {offsets = [0, 128], sizes = [16, 128], strides = [1, 1]} : vector<32x384xbf16> to vector<16x128xbf16>
    %12 = vector.extract_strided_slice %7 {offsets = [0, 256], sizes = [16, 128], strides = [1, 1]} : vector<32x384xbf16> to vector<16x128xbf16>
    %c0_10 = arith.constant 0 : index
    %c0_11 = arith.constant 0 : index
    %c0_12 = arith.constant 0 : index
    %13 = vector.load %arg2[%c0_10, %c0_11, %c0_12] : memref<2x1x16xf32, #tpu.memory_space<vmem>>, vector<1x1x16xf32>
    %14 = vector.shape_cast %13 : vector<1x1x16xf32> to vector<1x16xf32>
    %15 = vector.shape_cast %14 : vector<1x16xf32> to vector<1x16xf32>
    %16 = vector.broadcast %15 : vector<1x16xf32> to vector<16x16xf32>
    %cst_13 = arith.constant 1.000000e+00 : f32
    %17 = vector.broadcast %cst_13 : f32 to vector<16x16xf32>
    %18 = arith.subf %17, %16 : vector<16x16xf32>
    %cst_14 = arith.constant -9.99999986E+14 : f32
    %19 = vector.broadcast %cst_14 : f32 to vector<16x16xf32>
    %20 = arith.mulf %19, %18 : vector<16x16xf32>
    %cst_15 = arith.constant 0.000000e+00 : f32
    %21 = vector.broadcast %cst_15 : f32 to vector<16x128xf32>
    %22 = vector.extract_strided_slice %10 {offsets = [0, 0], sizes = [16, 16], strides = [1, 1]} : vector<16x128xbf16> to vector<16x16xbf16>
    %23 = vector.extract_strided_slice %11 {offsets = [0, 0], sizes = [16, 16], strides = [1, 1]} : vector<16x128xbf16> to vector<16x16xbf16>
    %cst_16 = arith.constant dense<0.000000e+00> : vector<16x16xf32>
    %24 = tpu.matmul %22, %23, %cst_16 {dimension_numbers = #tpu.dot_dimension_numbers<[1], [1], [0], [0], [0, 0, 1, 0], [], []>} : vector<16x16xbf16>, vector<16x16xbf16>, vector<16x16xf32> -> vector<16x16xf32>
    %25 = arith.mulf %24, %16 : vector<16x16xf32>
    %26 = arith.addf %25, %20 : vector<16x16xf32>
    %cst_17 = arith.constant dense<0xFF800000> : vector<16xf32>
    %27 = vector.multi_reduction <maximumf>, %26, %cst_17 [1] : vector<16x16xf32> to vector<16xf32>
    %28 = vector.shape_cast %27 : vector<16xf32> to vector<16x1xf32>
    %29 = vector.broadcast %28 : vector<16x1xf32> to vector<16x16xf32>
    %30 = arith.subf %26, %29 : vector<16x16xf32>
    %31 = math.exp %30 : vector<16x16xf32>
    %cst_18 = arith.constant dense<0.000000e+00> : vector<16xf32>
    %32 = vector.multi_reduction <add>, %31, %cst_18 [1] : vector<16x16xf32> to vector<16xf32>
    %33 = vector.shape_cast %32 : vector<16xf32> to vector<16x1xf32>
    %34 = vector.broadcast %33 : vector<16x1xf32> to vector<16x16xf32>
    %35 = arith.divf %31, %34 : vector<16x16xf32>
    %36 = arith.truncf %35 : vector<16x16xf32> to vector<16x16xbf16>
    %37 = vector.extract_strided_slice %12 {offsets = [0, 0], sizes = [16, 16], strides = [1, 1]} : vector<16x128xbf16> to vector<16x16xbf16>
    %cst_19 = arith.constant dense<0.000000e+00> : vector<16x16xf32>
    %38 = tpu.matmul %36, %37, %cst_19 {dimension_numbers = #tpu.dot_dimension_numbers<[1], [0], [0], [1], [0, 0, 1, 1], [], []>} : vector<16x16xbf16>, vector<16x16xbf16>, vector<16x16xf32> -> vector<16x16xf32>
    %39 = arith.truncf %38 : vector<16x16xf32> to vector<16x16xbf16>
    %40 = vector.extract_strided_slice %8 {offsets = [0, 0], sizes = [16, 128], strides = [1, 1]} : vector<128x128xbf16> to vector<16x128xbf16>
    %cst_20 = arith.constant dense<0.000000e+00> : vector<16x128xf32>
    %41 = tpu.matmul %39, %40, %cst_20 {dimension_numbers = #tpu.dot_dimension_numbers<[1], [0], [0], [1], [0, 0, 1, 1], [], []>} : vector<16x16xbf16>, vector<16x128xbf16>, vector<16x128xf32> -> vector<16x128xf32>
    %42 = arith.addf %21, %41 : vector<16x128xf32>
    %43 = vector.extract_strided_slice %10 {offsets = [0, 16], sizes = [16, 16], strides = [1, 1]} : vector<16x128xbf16> to vector<16x16xbf16>
    %44 = vector.extract_strided_slice %11 {offsets = [0, 16], sizes = [16, 16], strides = [1, 1]} : vector<16x128xbf16> to vector<16x16xbf16>
    %cst_21 = arith.constant dense<0.000000e+00> : vector<16x16xf32>
    %45 = tpu.matmul %43, %44, %cst_21 {dimension_numbers = #tpu.dot_dimension_numbers<[1], [1], [0], [0], [0, 0, 1, 0], [], []>} : vector<16x16xbf16>, vector<16x16xbf16>, vector<16x16xf32> -> vector<16x16xf32>
    %46 = arith.mulf %45, %16 : vector<16x16xf32>
    %47 = arith.addf %46, %20 : vector<16x16xf32>
    %cst_22 = arith.constant dense<0xFF800000> : vector<16xf32>
    %48 = vector.multi_reduction <maximumf>, %47, %cst_22 [1] : vector<16x16xf32> to vector<16xf32>
    %49 = vector.shape_cast %48 : vector<16xf32> to vector<16x1xf32>
    %50 = vector.broadcast %49 : vector<16x1xf32> to vector<16x16xf32>
    %51 = arith.subf %47, %50 : vector<16x16xf32>
    %52 = math.exp %51 : vector<16x16xf32>
    %cst_23 = arith.constant dense<0.000000e+00> : vector<16xf32>
    %53 = vector.multi_reduction <add>, %52, %cst_23 [1] : vector<16x16xf32> to vector<16xf32>
    %54 = vector.shape_cast %53 : vector<16xf32> to vector<16x1xf32>
    %55 = vector.broadcast %54 : vector<16x1xf32> to vector<16x16xf32>
    %56 = arith.divf %52, %55 : vector<16x16xf32>
    %57 = arith.truncf %56 : vector<16x16xf32> to vector<16x16xbf16>
    %58 = vector.extract_strided_slice %12 {offsets = [0, 16], sizes = [16, 16], strides = [1, 1]} : vector<16x128xbf16> to vector<16x16xbf16>
    %cst_24 = arith.constant dense<0.000000e+00> : vector<16x16xf32>
    %59 = tpu.matmul %57, %58, %cst_24 {dimension_numbers = #tpu.dot_dimension_numbers<[1], [0], [0], [1], [0, 0, 1, 1], [], []>} : vector<16x16xbf16>, vector<16x16xbf16>, vector<16x16xf32> -> vector<16x16xf32>
    %60 = arith.truncf %59 : vector<16x16xf32> to vector<16x16xbf16>
    %61 = vector.extract_strided_slice %8 {offsets = [16, 0], sizes = [16, 128], strides = [1, 1]} : vector<128x128xbf16> to vector<16x128xbf16>
    %cst_25 = arith.constant dense<0.000000e+00> : vector<16x128xf32>
    %62 = tpu.matmul %60, %61, %cst_25 {dimension_numbers = #tpu.dot_dimension_numbers<[1], [0], [0], [1], [0, 0, 1, 1], [], []>} : vector<16x16xbf16>, vector<16x128xbf16>, vector<16x128xf32> -> vector<16x128xf32>
    %63 = arith.addf %42, %62 : vector<16x128xf32>
    %64 = vector.extract_strided_slice %10 {offsets = [0, 32], sizes = [16, 16], strides = [1, 1]} : vector<16x128xbf16> to vector<16x16xbf16>
    %65 = vector.extract_strided_slice %11 {offsets = [0, 32], sizes = [16, 16], strides = [1, 1]} : vector<16x128xbf16> to vector<16x16xbf16>
    %cst_26 = arith.constant dense<0.000000e+00> : vector<16x16xf32>
    %66 = tpu.matmul %64, %65, %cst_26 {dimension_numbers = #tpu.dot_dimension_numbers<[1], [1], [0], [0], [0, 0, 1, 0], [], []>} : vector<16x16xbf16>, vector<16x16xbf16>, vector<16x16xf32> -> vector<16x16xf32>
    %67 = arith.mulf %66, %16 : vector<16x16xf32>
    %68 = arith.addf %67, %20 : vector<16x16xf32>
    %cst_27 = arith.constant dense<0xFF800000> : vector<16xf32>
    %69 = vector.multi_reduction <maximumf>, %68, %cst_27 [1] : vector<16x16xf32> to vector<16xf32>
    %70 = vector.shape_cast %69 : vector<16xf32> to vector<16x1xf32>
    %71 = vector.broadcast %70 : vector<16x1xf32> to vector<16x16xf32>
    %72 = arith.subf %68, %71 : vector<16x16xf32>
    %73 = math.exp %72 : vector<16x16xf32>
    %cst_28 = arith.constant dense<0.000000e+00> : vector<16xf32>
    %74 = vector.multi_reduction <add>, %73, %cst_28 [1] : vector<16x16xf32> to vector<16xf32>
    %75 = vector.shape_cast %74 : vector<16xf32> to vector<16x1xf32>
    %76 = vector.broadcast %75 : vector<16x1xf32> to vector<16x16xf32>
    %77 = arith.divf %73, %76 : vector<16x16xf32>
    %78 = arith.truncf %77 : vector<16x16xf32> to vector<16x16xbf16>
    %79 = vector.extract_strided_slice %12 {offsets = [0, 32], sizes = [16, 16], strides = [1, 1]} : vector<16x128xbf16> to vector<16x16xbf16>
    %cst_29 = arith.constant dense<0.000000e+00> : vector<16x16xf32>
    %80 = tpu.matmul %78, %79, %cst_29 {dimension_numbers = #tpu.dot_dimension_numbers<[1], [0], [0], [1], [0, 0, 1, 1], [], []>} : vector<16x16xbf16>, vector<16x16xbf16>, vector<16x16xf32> -> vector<16x16xf32>
    %81 = arith.truncf %80 : vector<16x16xf32> to vector<16x16xbf16>
    %82 = vector.extract_strided_slice %8 {offsets = [32, 0], sizes = [16, 128], strides = [1, 1]} : vector<128x128xbf16> to vector<16x128xbf16>
    %cst_30 = arith.constant dense<0.000000e+00> : vector<16x128xf32>
    %83 = tpu.matmul %81, %82, %cst_30 {dimension_numbers = #tpu.dot_dimension_numbers<[1], [0], [0], [1], [0, 0, 1, 1], [], []>} : vector<16x16xbf16>, vector<16x128xbf16>, vector<16x128xf32> -> vector<16x128xf32>
    %84 = arith.addf %63, %83 : vector<16x128xf32>
    %85 = vector.extract_strided_slice %10 {offsets = [0, 48], sizes = [16, 16], strides = [1, 1]} : vector<16x128xbf16> to vector<16x16xbf16>
    %86 = vector.extract_strided_slice %11 {offsets = [0, 48], sizes = [16, 16], strides = [1, 1]} : vector<16x128xbf16> to vector<16x16xbf16>
    %cst_31 = arith.constant dense<0.000000e+00> : vector<16x16xf32>
    %87 = tpu.matmul %85, %86, %cst_31 {dimension_numbers = #tpu.dot_dimension_numbers<[1], [1], [0], [0], [0, 0, 1, 0], [], []>} : vector<16x16xbf16>, vector<16x16xbf16>, vector<16x16xf32> -> vector<16x16xf32>
    %88 = arith.mulf %87, %16 : vector<16x16xf32>
    %89 = arith.addf %88, %20 : vector<16x16xf32>
    %cst_32 = arith.constant dense<0xFF800000> : vector<16xf32>
    %90 = vector.multi_reduction <maximumf>, %89, %cst_32 [1] : vector<16x16xf32> to vector<16xf32>
    %91 = vector.shape_cast %90 : vector<16xf32> to vector<16x1xf32>
    %92 = vector.broadcast %91 : vector<16x1xf32> to vector<16x16xf32>
    %93 = arith.subf %89, %92 : vector<16x16xf32>
    %94 = math.exp %93 : vector<16x16xf32>
    %cst_33 = arith.constant dense<0.000000e+00> : vector<16xf32>
    %95 = vector.multi_reduction <add>, %94, %cst_33 [1] : vector<16x16xf32> to vector<16xf32>
    %96 = vector.shape_cast %95 : vector<16xf32> to vector<16x1xf32>
    %97 = vector.broadcast %96 : vector<16x1xf32> to vector<16x16xf32>
    %98 = arith.divf %94, %97 : vector<16x16xf32>
    %99 = arith.truncf %98 : vector<16x16xf32> to vector<16x16xbf16>
    %100 = vector.extract_strided_slice %12 {offsets = [0, 48], sizes = [16, 16], strides = [1, 1]} : vector<16x128xbf16> to vector<16x16xbf16>
    %cst_34 = arith.constant dense<0.000000e+00> : vector<16x16xf32>
    %101 = tpu.matmul %99, %100, %cst_34 {dimension_numbers = #tpu.dot_dimension_numbers<[1], [0], [0], [1], [0, 0, 1, 1], [], []>} : vector<16x16xbf16>, vector<16x16xbf16>, vector<16x16xf32> -> vector<16x16xf32>
    %102 = arith.truncf %101 : vector<16x16xf32> to vector<16x16xbf16>
    %103 = vector.extract_strided_slice %8 {offsets = [48, 0], sizes = [16, 128], strides = [1, 1]} : vector<128x128xbf16> to vector<16x128xbf16>
    %cst_35 = arith.constant dense<0.000000e+00> : vector<16x128xf32>
    %104 = tpu.matmul %102, %103, %cst_35 {dimension_numbers = #tpu.dot_dimension_numbers<[1], [0], [0], [1], [0, 0, 1, 1], [], []>} : vector<16x16xbf16>, vector<16x128xbf16>, vector<16x128xf32> -> vector<16x128xf32>
    %105 = arith.addf %84, %104 : vector<16x128xf32>
    %106 = vector.extract_strided_slice %10 {offsets = [0, 64], sizes = [16, 16], strides = [1, 1]} : vector<16x128xbf16> to vector<16x16xbf16>
    %107 = vector.extract_strided_slice %11 {offsets = [0, 64], sizes = [16, 16], strides = [1, 1]} : vector<16x128xbf16> to vector<16x16xbf16>
    %cst_36 = arith.constant dense<0.000000e+00> : vector<16x16xf32>
    %108 = tpu.matmul %106, %107, %cst_36 {dimension_numbers = #tpu.dot_dimension_numbers<[1], [1], [0], [0], [0, 0, 1, 0], [], []>} : vector<16x16xbf16>, vector<16x16xbf16>, vector<16x16xf32> -> vector<16x16xf32>
    %109 = arith.mulf %108, %16 : vector<16x16xf32>
    %110 = arith.addf %109, %20 : vector<16x16xf32>
    %cst_37 = arith.constant dense<0xFF800000> : vector<16xf32>
    %111 = vector.multi_reduction <maximumf>, %110, %cst_37 [1] : vector<16x16xf32> to vector<16xf32>
    %112 = vector.shape_cast %111 : vector<16xf32> to vector<16x1xf32>
    %113 = vector.broadcast %112 : vector<16x1xf32> to vector<16x16xf32>
    %114 = arith.subf %110, %113 : vector<16x16xf32>
    %115 = math.exp %114 : vector<16x16xf32>
    %cst_38 = arith.constant dense<0.000000e+00> : vector<16xf32>
    %116 = vector.multi_reduction <add>, %115, %cst_38 [1] : vector<16x16xf32> to vector<16xf32>
    %117 = vector.shape_cast %116 : vector<16xf32> to vector<16x1xf32>
    %118 = vector.broadcast %117 : vector<16x1xf32> to vector<16x16xf32>
    %119 = arith.divf %115, %118 : vector<16x16xf32>
    %120 = arith.truncf %119 : vector<16x16xf32> to vector<16x16xbf16>
    %121 = vector.extract_strided_slice %12 {offsets = [0, 64], sizes = [16, 16], strides = [1, 1]} : vector<16x128xbf16> to vector<16x16xbf16>
    %cst_39 = arith.constant dense<0.000000e+00> : vector<16x16xf32>
    %122 = tpu.matmul %120, %121, %cst_39 {dimension_numbers = #tpu.dot_dimension_numbers<[1], [0], [0], [1], [0, 0, 1, 1], [], []>} : vector<16x16xbf16>, vector<16x16xbf16>, vector<16x16xf32> -> vector<16x16xf32>
    %123 = arith.truncf %122 : vector<16x16xf32> to vector<16x16xbf16>
    %124 = vector.extract_strided_slice %8 {offsets = [64, 0], sizes = [16, 128], strides = [1, 1]} : vector<128x128xbf16> to vector<16x128xbf16>
    %cst_40 = arith.constant dense<0.000000e+00> : vector<16x128xf32>
    %125 = tpu.matmul %123, %124, %cst_40 {dimension_numbers = #tpu.dot_dimension_numbers<[1], [0], [0], [1], [0, 0, 1, 1], [], []>} : vector<16x16xbf16>, vector<16x128xbf16>, vector<16x128xf32> -> vector<16x128xf32>
    %126 = arith.addf %105, %125 : vector<16x128xf32>
    %127 = vector.extract_strided_slice %10 {offsets = [0, 80], sizes = [16, 16], strides = [1, 1]} : vector<16x128xbf16> to vector<16x16xbf16>
    %128 = vector.extract_strided_slice %11 {offsets = [0, 80], sizes = [16, 16], strides = [1, 1]} : vector<16x128xbf16> to vector<16x16xbf16>
    %cst_41 = arith.constant dense<0.000000e+00> : vector<16x16xf32>
    %129 = tpu.matmul %127, %128, %cst_41 {dimension_numbers = #tpu.dot_dimension_numbers<[1], [1], [0], [0], [0, 0, 1, 0], [], []>} : vector<16x16xbf16>, vector<16x16xbf16>, vector<16x16xf32> -> vector<16x16xf32>
    %130 = arith.mulf %129, %16 : vector<16x16xf32>
    %131 = arith.addf %130, %20 : vector<16x16xf32>
    %cst_42 = arith.constant dense<0xFF800000> : vector<16xf32>
    %132 = vector.multi_reduction <maximumf>, %131, %cst_42 [1] : vector<16x16xf32> to vector<16xf32>
    %133 = vector.shape_cast %132 : vector<16xf32> to vector<16x1xf32>
    %134 = vector.broadcast %133 : vector<16x1xf32> to vector<16x16xf32>
    %135 = arith.subf %131, %134 : vector<16x16xf32>
    %136 = math.exp %135 : vector<16x16xf32>
    %cst_43 = arith.constant dense<0.000000e+00> : vector<16xf32>
    %137 = vector.multi_reduction <add>, %136, %cst_43 [1] : vector<16x16xf32> to vector<16xf32>
    %138 = vector.shape_cast %137 : vector<16xf32> to vector<16x1xf32>
    %139 = vector.broadcast %138 : vector<16x1xf32> to vector<16x16xf32>
    %140 = arith.divf %136, %139 : vector<16x16xf32>
    %141 = arith.truncf %140 : vector<16x16xf32> to vector<16x16xbf16>
    %142 = vector.extract_strided_slice %12 {offsets = [0, 80], sizes = [16, 16], strides = [1, 1]} : vector<16x128xbf16> to vector<16x16xbf16>
    %cst_44 = arith.constant dense<0.000000e+00> : vector<16x16xf32>
    %143 = tpu.matmul %141, %142, %cst_44 {dimension_numbers = #tpu.dot_dimension_numbers<[1], [0], [0], [1], [0, 0, 1, 1], [], []>} : vector<16x16xbf16>, vector<16x16xbf16>, vector<16x16xf32> -> vector<16x16xf32>
    %144 = arith.truncf %143 : vector<16x16xf32> to vector<16x16xbf16>
    %145 = vector.extract_strided_slice %8 {offsets = [80, 0], sizes = [16, 128], strides = [1, 1]} : vector<128x128xbf16> to vector<16x128xbf16>
    %cst_45 = arith.constant dense<0.000000e+00> : vector<16x128xf32>
    %146 = tpu.matmul %144, %145, %cst_45 {dimension_numbers = #tpu.dot_dimension_numbers<[1], [0], [0], [1], [0, 0, 1, 1], [], []>} : vector<16x16xbf16>, vector<16x128xbf16>, vector<16x128xf32> -> vector<16x128xf32>
    %147 = arith.addf %126, %146 : vector<16x128xf32>
    %148 = vector.extract_strided_slice %10 {offsets = [0, 96], sizes = [16, 16], strides = [1, 1]} : vector<16x128xbf16> to vector<16x16xbf16>
    %149 = vector.extract_strided_slice %11 {offsets = [0, 96], sizes = [16, 16], strides = [1, 1]} : vector<16x128xbf16> to vector<16x16xbf16>
    %cst_46 = arith.constant dense<0.000000e+00> : vector<16x16xf32>
    %150 = tpu.matmul %148, %149, %cst_46 {dimension_numbers = #tpu.dot_dimension_numbers<[1], [1], [0], [0], [0, 0, 1, 0], [], []>} : vector<16x16xbf16>, vector<16x16xbf16>, vector<16x16xf32> -> vector<16x16xf32>
    %151 = arith.mulf %150, %16 : vector<16x16xf32>
    %152 = arith.addf %151, %20 : vector<16x16xf32>
    %cst_47 = arith.constant dense<0xFF800000> : vector<16xf32>
    %153 = vector.multi_reduction <maximumf>, %152, %cst_47 [1] : vector<16x16xf32> to vector<16xf32>
    %154 = vector.shape_cast %153 : vector<16xf32> to vector<16x1xf32>
    %155 = vector.broadcast %154 : vector<16x1xf32> to vector<16x16xf32>
    %156 = arith.subf %152, %155 : vector<16x16xf32>
    %157 = math.exp %156 : vector<16x16xf32>
    %cst_48 = arith.constant dense<0.000000e+00> : vector<16xf32>
    %158 = vector.multi_reduction <add>, %157, %cst_48 [1] : vector<16x16xf32> to vector<16xf32>
    %159 = vector.shape_cast %158 : vector<16xf32> to vector<16x1xf32>
    %160 = vector.broadcast %159 : vector<16x1xf32> to vector<16x16xf32>
    %161 = arith.divf %157, %160 : vector<16x16xf32>
    %162 = arith.truncf %161 : vector<16x16xf32> to vector<16x16xbf16>
    %163 = vector.extract_strided_slice %12 {offsets = [0, 96], sizes = [16, 16], strides = [1, 1]} : vector<16x128xbf16> to vector<16x16xbf16>
    %cst_49 = arith.constant dense<0.000000e+00> : vector<16x16xf32>
    %164 = tpu.matmul %162, %163, %cst_49 {dimension_numbers = #tpu.dot_dimension_numbers<[1], [0], [0], [1], [0, 0, 1, 1], [], []>} : vector<16x16xbf16>, vector<16x16xbf16>, vector<16x16xf32> -> vector<16x16xf32>
    %165 = arith.truncf %164 : vector<16x16xf32> to vector<16x16xbf16>
    %166 = vector.extract_strided_slice %8 {offsets = [96, 0], sizes = [16, 128], strides = [1, 1]} : vector<128x128xbf16> to vector<16x128xbf16>
    %cst_50 = arith.constant dense<0.000000e+00> : vector<16x128xf32>
    %167 = tpu.matmul %165, %166, %cst_50 {dimension_numbers = #tpu.dot_dimension_numbers<[1], [0], [0], [1], [0, 0, 1, 1], [], []>} : vector<16x16xbf16>, vector<16x128xbf16>, vector<16x128xf32> -> vector<16x128xf32>
    %168 = arith.addf %147, %167 : vector<16x128xf32>
    %169 = vector.extract_strided_slice %10 {offsets = [0, 112], sizes = [16, 16], strides = [1, 1]} : vector<16x128xbf16> to vector<16x16xbf16>
    %170 = vector.extract_strided_slice %11 {offsets = [0, 112], sizes = [16, 16], strides = [1, 1]} : vector<16x128xbf16> to vector<16x16xbf16>
    %cst_51 = arith.constant dense<0.000000e+00> : vector<16x16xf32>
    %171 = tpu.matmul %169, %170, %cst_51 {dimension_numbers = #tpu.dot_dimension_numbers<[1], [1], [0], [0], [0, 0, 1, 0], [], []>} : vector<16x16xbf16>, vector<16x16xbf16>, vector<16x16xf32> -> vector<16x16xf32>
    %172 = arith.mulf %171, %16 : vector<16x16xf32>
    %173 = arith.addf %172, %20 : vector<16x16xf32>
    %cst_52 = arith.constant dense<0xFF800000> : vector<16xf32>
    %174 = vector.multi_reduction <maximumf>, %173, %cst_52 [1] : vector<16x16xf32> to vector<16xf32>
    %175 = vector.shape_cast %174 : vector<16xf32> to vector<16x1xf32>
    %176 = vector.broadcast %175 : vector<16x1xf32> to vector<16x16xf32>
    %177 = arith.subf %173, %176 : vector<16x16xf32>
    %178 = math.exp %177 : vector<16x16xf32>
    %cst_53 = arith.constant dense<0.000000e+00> : vector<16xf32>
    %179 = vector.multi_reduction <add>, %178, %cst_53 [1] : vector<16x16xf32> to vector<16xf32>
    %180 = vector.shape_cast %179 : vector<16xf32> to vector<16x1xf32>
    %181 = vector.broadcast %180 : vector<16x1xf32> to vector<16x16xf32>
    %182 = arith.divf %178, %181 : vector<16x16xf32>
    %183 = arith.truncf %182 : vector<16x16xf32> to vector<16x16xbf16>
    %184 = vector.extract_strided_slice %12 {offsets = [0, 112], sizes = [16, 16], strides = [1, 1]} : vector<16x128xbf16> to vector<16x16xbf16>
    %cst_54 = arith.constant dense<0.000000e+00> : vector<16x16xf32>
    %185 = tpu.matmul %183, %184, %cst_54 {dimension_numbers = #tpu.dot_dimension_numbers<[1], [0], [0], [1], [0, 0, 1, 1], [], []>} : vector<16x16xbf16>, vector<16x16xbf16>, vector<16x16xf32> -> vector<16x16xf32>
    %186 = arith.truncf %185 : vector<16x16xf32> to vector<16x16xbf16>
    %187 = vector.extract_strided_slice %8 {offsets = [112, 0], sizes = [16, 128], strides = [1, 1]} : vector<128x128xbf16> to vector<16x128xbf16>
    %cst_55 = arith.constant dense<0.000000e+00> : vector<16x128xf32>
    %188 = tpu.matmul %186, %187, %cst_55 {dimension_numbers = #tpu.dot_dimension_numbers<[1], [0], [0], [1], [0, 0, 1, 1], [], []>} : vector<16x16xbf16>, vector<16x128xbf16>, vector<16x128xf32> -> vector<16x128xf32>
    %189 = arith.addf %168, %188 : vector<16x128xf32>
    %190 = vector.broadcast %9 : vector<1x128xf32> to vector<16x128xf32>
    %191 = arith.addf %189, %190 : vector<16x128xf32>
    %c0_56 = arith.constant 0 : index
    %c0_57 = arith.constant 0 : index
    %c0_58 = arith.constant 0 : index
    %192 = vector.load %arg7[%c0_56, %c0_57, %c0_58] : memref<2x16x128xf32, #tpu.memory_space<vmem>>, vector<1x16x128xf32>
    %193 = vector.shape_cast %192 : vector<1x16x128xf32> to vector<16x128xf32>
    %194 = vector.shape_cast %191 : vector<16x128xf32> to vector<1x16x128xf32>
    tpu.vector_store %arg7[%c0_56, %c0_57, %c0_58], %194 {strides = array<i32>} : memref<2x16x128xf32, #tpu.memory_space<vmem>>, vector<1x16x128xf32>,
    %195 = vector.extract_strided_slice %7 {offsets = [16, 0], sizes = [16, 128], strides = [1, 1]} : vector<32x384xbf16> to vector<16x128xbf16>
    %196 = vector.extract_strided_slice %7 {offsets = [16, 128], sizes = [16, 128], strides = [1, 1]} : vector<32x384xbf16> to vector<16x128xbf16>
    %197 = vector.extract_strided_slice %7 {offsets = [16, 256], sizes = [16, 128], strides = [1, 1]} : vector<32x384xbf16> to vector<16x128xbf16>
    %c1 = arith.constant 1 : index
    %c0_59 = arith.constant 0 : index
    %c0_60 = arith.constant 0 : index
    %198 = vector.load %arg2[%c1, %c0_59, %c0_60] : memref<2x1x16xf32, #tpu.memory_space<vmem>>, vector<1x1x16xf32>
    %199 = vector.shape_cast %198 : vector<1x1x16xf32> to vector<1x16xf32>
    %200 = vector.shape_cast %199 : vector<1x16xf32> to vector<1x16xf32>
    %201 = vector.broadcast %200 : vector<1x16xf32> to vector<16x16xf32>
    %cst_61 = arith.constant 1.000000e+00 : f32
    %202 = vector.broadcast %cst_61 : f32 to vector<16x16xf32>
    %203 = arith.subf %202, %201 : vector<16x16xf32>
    %cst_62 = arith.constant -9.99999986E+14 : f32
    %204 = vector.broadcast %cst_62 : f32 to vector<16x16xf32>
    %205 = arith.mulf %204, %203 : vector<16x16xf32>
    %cst_63 = arith.constant 0.000000e+00 : f32
    %206 = vector.broadcast %cst_63 : f32 to vector<16x128xf32>
    %207 = vector.extract_strided_slice %195 {offsets = [0, 0], sizes = [16, 16], strides = [1, 1]} : vector<16x128xbf16> to vector<16x16xbf16>
    %208 = vector.extract_strided_slice %196 {offsets = [0, 0], sizes = [16, 16], strides = [1, 1]} : vector<16x128xbf16> to vector<16x16xbf16>
    %cst_64 = arith.constant dense<0.000000e+00> : vector<16x16xf32>
    %209 = tpu.matmul %207, %208, %cst_64 {dimension_numbers = #tpu.dot_dimension_numbers<[1], [1], [0], [0], [0, 0, 1, 0], [], []>} : vector<16x16xbf16>, vector<16x16xbf16>, vector<16x16xf32> -> vector<16x16xf32>
    %210 = arith.mulf %209, %201 : vector<16x16xf32>
    %211 = arith.addf %210, %205 : vector<16x16xf32>
    %cst_65 = arith.constant dense<0xFF800000> : vector<16xf32>
    %212 = vector.multi_reduction <maximumf>, %211, %cst_65 [1] : vector<16x16xf32> to vector<16xf32>
    %213 = vector.shape_cast %212 : vector<16xf32> to vector<16x1xf32>
    %214 = vector.broadcast %213 : vector<16x1xf32> to vector<16x16xf32>
    %215 = arith.subf %211, %214 : vector<16x16xf32>
    %216 = math.exp %215 : vector<16x16xf32>
    %cst_66 = arith.constant dense<0.000000e+00> : vector<16xf32>
    %217 = vector.multi_reduction <add>, %216, %cst_66 [1] : vector<16x16xf32> to vector<16xf32>
    %218 = vector.shape_cast %217 : vector<16xf32> to vector<16x1xf32>
    %219 = vector.broadcast %218 : vector<16x1xf32> to vector<16x16xf32>
    %220 = arith.divf %216, %219 : vector<16x16xf32>
    %221 = arith.truncf %220 : vector<16x16xf32> to vector<16x16xbf16>
    %222 = vector.extract_strided_slice %197 {offsets = [0, 0], sizes = [16, 16], strides = [1, 1]} : vector<16x128xbf16> to vector<16x16xbf16>
    %cst_67 = arith.constant dense<0.000000e+00> : vector<16x16xf32>
    %223 = tpu.matmul %221, %222, %cst_67 {dimension_numbers = #tpu.dot_dimension_numbers<[1], [0], [0], [1], [0, 0, 1, 1], [], []>} : vector<16x16xbf16>, vector<16x16xbf16>, vector<16x16xf32> -> vector<16x16xf32>
    %224 = arith.truncf %223 : vector<16x16xf32> to vector<16x16xbf16>
    %225 = vector.extract_strided_slice %8 {offsets = [0, 0], sizes = [16, 128], strides = [1, 1]} : vector<128x128xbf16> to vector<16x128xbf16>
    %cst_68 = arith.constant dense<0.000000e+00> : vector<16x128xf32>
    %226 = tpu.matmul %224, %225, %cst_68 {dimension_numbers = #tpu.dot_dimension_numbers<[1], [0], [0], [1], [0, 0, 1, 1], [], []>} : vector<16x16xbf16>, vector<16x128xbf16>, vector<16x128xf32> -> vector<16x128xf32>
    %227 = arith.addf %206, %226 : vector<16x128xf32>
    %228 = vector.extract_strided_slice %195 {offsets = [0, 16], sizes = [16, 16], strides = [1, 1]} : vector<16x128xbf16> to vector<16x16xbf16>
    %229 = vector.extract_strided_slice %196 {offsets = [0, 16], sizes = [16, 16], strides = [1, 1]} : vector<16x128xbf16> to vector<16x16xbf16>
    %cst_69 = arith.constant dense<0.000000e+00> : vector<16x16xf32>
    %230 = tpu.matmul %228, %229, %cst_69 {dimension_numbers = #tpu.dot_dimension_numbers<[1], [1], [0], [0], [0, 0, 1, 0], [], []>} : vector<16x16xbf16>, vector<16x16xbf16>, vector<16x16xf32> -> vector<16x16xf32>
    %231 = arith.mulf %230, %201 : vector<16x16xf32>
    %232 = arith.addf %231, %205 : vector<16x16xf32>
    %cst_70 = arith.constant dense<0xFF800000> : vector<16xf32>
    %233 = vector.multi_reduction <maximumf>, %232, %cst_70 [1] : vector<16x16xf32> to vector<16xf32>
    %234 = vector.shape_cast %233 : vector<16xf32> to vector<16x1xf32>
    %235 = vector.broadcast %234 : vector<16x1xf32> to vector<16x16xf32>
    %236 = arith.subf %232, %235 : vector<16x16xf32>
    %237 = math.exp %236 : vector<16x16xf32>
    %cst_71 = arith.constant dense<0.000000e+00> : vector<16xf32>
    %238 = vector.multi_reduction <add>, %237, %cst_71 [1] : vector<16x16xf32> to vector<16xf32>
    %239 = vector.shape_cast %238 : vector<16xf32> to vector<16x1xf32>
    %240 = vector.broadcast %239 : vector<16x1xf32> to vector<16x16xf32>
    %241 = arith.divf %237, %240 : vector<16x16xf32>
    %242 = arith.truncf %241 : vector<16x16xf32> to vector<16x16xbf16>
    %243 = vector.extract_strided_slice %197 {offsets = [0, 16], sizes = [16, 16], strides = [1, 1]} : vector<16x128xbf16> to vector<16x16xbf16>
    %cst_72 = arith.constant dense<0.000000e+00> : vector<16x16xf32>
    %244 = tpu.matmul %242, %243, %cst_72 {dimension_numbers = #tpu.dot_dimension_numbers<[1], [0], [0], [1], [0, 0, 1, 1], [], []>} : vector<16x16xbf16>, vector<16x16xbf16>, vector<16x16xf32> -> vector<16x16xf32>
    %245 = arith.truncf %244 : vector<16x16xf32> to vector<16x16xbf16>
    %246 = vector.extract_strided_slice %8 {offsets = [16, 0], sizes = [16, 128], strides = [1, 1]} : vector<128x128xbf16> to vector<16x128xbf16>
    %cst_73 = arith.constant dense<0.000000e+00> : vector<16x128xf32>
    %247 = tpu.matmul %245, %246, %cst_73 {dimension_numbers = #tpu.dot_dimension_numbers<[1], [0], [0], [1], [0, 0, 1, 1], [], []>} : vector<16x16xbf16>, vector<16x128xbf16>, vector<16x128xf32> -> vector<16x128xf32>
    %248 = arith.addf %227, %247 : vector<16x128xf32>
    %249 = vector.extract_strided_slice %195 {offsets = [0, 32], sizes = [16, 16], strides = [1, 1]} : vector<16x128xbf16> to vector<16x16xbf16>
    %250 = vector.extract_strided_slice %196 {offsets = [0, 32], sizes = [16, 16], strides = [1, 1]} : vector<16x128xbf16> to vector<16x16xbf16>
    %cst_74 = arith.constant dense<0.000000e+00> : vector<16x16xf32>
    %251 = tpu.matmul %249, %250, %cst_74 {dimension_numbers = #tpu.dot_dimension_numbers<[1], [1], [0], [0], [0, 0, 1, 0], [], []>} : vector<16x16xbf16>, vector<16x16xbf16>, vector<16x16xf32> -> vector<16x16xf32>
    %252 = arith.mulf %251, %201 : vector<16x16xf32>
    %253 = arith.addf %252, %205 : vector<16x16xf32>
    %cst_75 = arith.constant dense<0xFF800000> : vector<16xf32>
    %254 = vector.multi_reduction <maximumf>, %253, %cst_75 [1] : vector<16x16xf32> to vector<16xf32>
    %255 = vector.shape_cast %254 : vector<16xf32> to vector<16x1xf32>
    %256 = vector.broadcast %255 : vector<16x1xf32> to vector<16x16xf32>
    %257 = arith.subf %253, %256 : vector<16x16xf32>
    %258 = math.exp %257 : vector<16x16xf32>
    %cst_76 = arith.constant dense<0.000000e+00> : vector<16xf32>
    %259 = vector.multi_reduction <add>, %258, %cst_76 [1] : vector<16x16xf32> to vector<16xf32>
    %260 = vector.shape_cast %259 : vector<16xf32> to vector<16x1xf32>
    %261 = vector.broadcast %260 : vector<16x1xf32> to vector<16x16xf32>
    %262 = arith.divf %258, %261 : vector<16x16xf32>
    %263 = arith.truncf %262 : vector<16x16xf32> to vector<16x16xbf16>
    %264 = vector.extract_strided_slice %197 {offsets = [0, 32], sizes = [16, 16], strides = [1, 1]} : vector<16x128xbf16> to vector<16x16xbf16>
    %cst_77 = arith.constant dense<0.000000e+00> : vector<16x16xf32>
    %265 = tpu.matmul %263, %264, %cst_77 {dimension_numbers = #tpu.dot_dimension_numbers<[1], [0], [0], [1], [0, 0, 1, 1], [], []>} : vector<16x16xbf16>, vector<16x16xbf16>, vector<16x16xf32> -> vector<16x16xf32>
    %266 = arith.truncf %265 : vector<16x16xf32> to vector<16x16xbf16>
    %267 = vector.extract_strided_slice %8 {offsets = [32, 0], sizes = [16, 128], strides = [1, 1]} : vector<128x128xbf16> to vector<16x128xbf16>
    %cst_78 = arith.constant dense<0.000000e+00> : vector<16x128xf32>
    %268 = tpu.matmul %266, %267, %cst_78 {dimension_numbers = #tpu.dot_dimension_numbers<[1], [0], [0], [1], [0, 0, 1, 1], [], []>} : vector<16x16xbf16>, vector<16x128xbf16>, vector<16x128xf32> -> vector<16x128xf32>
    %269 = arith.addf %248, %268 : vector<16x128xf32>
    %270 = vector.extract_strided_slice %195 {offsets = [0, 48], sizes = [16, 16], strides = [1, 1]} : vector<16x128xbf16> to vector<16x16xbf16>
    %271 = vector.extract_strided_slice %196 {offsets = [0, 48], sizes = [16, 16], strides = [1, 1]} : vector<16x128xbf16> to vector<16x16xbf16>
    %cst_79 = arith.constant dense<0.000000e+00> : vector<16x16xf32>
    %272 = tpu.matmul %270, %271, %cst_79 {dimension_numbers = #tpu.dot_dimension_numbers<[1], [1], [0], [0], [0, 0, 1, 0], [], []>} : vector<16x16xbf16>, vector<16x16xbf16>, vector<16x16xf32> -> vector<16x16xf32>
    %273 = arith.mulf %272, %201 : vector<16x16xf32>
    %274 = arith.addf %273, %205 : vector<16x16xf32>
    %cst_80 = arith.constant dense<0xFF800000> : vector<16xf32>
    %275 = vector.multi_reduction <maximumf>, %274, %cst_80 [1] : vector<16x16xf32> to vector<16xf32>
    %276 = vector.shape_cast %275 : vector<16xf32> to vector<16x1xf32>
    %277 = vector.broadcast %276 : vector<16x1xf32> to vector<16x16xf32>
    %278 = arith.subf %274, %277 : vector<16x16xf32>
    %279 = math.exp %278 : vector<16x16xf32>
    %cst_81 = arith.constant dense<0.000000e+00> : vector<16xf32>
    %280 = vector.multi_reduction <add>, %279, %cst_81 [1] : vector<16x16xf32> to vector<16xf32>
    %281 = vector.shape_cast %280 : vector<16xf32> to vector<16x1xf32>
    %282 = vector.broadcast %281 : vector<16x1xf32> to vector<16x16xf32>
    %283 = arith.divf %279, %282 : vector<16x16xf32>
    %284 = arith.truncf %283 : vector<16x16xf32> to vector<16x16xbf16>
    %285 = vector.extract_strided_slice %197 {offsets = [0, 48], sizes = [16, 16], strides = [1, 1]} : vector<16x128xbf16> to vector<16x16xbf16>
    %cst_82 = arith.constant dense<0.000000e+00> : vector<16x16xf32>
    %286 = tpu.matmul %284, %285, %cst_82 {dimension_numbers = #tpu.dot_dimension_numbers<[1], [0], [0], [1], [0, 0, 1, 1], [], []>} : vector<16x16xbf16>, vector<16x16xbf16>, vector<16x16xf32> -> vector<16x16xf32>
    %287 = arith.truncf %286 : vector<16x16xf32> to vector<16x16xbf16>
    %288 = vector.extract_strided_slice %8 {offsets = [48, 0], sizes = [16, 128], strides = [1, 1]} : vector<128x128xbf16> to vector<16x128xbf16>
    %cst_83 = arith.constant dense<0.000000e+00> : vector<16x128xf32>
    %289 = tpu.matmul %287, %288, %cst_83 {dimension_numbers = #tpu.dot_dimension_numbers<[1], [0], [0], [1], [0, 0, 1, 1], [], []>} : vector<16x16xbf16>, vector<16x128xbf16>, vector<16x128xf32> -> vector<16x128xf32>
    %290 = arith.addf %269, %289 : vector<16x128xf32>
    %291 = vector.extract_strided_slice %195 {offsets = [0, 64], sizes = [16, 16], strides = [1, 1]} : vector<16x128xbf16> to vector<16x16xbf16>
    %292 = vector.extract_strided_slice %196 {offsets = [0, 64], sizes = [16, 16], strides = [1, 1]} : vector<16x128xbf16> to vector<16x16xbf16>
    %cst_84 = arith.constant dense<0.000000e+00> : vector<16x16xf32>
    %293 = tpu.matmul %291, %292, %cst_84 {dimension_numbers = #tpu.dot_dimension_numbers<[1], [1], [0], [0], [0, 0, 1, 0], [], []>} : vector<16x16xbf16>, vector<16x16xbf16>, vector<16x16xf32> -> vector<16x16xf32>
    %294 = arith.mulf %293, %201 : vector<16x16xf32>
    %295 = arith.addf %294, %205 : vector<16x16xf32>
    %cst_85 = arith.constant dense<0xFF800000> : vector<16xf32>
    %296 = vector.multi_reduction <maximumf>, %295, %cst_85 [1] : vector<16x16xf32> to vector<16xf32>
    %297 = vector.shape_cast %296 : vector<16xf32> to vector<16x1xf32>
    %298 = vector.broadcast %297 : vector<16x1xf32> to vector<16x16xf32>
    %299 = arith.subf %295, %298 : vector<16x16xf32>
    %300 = math.exp %299 : vector<16x16xf32>
    %cst_86 = arith.constant dense<0.000000e+00> : vector<16xf32>
    %301 = vector.multi_reduction <add>, %300, %cst_86 [1] : vector<16x16xf32> to vector<16xf32>
    %302 = vector.shape_cast %301 : vector<16xf32> to vector<16x1xf32>
    %303 = vector.broadcast %302 : vector<16x1xf32> to vector<16x16xf32>
    %304 = arith.divf %300, %303 : vector<16x16xf32>
    %305 = arith.truncf %304 : vector<16x16xf32> to vector<16x16xbf16>
    %306 = vector.extract_strided_slice %197 {offsets = [0, 64], sizes = [16, 16], strides = [1, 1]} : vector<16x128xbf16> to vector<16x16xbf16>
    %cst_87 = arith.constant dense<0.000000e+00> : vector<16x16xf32>
    %307 = tpu.matmul %305, %306, %cst_87 {dimension_numbers = #tpu.dot_dimension_numbers<[1], [0], [0], [1], [0, 0, 1, 1], [], []>} : vector<16x16xbf16>, vector<16x16xbf16>, vector<16x16xf32> -> vector<16x16xf32>
    %308 = arith.truncf %307 : vector<16x16xf32> to vector<16x16xbf16>
    %309 = vector.extract_strided_slice %8 {offsets = [64, 0], sizes = [16, 128], strides = [1, 1]} : vector<128x128xbf16> to vector<16x128xbf16>
    %cst_88 = arith.constant dense<0.000000e+00> : vector<16x128xf32>
    %310 = tpu.matmul %308, %309, %cst_88 {dimension_numbers = #tpu.dot_dimension_numbers<[1], [0], [0], [1], [0, 0, 1, 1], [], []>} : vector<16x16xbf16>, vector<16x128xbf16>, vector<16x128xf32> -> vector<16x128xf32>
    %311 = arith.addf %290, %310 : vector<16x128xf32>
    %312 = vector.extract_strided_slice %195 {offsets = [0, 80], sizes = [16, 16], strides = [1, 1]} : vector<16x128xbf16> to vector<16x16xbf16>
    %313 = vector.extract_strided_slice %196 {offsets = [0, 80], sizes = [16, 16], strides = [1, 1]} : vector<16x128xbf16> to vector<16x16xbf16>
    %cst_89 = arith.constant dense<0.000000e+00> : vector<16x16xf32>
    %314 = tpu.matmul %312, %313, %cst_89 {dimension_numbers = #tpu.dot_dimension_numbers<[1], [1], [0], [0], [0, 0, 1, 0], [], []>} : vector<16x16xbf16>, vector<16x16xbf16>, vector<16x16xf32> -> vector<16x16xf32>
    %315 = arith.mulf %314, %201 : vector<16x16xf32>
    %316 = arith.addf %315, %205 : vector<16x16xf32>
    %cst_90 = arith.constant dense<0xFF800000> : vector<16xf32>
    %317 = vector.multi_reduction <maximumf>, %316, %cst_90 [1] : vector<16x16xf32> to vector<16xf32>
    %318 = vector.shape_cast %317 : vector<16xf32> to vector<16x1xf32>
    %319 = vector.broadcast %318 : vector<16x1xf32> to vector<16x16xf32>
    %320 = arith.subf %316, %319 : vector<16x16xf32>
    %321 = math.exp %320 : vector<16x16xf32>
    %cst_91 = arith.constant dense<0.000000e+00> : vector<16xf32>
    %322 = vector.multi_reduction <add>, %321, %cst_91 [1] : vector<16x16xf32> to vector<16xf32>
    %323 = vector.shape_cast %322 : vector<16xf32> to vector<16x1xf32>
    %324 = vector.broadcast %323 : vector<16x1xf32> to vector<16x16xf32>
    %325 = arith.divf %321, %324 : vector<16x16xf32>
    %326 = arith.truncf %325 : vector<16x16xf32> to vector<16x16xbf16>
    %327 = vector.extract_strided_slice %197 {offsets = [0, 80], sizes = [16, 16], strides = [1, 1]} : vector<16x128xbf16> to vector<16x16xbf16>
    %cst_92 = arith.constant dense<0.000000e+00> : vector<16x16xf32>
    %328 = tpu.matmul %326, %327, %cst_92 {dimension_numbers = #tpu.dot_dimension_numbers<[1], [0], [0], [1], [0, 0, 1, 1], [], []>} : vector<16x16xbf16>, vector<16x16xbf16>, vector<16x16xf32> -> vector<16x16xf32>
    %329 = arith.truncf %328 : vector<16x16xf32> to vector<16x16xbf16>
    %330 = vector.extract_strided_slice %8 {offsets = [80, 0], sizes = [16, 128], strides = [1, 1]} : vector<128x128xbf16> to vector<16x128xbf16>
    %cst_93 = arith.constant dense<0.000000e+00> : vector<16x128xf32>
    %331 = tpu.matmul %329, %330, %cst_93 {dimension_numbers = #tpu.dot_dimension_numbers<[1], [0], [0], [1], [0, 0, 1, 1], [], []>} : vector<16x16xbf16>, vector<16x128xbf16>, vector<16x128xf32> -> vector<16x128xf32>
    %332 = arith.addf %311, %331 : vector<16x128xf32>
    %333 = vector.extract_strided_slice %195 {offsets = [0, 96], sizes = [16, 16], strides = [1, 1]} : vector<16x128xbf16> to vector<16x16xbf16>
    %334 = vector.extract_strided_slice %196 {offsets = [0, 96], sizes = [16, 16], strides = [1, 1]} : vector<16x128xbf16> to vector<16x16xbf16>
    %cst_94 = arith.constant dense<0.000000e+00> : vector<16x16xf32>
    %335 = tpu.matmul %333, %334, %cst_94 {dimension_numbers = #tpu.dot_dimension_numbers<[1], [1], [0], [0], [0, 0, 1, 0], [], []>} : vector<16x16xbf16>, vector<16x16xbf16>, vector<16x16xf32> -> vector<16x16xf32>
    %336 = arith.mulf %335, %201 : vector<16x16xf32>
    %337 = arith.addf %336, %205 : vector<16x16xf32>
    %cst_95 = arith.constant dense<0xFF800000> : vector<16xf32>
    %338 = vector.multi_reduction <maximumf>, %337, %cst_95 [1] : vector<16x16xf32> to vector<16xf32>
    %339 = vector.shape_cast %338 : vector<16xf32> to vector<16x1xf32>
    %340 = vector.broadcast %339 : vector<16x1xf32> to vector<16x16xf32>
    %341 = arith.subf %337, %340 : vector<16x16xf32>
    %342 = math.exp %341 : vector<16x16xf32>
    %cst_96 = arith.constant dense<0.000000e+00> : vector<16xf32>
    %343 = vector.multi_reduction <add>, %342, %cst_96 [1] : vector<16x16xf32> to vector<16xf32>
    %344 = vector.shape_cast %343 : vector<16xf32> to vector<16x1xf32>
    %345 = vector.broadcast %344 : vector<16x1xf32> to vector<16x16xf32>
    %346 = arith.divf %342, %345 : vector<16x16xf32>
    %347 = arith.truncf %346 : vector<16x16xf32> to vector<16x16xbf16>
    %348 = vector.extract_strided_slice %197 {offsets = [0, 96], sizes = [16, 16], strides = [1, 1]} : vector<16x128xbf16> to vector<16x16xbf16>
    %cst_97 = arith.constant dense<0.000000e+00> : vector<16x16xf32>
    %349 = tpu.matmul %347, %348, %cst_97 {dimension_numbers = #tpu.dot_dimension_numbers<[1], [0], [0], [1], [0, 0, 1, 1], [], []>} : vector<16x16xbf16>, vector<16x16xbf16>, vector<16x16xf32> -> vector<16x16xf32>
    %350 = arith.truncf %349 : vector<16x16xf32> to vector<16x16xbf16>
    %351 = vector.extract_strided_slice %8 {offsets = [96, 0], sizes = [16, 128], strides = [1, 1]} : vector<128x128xbf16> to vector<16x128xbf16>
    %cst_98 = arith.constant dense<0.000000e+00> : vector<16x128xf32>
    %352 = tpu.matmul %350, %351, %cst_98 {dimension_numbers = #tpu.dot_dimension_numbers<[1], [0], [0], [1], [0, 0, 1, 1], [], []>} : vector<16x16xbf16>, vector<16x128xbf16>, vector<16x128xf32> -> vector<16x128xf32>
    %353 = arith.addf %332, %352 : vector<16x128xf32>
    %354 = vector.extract_strided_slice %195 {offsets = [0, 112], sizes = [16, 16], strides = [1, 1]} : vector<16x128xbf16> to vector<16x16xbf16>
    %355 = vector.extract_strided_slice %196 {offsets = [0, 112], sizes = [16, 16], strides = [1, 1]} : vector<16x128xbf16> to vector<16x16xbf16>
    %cst_99 = arith.constant dense<0.000000e+00> : vector<16x16xf32>
    %356 = tpu.matmul %354, %355, %cst_99 {dimension_numbers = #tpu.dot_dimension_numbers<[1], [1], [0], [0], [0, 0, 1, 0], [], []>} : vector<16x16xbf16>, vector<16x16xbf16>, vector<16x16xf32> -> vector<16x16xf32>
    %357 = arith.mulf %356, %201 : vector<16x16xf32>
    %358 = arith.addf %357, %205 : vector<16x16xf32>
    %cst_100 = arith.constant dense<0xFF800000> : vector<16xf32>
    %359 = vector.multi_reduction <maximumf>, %358, %cst_100 [1] : vector<16x16xf32> to vector<16xf32>
    %360 = vector.shape_cast %359 : vector<16xf32> to vector<16x1xf32>
    %361 = vector.broadcast %360 : vector<16x1xf32> to vector<16x16xf32>
    %362 = arith.subf %358, %361 : vector<16x16xf32>
    %363 = math.exp %362 : vector<16x16xf32>
    %cst_101 = arith.constant dense<0.000000e+00> : vector<16xf32>
    %364 = vector.multi_reduction <add>, %363, %cst_101 [1] : vector<16x16xf32> to vector<16xf32>
    %365 = vector.shape_cast %364 : vector<16xf32> to vector<16x1xf32>
    %366 = vector.broadcast %365 : vector<16x1xf32> to vector<16x16xf32>
    %367 = arith.divf %363, %366 : vector<16x16xf32>
    %368 = arith.truncf %367 : vector<16x16xf32> to vector<16x16xbf16>
    %369 = vector.extract_strided_slice %197 {offsets = [0, 112], sizes = [16, 16], strides = [1, 1]} : vector<16x128xbf16> to vector<16x16xbf16>
    %cst_102 = arith.constant dense<0.000000e+00> : vector<16x16xf32>
    %370 = tpu.matmul %368, %369, %cst_102 {dimension_numbers = #tpu.dot_dimension_numbers<[1], [0], [0], [1], [0, 0, 1, 1], [], []>} : vector<16x16xbf16>, vector<16x16xbf16>, vector<16x16xf32> -> vector<16x16xf32>
    %371 = arith.truncf %370 : vector<16x16xf32> to vector<16x16xbf16>
    %372 = vector.extract_strided_slice %8 {offsets = [112, 0], sizes = [16, 128], strides = [1, 1]} : vector<128x128xbf16> to vector<16x128xbf16>
    %cst_103 = arith.constant dense<0.000000e+00> : vector<16x128xf32>
    %373 = tpu.matmul %371, %372, %cst_103 {dimension_numbers = #tpu.dot_dimension_numbers<[1], [0], [0], [1], [0, 0, 1, 1], [], []>} : vector<16x16xbf16>, vector<16x128xbf16>, vector<16x128xf32> -> vector<16x128xf32>
    %374 = arith.addf %353, %373 : vector<16x128xf32>
    %375 = vector.broadcast %9 : vector<1x128xf32> to vector<16x128xf32>
    %376 = arith.addf %374, %375 : vector<16x128xf32>
    %c1_104 = arith.constant 1 : index
    %c0_105 = arith.constant 0 : index
    %c0_106 = arith.constant 0 : index
    %377 = vector.load %arg7[%c1_104, %c0_105, %c0_106] : memref<2x16x128xf32, #tpu.memory_space<vmem>>, vector<1x16x128xf32>
    %378 = vector.shape_cast %377 : vector<1x16x128xf32> to vector<16x128xf32>
    %379 = vector.shape_cast %376 : vector<16x128xf32> to vector<1x16x128xf32>
    tpu.vector_store %arg7[%c1_104, %c0_105, %c0_106], %379 {strides = array<i32>} : memref<2x16x128xf32, #tpu.memory_space<vmem>>, vector<1x16x128xf32>,
    return
  }
  func.func @transform_0(%arg0: i32) -> (i32, i32, i32) {
    %c0_i32 = arith.constant 0 : i32
    %c0_i32_0 = arith.constant 0 : i32
    %c0_i32_1 = arith.constant 0 : i32
    return %arg0, %c0_i32, %c0_i32_0 : i32, i32, i32
  }
  func.func @transform_1(%arg0: i32) -> (i32, i32, i32) {
    %c0_i32 = arith.constant 0 : i32
    %c0_i32_0 = arith.constant 0 : i32
    %c0_i32_1 = arith.constant 0 : i32
    return %arg0, %c0_i32, %c0_i32_0 : i32, i32, i32
  }
  func.func @transform_2(%arg0: i32) -> (i32, i32) {
    %c0_i32 = arith.constant 0 : i32
    %c0_i32_0 = arith.constant 0 : i32
    %c0_i32_1 = arith.constant 0 : i32
    return %c0_i32, %c0_i32_0 : i32, i32
  }
  func.func @transform_3(%arg0: i32) -> (i32, i32) {
    %c0_i32 = arith.constant 0 : i32
    %c0_i32_0 = arith.constant 0 : i32
    %c0_i32_1 = arith.constant 0 : i32
    return %c0_i32, %c0_i32_0 : i32, i32
  }
  func.func @transform_4(%arg0: i32) -> (i32, i32) {
    %c0_i32 = arith.constant 0 : i32
    %c0_i32_0 = arith.constant 0 : i32
    %c0_i32_1 = arith.constant 0 : i32
    return %c0_i32, %c0_i32_0 : i32, i32
  }
  func.func @transform_5(%arg0: i32) -> (i32, i32) {
    %c0_i32 = arith.constant 0 : i32
    %c0_i32_0 = arith.constant 0 : i32
    %c0_i32_1 = arith.constant 0 : i32
    return %c0_i32, %c0_i32_0 : i32, i32
  }
  func.func @transform_6(%arg0: i32) -> (i32, i32, i32) {
    %c0_i32 = arith.constant 0 : i32
    %c0_i32_0 = arith.constant 0 : i32
    %c0_i32_1 = arith.constant 0 : i32
    return %arg0, %c0_i32, %c0_i32_0 : i32, i32, i32
  }
}

</mosaic_0001>

<llo_original>
// kernel: multi_head_attention.1
$region0: #{multi_head_attention.1}
  #allocation0 [shape = 'u32[]', space=smem, size = 0x4, offset = 0x4, fixed_abs, tag = 'smem constant byte address 0x4 - core index']
  #allocation1 [shape = 'u32[144,128]{1,0:T(1,128)}', space=vmem, size = 0x12000, scoped, tag = 'internal scratch']
  %s0 = inlined_call_operand.vmem [shape: bf16[2,16,128], index: 0, kind: input, shape index: {}]
  %s1 = inlined_call_operand.vmem [shape: f32[2,1,16], index: 1, kind: input, shape index: {}]
  %s2 = inlined_call_operand.hbm [shape: bf16[128,384], index: 2, kind: input, shape index: {}]
  %s3 = inlined_call_operand.hbm [shape: f32[1,384], index: 3, kind: input, shape index: {}]
  %s4 = inlined_call_operand.vmem [shape: bf16[128,128], index: 4, kind: input, shape index: {}]
  %s5 = inlined_call_operand.hbm [shape: f32[1,128], index: 5, kind: input, shape index: {}]
  %s6 = inlined_call_operand.hbm [shape: f32[2,16,128], index: 6, kind: output, shape index: {}]
  %s7 = sld [smem:[#allocation0]]
  $region46: #{multi_head_attention.1} parent=0
    _
  %s9 = ssub.s32 1, %s7
  %s10 = scalar_select 0, %s9, %s7
  $region1: #{multi_head_attention.1} parent=0
    #allocation2 [shape = 'u8[98304]{0}', space=vmem, size = 0x18000, scoped, tag = 'input window, operand 2, single buffered']
    #allocation3 [shape = 's32[1]{0}', space=sflag, size = 0x4, scoped, tag = 'scoped memory for multi_head_attention.1']
    #allocation4 [shape = 's32[1]{0}', space=sflag, size = 0x4, scoped, tag = 'scoped memory for multi_head_attention.1']
    #allocation5 [shape = 'u8[1536]{0}', space=vmem, size = 0x800, scoped, tag = 'input window, operand 3, single buffered']
    #allocation6 [shape = 's32[1]{0}', space=sflag, size = 0x4, scoped, tag = 'scoped memory for multi_head_attention.1']
    #allocation7 [shape = 'u8[512]{0}', space=vmem, size = 0x400, scoped, tag = 'input window, operand 5, single buffered']
    #allocation8 [shape = 'u8[16384]{0}', space=vmem, size = 0x4000, scoped, tag = 'output window, operand 0, single buffered']
    %11 = vsyncpa [#allocation3], 0
    %12 = vsyncpa [#allocation6], 0
    %13 = vsyncpa [#allocation4], 0
    // Predicated region
    $region2: #{multi_head_attention.1} parent=1 // pred_check
      _
    $region3: #{multi_head_attention.1} parent=1 // pred_check_branch
      %15 = sbr.rel (0) target = $region5
    $region4: #{multi_head_attention.1} parent=1 // pred_region
      _
    $region5: #{multi_head_attention.1} parent=1 // pred_fallthru
      _
    // Predicated region
    $region6: #{multi_head_attention.1} parent=1 // pred_check
      _
    $region7: #{multi_head_attention.1} parent=1 // pred_check_branch
      %17 = sbr.rel (0) target = $region9
    $region8: #{multi_head_attention.1} parent=1 // pred_region
      _
    $region9: #{multi_head_attention.1} parent=1 // pred_fallthru
      _
    // Predicated region
    $region10: #{multi_head_attention.1} parent=1 // pred_check
      _
    $region11: #{multi_head_attention.1} parent=1 // pred_check_branch
      %19 = sbr.rel (0) target = $region13
    $region12: #{multi_head_attention.1} parent=1 // pred_region
      %s21 = ssub.s32 3072, 3072
      %22 = vsyncadd [#allocation3], %s21
      %s23 = sshll.u32 [#allocation2], 4
      %s24 = int_to_ptr.vmem [resolvable:$true] %s23
      %29 = dma.hbm_to_vmem [thread:$0]  %s2, 3072, %s24, [#allocation3], 192, 192, 12
    $region13: #{multi_head_attention.1} parent=1 // pred_fallthru
      _
    // Predicated region
    $region14: #{multi_head_attention.1} parent=1 // pred_check
      _
    $region15: #{multi_head_attention.1} parent=1 // pred_check_branch
      %31 = sbr.rel (0) target = $region17
    $region16: #{multi_head_attention.1} parent=1 // pred_region
      %s33 = ssub.s32 48, 48
      %34 = vsyncadd [#allocation6], %s33
      %s36 = sshll.u32 [#allocation5], 4
      %s37 = int_to_ptr.vmem [resolvable:$true] %s36
      %39 = dma.hbm_to_vmem [thread:$0]  %s3, 48, %s37, [#allocation6]
    $region17: #{multi_head_attention.1} parent=1 // pred_fallthru
      _
    // Predicated region
    $region18: #{multi_head_attention.1} parent=1 // pred_check
      _
    $region19: #{multi_head_attention.1} parent=1 // pred_check_branch
      %41 = sbr.rel (0) target = $region21
    $region20: #{multi_head_attention.1} parent=1 // pred_region
      _
    $region21: #{multi_head_attention.1} parent=1 // pred_fallthru
      _
    // Predicated region
    $region22: #{multi_head_attention.1} parent=1 // pred_check
      _
    $region23: #{multi_head_attention.1} parent=1 // pred_check_branch
      %43 = sbr.rel (0) target = $region25
    $region24: #{multi_head_attention.1} parent=1 // pred_region
      %s45 = ssub.s32 16, 16
      %46 = vsyncadd [#allocation6], %s45
      %s48 = sshll.u32 [#allocation7], 4
      %s49 = int_to_ptr.vmem [resolvable:$true] %s48
      %51 = dma.hbm_to_vmem [thread:$0]  %s5, 16, %s49, [#allocation6]
    $region25: #{multi_head_attention.1} parent=1 // pred_fallthru
      _
    // Predicated region
    $region26: #{multi_head_attention.1} parent=1 // pred_check
      _
    $region27: #{multi_head_attention.1} parent=1 // pred_check_branch
      %53 = sbr.rel (0) target = $region29
    $region28: #{multi_head_attention.1} parent=1 // pred_region
      %54 = dma.done [#allocation3], 3072
    $region29: #{multi_head_attention.1} parent=1 // pred_fallthru
      _
    // Predicated region
    $region30: #{multi_head_attention.1} parent=1 // pred_check
      _
    $region31: #{multi_head_attention.1} parent=1 // pred_check_branch
      %56 = sbr.rel (0) target = $region33
    $region32: #{multi_head_attention.1} parent=1 // pred_region
      %57 = dma.done [#allocation6], 48
    $region33: #{multi_head_attention.1} parent=1 // pred_fallthru
      _
    // Predicated region
    $region34: #{multi_head_attention.1} parent=1 // pred_check
      _
    $region35: #{multi_head_attention.1} parent=1 // pred_check_branch
      %59 = sbr.rel (0) target = $region37
    $region36: #{multi_head_attention.1} parent=1 // pred_region
      %60 = dma.done [#allocation6], 16
    $region37: #{multi_head_attention.1} parent=1 // pred_fallthru
      _
    %v62 = vld [vmem:[%s0] sm:$0xf]
    %v63 = vld [vmem:[%s0 + $0x4] sm:$0xf]
    %v64 = vld [vmem:[%s0 + $0x8] sm:$0xf]
    %v65 = vld [vmem:[%s0 + $0xc] sm:$0xf]
    %v66 = vld [vmem:[#allocation2] sm:$0xff]
    %v67 = vld [vmem:[#allocation2 + $0x8] sm:$0xf]
    %v68 = vld [vmem:[#allocation2 + $0xc] sm:$0xff]
    %v69 = vld [vmem:[#allocation2 + $0x14] sm:$0xf]
    %v70 = vld [vmem:[#allocation2 + $0x18] sm:$0xff]
    %v71 = vld [vmem:[#allocation2 + $0x20] sm:$0xf]
    %v72 = vld [vmem:[#allocation2 + $0x24] sm:$0xff]
    %v73 = vld [vmem:[#allocation2 + $0x2c] sm:$0xf]
    %v74 = vld [vmem:[#allocation2 + $0x30] sm:$0xff]
    %v75 = vld [vmem:[#allocation2 + $0x38] sm:$0xf]
    %v76 = vld [vmem:[#allocation2 + $0x3c] sm:$0xff]
    %v77 = vld [vmem:[#allocation2 + $0x44] sm:$0xf]
    %v78 = vld [vmem:[#allocation2 + $0x48] sm:$0xff]
    %v79 = vld [vmem:[#allocation2 + $0x50] sm:$0xf]
    %v80 = vld [vmem:[#allocation2 + $0x54] sm:$0xff]
    %v81 = vld [vmem:[#allocation2 + $0x5c] sm:$0xf]
    %v82 = vld [vmem:[#allocation2 + $0x60] sm:$0xff]
    %v83 = vld [vmem:[#allocation2 + $0x68] sm:$0xf]
    %v84 = vld [vmem:[#allocation2 + $0x6c] sm:$0xff]
    %v85 = vld [vmem:[#allocation2 + $0x74] sm:$0xf]
    %v86 = vld [vmem:[#allocation2 + $0x78] sm:$0xff]
    %v87 = vld [vmem:[#allocation2 + $0x80] sm:$0xf]
    %v88 = vld [vmem:[#allocation2 + $0x84] sm:$0xff]
    %v89 = vld [vmem:[#allocation2 + $0x8c] sm:$0xf]
    %v90 = vld [vmem:[#allocation2 + $0x90] sm:$0xff]
    %v91 = vld [vmem:[#allocation2 + $0x98] sm:$0xf]
    %v92 = vld [vmem:[#allocation2 + $0x9c] sm:$0xff]
    %v93 = vld [vmem:[#allocation2 + $0xa4] sm:$0xf]
    %v94 = vld [vmem:[#allocation2 + $0xa8] sm:$0xff]
    %v95 = vld [vmem:[#allocation2 + $0xb0] sm:$0xf]
    %v96 = vld [vmem:[#allocation2 + $0xb4] sm:$0xff]
    %v97 = vld [vmem:[#allocation2 + $0xbc] sm:$0xf]
    %v98 = vld [vmem:[#allocation5] sm:$0x7]
    %v100 = vlaneseq
    %v101 = vshrl.u32 %v100, 7
    %v102 = vsub.s32 0, %v101
    %v103 = vrot.slane %v98, %v102
    %v104 = vlaneseq
    %v105 = vshrl.u32 %v104, 7
    %v106 = vsub.s32 1, %v105
    %v107 = vrot.slane %v98, %v106
    %v108 = vlaneseq
    %v109 = vshrl.u32 %v108, 7
    %v110 = vsub.s32 2, %v109
    %v111 = vrot.slane %v98, %v110
    %v119 = vunpack.c.l.b16 %v62
    %v120 = vunpack.c.l.b16 %v63
    %v121 = vunpack.c.l.b16 %v64
    %v122 = vunpack.c.l.b16 %v65
    %v123 = vpack.c.b16 %v120, %v119
    %v124 = vpack.c.b16 %v122, %v121
    %v159 = vunpack.c.l.b16 %v66
    %v160 = vunpack.c.h.b16 %v66
    %v161 = vunpack.c.l.b16 %v67
    %v162 = vunpack.c.l.b16 %v68
    %v163 = vunpack.c.h.b16 %v68
    %v164 = vunpack.c.l.b16 %v69
    %v165 = vunpack.c.l.b16 %v70
    %v166 = vunpack.c.h.b16 %v70
    %v167 = vunpack.c.l.b16 %v71
    %v168 = vunpack.c.l.b16 %v72
    %v169 = vunpack.c.h.b16 %v72
    %v170 = vunpack.c.l.b16 %v73
    %v171 = vunpack.c.l.b16 %v74
    %v172 = vunpack.c.h.b16 %v74
    %v173 = vunpack.c.l.b16 %v75
    %v174 = vunpack.c.l.b16 %v76
    %v175 = vunpack.c.h.b16 %v76
    %v176 = vunpack.c.l.b16 %v77
    %v177 = vunpack.c.l.b16 %v78
    %v178 = vunpack.c.h.b16 %v78
    %v179 = vunpack.c.l.b16 %v79
    %v180 = vunpack.c.l.b16 %v80
    %v181 = vunpack.c.h.b16 %v80
    %v182 = vunpack.c.l.b16 %v81
    %v183 = vunpack.c.l.b16 %v82
    %v184 = vunpack.c.h.b16 %v82
    %v185 = vunpack.c.l.b16 %v83
    %v186 = vunpack.c.l.b16 %v84
    %v187 = vunpack.c.h.b16 %v84
    %v188 = vunpack.c.l.b16 %v85
    %v189 = vunpack.c.l.b16 %v86
    %v190 = vunpack.c.h.b16 %v86
    %v191 = vunpack.c.l.b16 %v87
    %v192 = vunpack.c.l.b16 %v88
    %v193 = vunpack.c.h.b16 %v88
    %v194 = vunpack.c.l.b16 %v89
    %v195 = vunpack.c.l.b16 %v90
    %v196 = vunpack.c.h.b16 %v90
    %v197 = vunpack.c.l.b16 %v91
    %v198 = vunpack.c.l.b16 %v92
    %v199 = vunpack.c.h.b16 %v92
    %v200 = vunpack.c.l.b16 %v93
    %v201 = vunpack.c.l.b16 %v94
    %v202 = vunpack.c.h.b16 %v94
    %v203 = vunpack.c.l.b16 %v95
    %v204 = vunpack.c.l.b16 %v96
    %v205 = vunpack.c.h.b16 %v96
    %v206 = vunpack.c.l.b16 %v97
    %v207 = vpack.c.b16 %v162, %v159
    %v208 = vpack.c.b16 %v163, %v160
    %v209 = vpack.c.b16 %v164, %v161
    %v210 = vpack.c.b16 %v168, %v165
    %v211 = vpack.c.b16 %v169, %v166
    %v212 = vpack.c.b16 %v170, %v167
    %v213 = vpack.c.b16 %v174, %v171
    %v214 = vpack.c.b16 %v175, %v172
    %v215 = vpack.c.b16 %v176, %v173
    %v216 = vpack.c.b16 %v180, %v177
    %v217 = vpack.c.b16 %v181, %v178
    %v218 = vpack.c.b16 %v182, %v179
    %v219 = vpack.c.b16 %v186, %v183
    %v220 = vpack.c.b16 %v187, %v184
    %v221 = vpack.c.b16 %v188, %v185
    %v222 = vpack.c.b16 %v192, %v189
    %v223 = vpack.c.b16 %v193, %v190
    %v224 = vpack.c.b16 %v194, %v191
    %v225 = vpack.c.b16 %v198, %v195
    %v226 = vpack.c.b16 %v199, %v196
    %v227 = vpack.c.b16 %v200, %v197
    %v228 = vpack.c.b16 %v204, %v201
    %v229 = vpack.c.b16 %v205, %v202
    %v230 = vpack.c.b16 %v206, %v203
    %255 = vmatprep.subr.bf16.mxu0 %v208
    %256 = vmatpush1.bf16.msra.mxu0 %v207
    %257 = vmatprep.subr.bf16.mxu0 %v211
    %258 = vmatpush1.bf16.msra.mxu0 %v210
    %259 = vmatprep.subr.bf16.mxu0 %v214
    %260 = vmatpush1.bf16.msra.mxu0 %v213
    %261 = vmatprep.subr.bf16.mxu0 %v217
    %262 = vmatpush1.bf16.msra.mxu0 %v216
    %263 = vmatprep.subr.bf16.mxu0 %v220
    %264 = vmatpush1.bf16.msra.mxu0 %v219
    %265 = vmatprep.subr.bf16.mxu0 %v223
    %266 = vmatpush1.bf16.msra.mxu0 %v222
    %267 = vmatprep.subr.bf16.mxu0 %v226
    %268 = vmatpush1.bf16.msra.mxu0 %v225
    %269 = vmatprep.subr.bf16.mxu0 %v229
    %270 = vmatpush1.bf16.msra.mxu0 %v228
    %271 = vmatprep.subr.bf16.mxu0 0
    %272 = vmatpush1.bf16.msra.mxu0 0
    %273 = vmatprep.subr.bf16.mxu0 0
    %274 = vmatpush1.bf16.msra.mxu0 0
    %275 = vmatprep.subr.bf16.mxu0 0
    %276 = vmatpush1.bf16.msra.mxu0 0
    %277 = vmatprep.subr.bf16.mxu0 0
    %278 = vmatpush1.bf16.msra.mxu0 0
    %279 = vmatprep.subr.bf16.mxu0 0
    %280 = vmatpush1.bf16.msra.mxu0 0
    %281 = vmatprep.subr.bf16.mxu0 0
    %282 = vmatpush1.bf16.msra.mxu0 0
    %283 = vmatprep.subr.bf16.mxu0 0
    %284 = vmatpush1.bf16.msra.mxu0 0
    %285 = vmatprep.subr.bf16.mxu0 0
    %286 = vmatpush1.bf16.msra.mxu0 0
    %287 = vmatprep.mubr.bf16.mxu0 0
    %288 = vmatmul.mubr.bf16.gmra.mrb[0].mxu0 %v123
    %v289 = vpop.f32.mrb[0].mxu0
    %v290 = vadd.f32 %v103, %v289
    %v291 = vpop.f32.mrb[0].mxu0
    %v292 = vadd.f32 %v107, %v291
    %v293 = vpop.f32.mrb[0].mxu0
    %v294 = vadd.f32 %v103, %v293
    %v295 = vpop.f32.mrb[0].mxu0
    %v296 = vadd.f32 %v107, %v295
    %297 = vmatprep.mubr.bf16.mxu0 0
    %298 = vmatmul.mubr.bf16.gmra.mrb[0].mxu0 %v124
    %v299 = vpop.f32.mrb[0].mxu0
    %v300 = vadd.f32 %v103, %v299
    %v301 = vpop.f32.mrb[0].mxu0
    %v302 = vadd.f32 %v107, %v301
    %v303 = vpop.f32.mrb[0].mxu0
    %v304 = vadd.f32 %v103, %v303
    %v305 = vpop.f32.mrb[0].mxu0
    %v306 = vadd.f32 %v107, %v305
    %307 = vdwg.mxu0
    %308 = vmatprep.subr.bf16.mxu0 0
    %309 = vmatpush1.bf16.msra.mxu0 %v209
    %310 = vmatprep.subr.bf16.mxu0 0
    %311 = vmatpush1.bf16.msra.mxu0 %v212
    %312 = vmatprep.subr.bf16.mxu0 0
    %313 = vmatpush1.bf16.msra.mxu0 %v215
    %314 = vmatprep.subr.bf16.mxu0 0
    %315 = vmatpush1.bf16.msra.mxu0 %v218
    %316 = vmatprep.subr.bf16.mxu0 0
    %317 = vmatpush1.bf16.msra.mxu0 %v221
    %318 = vmatprep.subr.bf16.mxu0 0
    %319 = vmatpush1.bf16.msra.mxu0 %v224
    %320 = vmatprep.subr.bf16.mxu0 0
    %321 = vmatpush1.bf16.msra.mxu0 %v227
    %322 = vmatprep.subr.bf16.mxu0 0
    %323 = vmatpush1.bf16.msra.mxu0 %v230
    %324 = vmatprep.subr.bf16.mxu0 0
    %325 = vmatpush1.bf16.msra.mxu0 0
    %326 = vmatprep.subr.bf16.mxu0 0
    %327 = vmatpush1.bf16.msra.mxu0 0
    %328 = vmatprep.subr.bf16.mxu0 0
    %329 = vmatpush1.bf16.msra.mxu0 0
    %330 = vmatprep.subr.bf16.mxu0 0
    %331 = vmatpush1.bf16.msra.mxu0 0
    %332 = vmatprep.subr.bf16.mxu0 0
    %333 = vmatpush1.bf16.msra.mxu0 0
    %334 = vmatprep.subr.bf16.mxu0 0
    %335 = vmatpush1.bf16.msra.mxu0 0
    %336 = vmatprep.subr.bf16.mxu0 0
    %337 = vmatpush1.bf16.msra.mxu0 0
    %338 = vmatprep.subr.bf16.mxu0 0
    %339 = vmatpush1.bf16.msra.mxu0 0
    %340 = vmatprep.mubr.bf16.mxu0 0
    %341 = vmatmul.mubr.bf16.gmra.mrb[0].mxu0 %v123
    %v342 = vpop.f32.mrb[0].mxu0
    %v343 = vadd.f32 %v111, %v342
    %v344 = vpop.f32.mrb[0].mxu0
    %v345 = vpop.f32.mrb[0].mxu0
    %v346 = vadd.f32 %v111, %v345
    %v347 = vpop.f32.mrb[0].mxu0
    %348 = vmatprep.mubr.bf16.mxu0 0
    %349 = vmatmul.mubr.bf16.gmra.mrb[0].mxu0 %v124
    %v350 = vpop.f32.mrb[0].mxu0
    %v351 = vadd.f32 %v111, %v350
    %v352 = vpop.f32.mrb[0].mxu0
    %v353 = vpop.f32.mrb[0].mxu0
    %v354 = vadd.f32 %v111, %v353
    %v355 = vpop.f32.mrb[0].mxu0
    %356 = vdwg.mxu0
    %v357 = vpack.c.bf16 %v294, %v290
    %v358 = vpack.c.bf16 %v296, %v292
    %v359 = vpack.c.bf16 %v346, %v343
    %v360 = vpack.c.bf16 %v304, %v300
    %v361 = vpack.c.bf16 %v306, %v302
    %v362 = vpack.c.bf16 %v354, %v351
    %v363 = vld [vmem:[%s4] sm:$0xf]
    %v364 = vld [vmem:[%s4 + $0x4] sm:$0xf]
    %v365 = vld [vmem:[%s4 + $0x8] sm:$0xf]
    %v366 = vld [vmem:[%s4 + $0xc] sm:$0xf]
    %v367 = vld [vmem:[%s4 + $0x10] sm:$0xf]
    %v368 = vld [vmem:[%s4 + $0x14] sm:$0xf]
    %v369 = vld [vmem:[%s4 + $0x18] sm:$0xf]
    %v370 = vld [vmem:[%s4 + $0x1c] sm:$0xf]
    %v371 = vld [vmem:[%s4 + $0x20] sm:$0xf]
    %v372 = vld [vmem:[%s4 + $0x24] sm:$0xf]
    %v373 = vld [vmem:[%s4 + $0x28] sm:$0xf]
    %v374 = vld [vmem:[%s4 + $0x2c] sm:$0xf]
    %v375 = vld [vmem:[%s4 + $0x30] sm:$0xf]
    %v376 = vld [vmem:[%s4 + $0x34] sm:$0xf]
    %v377 = vld [vmem:[%s4 + $0x38] sm:$0xf]
    %v378 = vld [vmem:[%s4 + $0x3c] sm:$0xf]
    %v379 = vld [vmem:[#allocation7] sm:$0x1]
    %v380 = vld [vmem:[%s1] sm:$0x1]
    %v382 = vlaneseq
    %v383 = vshrl.u32 %v382, 7
    %v384 = vsub.s32 0, %v383
    %v385 = vrot.slane %v380, %v384
    %v387 = vsub.f32 1.0, %v385
    %v388 = vmul.f32 %v387, -1e+15
    %vm389 = vcmask 130048
    %v391 = vsel %vm389, %v357, 0
    %v394 = vsel %vm389, %v358, 0
    %396 = vmatprep.subr.bf16.mxu0 0
    %397 = vmatpush1.bf16.xpose.msra.mxu0 %v394
    %398 = vmatprep.subr.bf16.mxu0 0
    %399 = vmatpush1.bf16.xpose.msra.mxu0 0
    %400 = vmatprep.subr.bf16.mxu0 0
    %401 = vmatpush1.bf16.xpose.msra.mxu0 0
    %402 = vmatprep.subr.bf16.mxu0 0
    %403 = vmatpush1.bf16.xpose.msra.mxu0 0
    %404 = vmatprep.subr.bf16.mxu0 0
    %405 = vmatpush1.bf16.xpose.msra.mxu0 0
    %406 = vmatprep.subr.bf16.mxu0 0
    %407 = vmatpush1.bf16.xpose.msra.mxu0 0
    %408 = vmatprep.subr.bf16.mxu0 0
    %409 = vmatpush1.bf16.xpose.msra.mxu0 0
    %410 = vmatprep.subr.bf16.mxu0 0
    %411 = vmatpush1.bf16.xpose.msra.mxu0 0
    %412 = vmatprep.subr.bf16.mxu0 0
    %413 = vmatpush1.bf16.xpose.msra.mxu0 0
    %414 = vmatprep.subr.bf16.mxu0 0
    %415 = vmatpush1.bf16.xpose.msra.mxu0 0
    %416 = vmatprep.subr.bf16.mxu0 0
    %417 = vmatpush1.bf16.xpose.msra.mxu0 0
    %418 = vmatprep.subr.bf16.mxu0 0
    %419 = vmatpush1.bf16.xpose.msra.mxu0 0
    %420 = vmatprep.subr.bf16.mxu0 0
    %421 = vmatpush1.bf16.xpose.msra.mxu0 0
    %422 = vmatprep.subr.bf16.mxu0 0
    %423 = vmatpush1.bf16.xpose.msra.mxu0 0
    %424 = vmatprep.subr.bf16.mxu0 0
    %425 = vmatpush1.bf16.xpose.msra.mxu0 0
    %426 = vmatprep.subr.bf16.mxu0 0
    %427 = vmatpush1.bf16.xpose.msra.mxu0 0
    %428 = vmatprep.mubr.bf16.mxu0 0
    %429 = vmatmul.mubr.bf16.gmra.mrb[0].mxu0 %v391
    %v430 = vpop.f32.mrb[0].mxu0
    %v431 = vadd.f32 0.0, %v430
    %v432 = vpop.f32.mrb[0].mxu0
    %v433 = vpop.f32.mrb[0].mxu0
    %v434 = vadd.f32 0.0, %v433
    %v435 = vpop.f32.mrb[0].mxu0
    %436 = vdwg.mxu0
    %v437 = vmul.f32 %v431, %v385
    %v438 = vmul.f32 %v434, %v385
    %v439 = vadd.f32 %v437, %v388
    %v440 = vadd.f32 %v438, %v388
    %v441 = vsel %vm389, %v439, -inf
    %442 = vmax.xlane.f32.xlu0 %v441
    %v443 = vpop.xlane.xlu0 %442
    %v444 = vsel %vm389, %v440, -inf
    %445 = vmax.xlane.f32.xlu0 %v444
    %v446 = vpop.xlane.xlu0 %445
    %v447 = vsub.f32 %v439, %v443
    %v448 = vsub.f32 %v440, %v446
    %v449 = vmul.f32 %v447, 1.442695
    %v450 = vpow.pop %v449
    %v451 = vmul.f32 %v448, 1.442695
    %v452 = vpow.pop %v451
    %v453 = vsel %vm389, %v450, 0.0
    %454 = vadd.xlane.f32.xlu0 %v453
    %v455 = vpop.xlane.xlu0 %454
    %v456 = vsel %vm389, %v452, 0.0
    %457 = vadd.xlane.f32.xlu0 %v456
    %v458 = vpop.xlane.xlu0 %457
    %v459 = vrcp.pop %v455
    %v460 = vmul.f32 %v450, %v459
    %v461 = vrcp.pop %v458
    %v462 = vmul.f32 %v452, %v461
    %v463 = vpack.c.bf16 %v462, %v460
    %v465 = vsel %vm389, %v463, 0
    %467 = vmatprep.subr.bf16.mxu0 0
    %468 = vmatpush1.bf16.msra.mxu0 %v359
    %469 = vmatprep.subr.bf16.mxu0 0
    %470 = vmatpush1.bf16.msra.mxu0 0
    %471 = vmatprep.subr.bf16.mxu0 0
    %472 = vmatpush1.bf16.msra.mxu0 0
    %473 = vmatprep.subr.bf16.mxu0 0
    %474 = vmatpush1.bf16.msra.mxu0 0
    %475 = vmatprep.subr.bf16.mxu0 0
    %476 = vmatpush1.bf16.msra.mxu0 0
    %477 = vmatprep.subr.bf16.mxu0 0
    %478 = vmatpush1.bf16.msra.mxu0 0
    %479 = vmatprep.subr.bf16.mxu0 0
    %480 = vmatpush1.bf16.msra.mxu0 0
    %481 = vmatprep.subr.bf16.mxu0 0
    %482 = vmatpush1.bf16.msra.mxu0 0
    %483 = vmatprep.subr.bf16.mxu0 0
    %484 = vmatpush1.bf16.msra.mxu0 0
    %485 = vmatprep.subr.bf16.mxu0 0
    %486 = vmatpush1.bf16.msra.mxu0 0
    %487 = vmatprep.subr.bf16.mxu0 0
    %488 = vmatpush1.bf16.msra.mxu0 0
    %489 = vmatprep.subr.bf16.mxu0 0
    %490 = vmatpush1.bf16.msra.mxu0 0
    %491 = vmatprep.subr.bf16.mxu0 0
    %492 = vmatpush1.bf16.msra.mxu0 0
    %493 = vmatprep.subr.bf16.mxu0 0
    %494 = vmatpush1.bf16.msra.mxu0 0
    %495 = vmatprep.subr.bf16.mxu0 0
    %496 = vmatpush1.bf16.msra.mxu0 0
    %497 = vmatprep.subr.bf16.mxu0 0
    %498 = vmatpush1.bf16.msra.mxu0 0
    %499 = vmatprep.mubr.bf16.mxu0 0
    %500 = vmatmul.mubr.bf16.gmra.mrb[0].mxu0 %v465
    %v501 = vpop.f32.mrb[0].mxu0
    %v502 = vadd.f32 0.0, %v501
    %v503 = vpop.f32.mrb[0].mxu0
    %v504 = vpop.f32.mrb[0].mxu0
    %v505 = vadd.f32 0.0, %v504
    %v506 = vpop.f32.mrb[0].mxu0
    %507 = vdwg.mxu0
    %v508 = vpack.c.bf16 %v505, %v502
    %510 = vrot.lane.b32.xlu0 %v357, 112
    %v511 = vpop.permute.xlu0 %510
    %513 = vrot.lane.b32.xlu0 %v358, 112
    %v514 = vpop.permute.xlu0 %513
    %v516 = vsel %vm389, %v511, 0
    %v519 = vsel %vm389, %v514, 0
    %521 = vmatprep.subr.bf16.mxu0 0
    %522 = vmatpush1.bf16.xpose.msra.mxu0 %v519
    %523 = vmatprep.subr.bf16.mxu0 0
    %524 = vmatpush1.bf16.xpose.msra.mxu0 0
    %525 = vmatprep.subr.bf16.mxu0 0
    %526 = vmatpush1.bf16.xpose.msra.mxu0 0
    %527 = vmatprep.subr.bf16.mxu0 0
    %528 = vmatpush1.bf16.xpose.msra.mxu0 0
    %529 = vmatprep.subr.bf16.mxu0 0
    %530 = vmatpush1.bf16.xpose.msra.mxu0 0
    %531 = vmatprep.subr.bf16.mxu0 0
    %532 = vmatpush1.bf16.xpose.msra.mxu0 0
    %533 = vmatprep.subr.bf16.mxu0 0
    %534 = vmatpush1.bf16.xpose.msra.mxu0 0
    %535 = vmatprep.subr.bf16.mxu0 0
    %536 = vmatpush1.bf16.xpose.msra.mxu0 0
    %537 = vmatprep.subr.bf16.mxu0 0
    %538 = vmatpush1.bf16.xpose.msra.mxu0 0
    %539 = vmatprep.subr.bf16.mxu0 0
    %540 = vmatpush1.bf16.xpose.msra.mxu0 0
    %541 = vmatprep.subr.bf16.mxu0 0
    %542 = vmatpush1.bf16.xpose.msra.mxu0 0
    %543 = vmatprep.subr.bf16.mxu0 0
    %544 = vmatpush1.bf16.xpose.msra.mxu0 0
    %545 = vmatprep.subr.bf16.mxu0 0
    %546 = vmatpush1.bf16.xpose.msra.mxu0 0
    %547 = vmatprep.subr.bf16.mxu0 0
    %548 = vmatpush1.bf16.xpose.msra.mxu0 0
    %549 = vmatprep.subr.bf16.mxu0 0
    %550 = vmatpush1.bf16.xpose.msra.mxu0 0
    %551 = vmatprep.subr.bf16.mxu0 0
    %552 = vmatpush1.bf16.xpose.msra.mxu0 0
    %553 = vmatprep.mubr.bf16.mxu0 0
    %554 = vmatmul.mubr.bf16.gmra.mrb[0].mxu0 %v516
    %v555 = vpop.f32.mrb[0].mxu0
    %v556 = vadd.f32 0.0, %v555
    %v557 = vpop.f32.mrb[0].mxu0
    %v558 = vpop.f32.mrb[0].mxu0
    %v559 = vadd.f32 0.0, %v558
    %v560 = vpop.f32.mrb[0].mxu0
    %561 = vdwg.mxu0
    %v562 = vmul.f32 %v556, %v385
    %v563 = vmul.f32 %v559, %v385
    %v564 = vadd.f32 %v562, %v388
    %v565 = vadd.f32 %v563, %v388
    %v566 = vsel %vm389, %v564, -inf
    %567 = vmax.xlane.f32.xlu0 %v566
    %v568 = vpop.xlane.xlu0 %567
    %v569 = vsel %vm389, %v565, -inf
    %570 = vmax.xlane.f32.xlu0 %v569
    %v571 = vpop.xlane.xlu0 %570
    %v572 = vsub.f32 %v564, %v568
    %v573 = vsub.f32 %v565, %v571
    %v574 = vmul.f32 %v572, 1.442695
    %v575 = vpow.pop %v574
    %v576 = vmul.f32 %v573, 1.442695
    %v577 = vpow.pop %v576
    %v578 = vsel %vm389, %v575, 0.0
    %579 = vadd.xlane.f32.xlu0 %v578
    %v580 = vpop.xlane.xlu0 %579
    %v581 = vsel %vm389, %v577, 0.0
    %582 = vadd.xlane.f32.xlu0 %v581
    %v583 = vpop.xlane.xlu0 %582
    %v584 = vrcp.pop %v580
    %v585 = vmul.f32 %v575, %v584
    %v586 = vrcp.pop %v583
    %v587 = vmul.f32 %v577, %v586
    %v588 = vpack.c.bf16 %v587, %v585
    %590 = vrot.lane.b32.xlu0 %v359, 112
    %v591 = vpop.permute.xlu0 %590
    %v594 = vsel %vm389, %v588, 0
    %596 = vmatprep.subr.bf16.mxu0 0
    %597 = vmatpush1.bf16.msra.mxu0 %v591
    %598 = vmatprep.subr.bf16.mxu0 0
    %599 = vmatpush1.bf16.msra.mxu0 0
    %600 = vmatprep.subr.bf16.mxu0 0
    %601 = vmatpush1.bf16.msra.mxu0 0
    %602 = vmatprep.subr.bf16.mxu0 0
    %603 = vmatpush1.bf16.msra.mxu0 0
    %604 = vmatprep.subr.bf16.mxu0 0
    %605 = vmatpush1.bf16.msra.mxu0 0
    %606 = vmatprep.subr.bf16.mxu0 0
    %607 = vmatpush1.bf16.msra.mxu0 0
    %608 = vmatprep.subr.bf16.mxu0 0
    %609 = vmatpush1.bf16.msra.mxu0 0
    %610 = vmatprep.subr.bf16.mxu0 0
    %611 = vmatpush1.bf16.msra.mxu0 0
    %612 = vmatprep.subr.bf16.mxu0 0
    %613 = vmatpush1.bf16.msra.mxu0 0
    %614 = vmatprep.subr.bf16.mxu0 0
    %615 = vmatpush1.bf16.msra.mxu0 0
    %616 = vmatprep.subr.bf16.mxu0 0
    %617 = vmatpush1.bf16.msra.mxu0 0
    %618 = vmatprep.subr.bf16.mxu0 0
    %619 = vmatpush1.bf16.msra.mxu0 0
    %620 = vmatprep.subr.bf16.mxu0 0
    %621 = vmatpush1.bf16.msra.mxu0 0
    %622 = vmatprep.subr.bf16.mxu0 0
    %623 = vmatpush1.bf16.msra.mxu0 0
    %624 = vmatprep.subr.bf16.mxu0 0
    %625 = vmatpush1.bf16.msra.mxu0 0
    %626 = vmatprep.subr.bf16.mxu0 0
    %627 = vmatpush1.bf16.msra.mxu0 0
    %628 = vmatprep.mubr.bf16.mxu0 0
    %629 = vmatmul.mubr.bf16.gmra.mrb[0].mxu0 %v594
    %v630 = vpop.f32.mrb[0].mxu0
    %v631 = vadd.f32 0.0, %v630
    %v632 = vpop.f32.mrb[0].mxu0
    %v633 = vpop.f32.mrb[0].mxu0
    %v634 = vadd.f32 0.0, %v633
    %v635 = vpop.f32.mrb[0].mxu0
    %636 = vdwg.mxu0
    %v637 = vpack.c.bf16 %v634, %v631
    %v640 = vunpack.c.l.b16 %v365
    %v641 = vunpack.c.l.b16 %v366
    %v642 = vpack.c.b16 %v641, %v640
    %v645 = vsel %vm389, %v637, 0
    %647 = vmatprep.subr.bf16.mxu0 0
    %648 = vmatpush1.bf16.msra.mxu0 %v642
    %649 = vmatprep.subr.bf16.mxu0 0
    %650 = vmatpush1.bf16.msra.mxu0 0
    %651 = vmatprep.subr.bf16.mxu0 0
    %652 = vmatpush1.bf16.msra.mxu0 0
    %653 = vmatprep.subr.bf16.mxu0 0
    %654 = vmatpush1.bf16.msra.mxu0 0
    %655 = vmatprep.subr.bf16.mxu0 0
    %656 = vmatpush1.bf16.msra.mxu0 0
    %657 = vmatprep.subr.bf16.mxu0 0
    %658 = vmatpush1.bf16.msra.mxu0 0
    %659 = vmatprep.subr.bf16.mxu0 0
    %660 = vmatpush1.bf16.msra.mxu0 0
    %661 = vmatprep.subr.bf16.mxu0 0
    %662 = vmatpush1.bf16.msra.mxu0 0
    %663 = vmatprep.subr.bf16.mxu0 0
    %664 = vmatpush1.bf16.msra.mxu0 0
    %665 = vmatprep.subr.bf16.mxu0 0
    %666 = vmatpush1.bf16.msra.mxu0 0
    %667 = vmatprep.subr.bf16.mxu0 0
    %668 = vmatpush1.bf16.msra.mxu0 0
    %669 = vmatprep.subr.bf16.mxu0 0
    %670 = vmatpush1.bf16.msra.mxu0 0
    %671 = vmatprep.subr.bf16.mxu0 0
    %672 = vmatpush1.bf16.msra.mxu0 0
    %673 = vmatprep.subr.bf16.mxu0 0
    %674 = vmatpush1.bf16.msra.mxu0 0
    %675 = vmatprep.subr.bf16.mxu0 0
    %676 = vmatpush1.bf16.msra.mxu0 0
    %677 = vmatprep.subr.bf16.mxu0 0
    %678 = vmatpush1.bf16.msra.mxu0 0
    %679 = vmatprep.mubr.bf16.mxu0 0
    %680 = vmatmul.mubr.bf16.gmra.mrb[0].mxu0 %v645
    %v681 = vpop.f32.mrb[0].mxu0
    %v682 = vadd.f32 0.0, %v681
    %v683 = vpop.f32.mrb[0].mxu0
    %v684 = vpop.f32.mrb[0].mxu0
    %v685 = vadd.f32 0.0, %v684
    %v686 = vpop.f32.mrb[0].mxu0
    %687 = vdwg.mxu0
    %v690 = vunpack.c.l.b16 %v363
    %v691 = vunpack.c.l.b16 %v364
    %v692 = vpack.c.b16 %v691, %v690
    %v695 = vsel %vm389, %v508, 0
    %697 = vmatprep.subr.bf16.mxu0 0
    %698 = vmatpush1.bf16.msra.mxu0 %v692
    %699 = vmatprep.subr.bf16.mxu0 0
    %700 = vmatpush1.bf16.msra.mxu0 0
    %701 = vmatprep.subr.bf16.mxu0 0
    %702 = vmatpush1.bf16.msra.mxu0 0
    %703 = vmatprep.subr.bf16.mxu0 0
    %704 = vmatpush1.bf16.msra.mxu0 0
    %705 = vmatprep.subr.bf16.mxu0 0
    %706 = vmatpush1.bf16.msra.mxu0 0
    %707 = vmatprep.subr.bf16.mxu0 0
    %708 = vmatpush1.bf16.msra.mxu0 0
    %709 = vmatprep.subr.bf16.mxu0 0
    %710 = vmatpush1.bf16.msra.mxu0 0
    %711 = vmatprep.subr.bf16.mxu0 0
    %712 = vmatpush1.bf16.msra.mxu0 0
    %713 = vmatprep.subr.bf16.mxu0 0
    %714 = vmatpush1.bf16.msra.mxu0 0
    %715 = vmatprep.subr.bf16.mxu0 0
    %716 = vmatpush1.bf16.msra.mxu0 0
    %717 = vmatprep.subr.bf16.mxu0 0
    %718 = vmatpush1.bf16.msra.mxu0 0
    %719 = vmatprep.subr.bf16.mxu0 0
    %720 = vmatpush1.bf16.msra.mxu0 0
    %721 = vmatprep.subr.bf16.mxu0 0
    %722 = vmatpush1.bf16.msra.mxu0 0
    %723 = vmatprep.subr.bf16.mxu0 0
    %724 = vmatpush1.bf16.msra.mxu0 0
    %725 = vmatprep.subr.bf16.mxu0 0
    %726 = vmatpush1.bf16.msra.mxu0 0
    %727 = vmatprep.subr.bf16.mxu0 0
    %728 = vmatpush1.bf16.msra.mxu0 0
    %729 = vmatprep.mubr.bf16.mxu0 0
    %730 = vmatmul.mubr.bf16.gmra.mrb[0].mxu0 %v695
    %v731 = vpop.f32.mrb[0].mxu0
    %v732 = vadd.f32 %v682, %v731
    %v733 = vpop.f32.mrb[0].mxu0
    %v734 = vpop.f32.mrb[0].mxu0
    %v735 = vadd.f32 %v685, %v734
    %v736 = vpop.f32.mrb[0].mxu0
    %737 = vdwg.mxu0
    %738 = vrot.lane.b32.xlu0 %v357, 96
    %v739 = vpop.permute.xlu0 %738
    %740 = vrot.lane.b32.xlu0 %v358, 96
    %v741 = vpop.permute.xlu0 %740
    %v743 = vsel %vm389, %v739, 0
    %v746 = vsel %vm389, %v741, 0
    %748 = vmatprep.subr.bf16.mxu0 0
    %749 = vmatpush1.bf16.xpose.msra.mxu0 %v746
    %750 = vmatprep.subr.bf16.mxu0 0
    %751 = vmatpush1.bf16.xpose.msra.mxu0 0
    %752 = vmatprep.subr.bf16.mxu0 0
    %753 = vmatpush1.bf16.xpose.msra.mxu0 0
    %754 = vmatprep.subr.bf16.mxu0 0
    %755 = vmatpush1.bf16.xpose.msra.mxu0 0
    %756 = vmatprep.subr.bf16.mxu0 0
    %757 = vmatpush1.bf16.xpose.msra.mxu0 0
    %758 = vmatprep.subr.bf16.mxu0 0
    %759 = vmatpush1.bf16.xpose.msra.mxu0 0
    %760 = vmatprep.subr.bf16.mxu0 0
    %761 = vmatpush1.bf16.xpose.msra.mxu0 0
    %762 = vmatprep.subr.bf16.mxu0 0
    %763 = vmatpush1.bf16.xpose.msra.mxu0 0
    %764 = vmatprep.subr.bf16.mxu0 0
    %765 = vmatpush1.bf16.xpose.msra.mxu0 0
    %766 = vmatprep.subr.bf16.mxu0 0
    %767 = vmatpush1.bf16.xpose.msra.mxu0 0
    %768 = vmatprep.subr.bf16.mxu0 0
    %769 = vmatpush1.bf16.xpose.msra.mxu0 0
    %770 = vmatprep.subr.bf16.mxu0 0
    %771 = vmatpush1.bf16.xpose.msra.mxu0 0
    %772 = vmatprep.subr.bf16.mxu0 0
    %773 = vmatpush1.bf16.xpose.msra.mxu0 0
    %774 = vmatprep.subr.bf16.mxu0 0
    %775 = vmatpush1.bf16.xpose.msra.mxu0 0
    %776 = vmatprep.subr.bf16.mxu0 0
    %777 = vmatpush1.bf16.xpose.msra.mxu0 0
    %778 = vmatprep.subr.bf16.mxu0 0
    %779 = vmatpush1.bf16.xpose.msra.mxu0 0
    %780 = vmatprep.mubr.bf16.mxu0 0
    %781 = vmatmul.mubr.bf16.gmra.mrb[0].mxu0 %v743
    %v782 = vpop.f32.mrb[0].mxu0
    %v783 = vadd.f32 0.0, %v782
    %v784 = vpop.f32.mrb[0].mxu0
    %v785 = vpop.f32.mrb[0].mxu0
    %v786 = vadd.f32 0.0, %v785
    %v787 = vpop.f32.mrb[0].mxu0
    %788 = vdwg.mxu0
    %v789 = vmul.f32 %v783, %v385
    %v790 = vmul.f32 %v786, %v385
    %v791 = vadd.f32 %v789, %v388
    %v792 = vadd.f32 %v790, %v388
    %v793 = vsel %vm389, %v791, -inf
    %794 = vmax.xlane.f32.xlu0 %v793
    %v795 = vpop.xlane.xlu0 %794
    %v796 = vsel %vm389, %v792, -inf
    %797 = vmax.xlane.f32.xlu0 %v796
    %v798 = vpop.xlane.xlu0 %797
    %v799 = vsub.f32 %v791, %v795
    %v800 = vsub.f32 %v792, %v798
    %v801 = vmul.f32 %v799, 1.442695
    %v802 = vpow.pop %v801
    %v803 = vmul.f32 %v800, 1.442695
    %v804 = vpow.pop %v803
    %v805 = vsel %vm389, %v802, 0.0
    %806 = vadd.xlane.f32.xlu0 %v805
    %v807 = vpop.xlane.xlu0 %806
    %v808 = vsel %vm389, %v804, 0.0
    %809 = vadd.xlane.f32.xlu0 %v808
    %v810 = vpop.xlane.xlu0 %809
    %v811 = vrcp.pop %v807
    %v812 = vmul.f32 %v802, %v811
    %v813 = vrcp.pop %v810
    %v814 = vmul.f32 %v804, %v813
    %v815 = vpack.c.bf16 %v814, %v812
    %816 = vrot.lane.b32.xlu0 %v359, 96
    %v817 = vpop.permute.xlu0 %816
    %v820 = vsel %vm389, %v815, 0
    %822 = vmatprep.subr.bf16.mxu0 0
    %823 = vmatpush1.bf16.msra.mxu0 %v817
    %824 = vmatprep.subr.bf16.mxu0 0
    %825 = vmatpush1.bf16.msra.mxu0 0
    %826 = vmatprep.subr.bf16.mxu0 0
    %827 = vmatpush1.bf16.msra.mxu0 0
    %828 = vmatprep.subr.bf16.mxu0 0
    %829 = vmatpush1.bf16.msra.mxu0 0
    %830 = vmatprep.subr.bf16.mxu0 0
    %831 = vmatpush1.bf16.msra.mxu0 0
    %832 = vmatprep.subr.bf16.mxu0 0
    %833 = vmatpush1.bf16.msra.mxu0 0
    %834 = vmatprep.subr.bf16.mxu0 0
    %835 = vmatpush1.bf16.msra.mxu0 0
    %836 = vmatprep.subr.bf16.mxu0 0
    %837 = vmatpush1.bf16.msra.mxu0 0
    %838 = vmatprep.subr.bf16.mxu0 0
    %839 = vmatpush1.bf16.msra.mxu0 0
    %840 = vmatprep.subr.bf16.mxu0 0
    %841 = vmatpush1.bf16.msra.mxu0 0
    %842 = vmatprep.subr.bf16.mxu0 0
    %843 = vmatpush1.bf16.msra.mxu0 0
    %844 = vmatprep.subr.bf16.mxu0 0
    %845 = vmatpush1.bf16.msra.mxu0 0
    %846 = vmatprep.subr.bf16.mxu0 0
    %847 = vmatpush1.bf16.msra.mxu0 0
    %848 = vmatprep.subr.bf16.mxu0 0
    %849 = vmatpush1.bf16.msra.mxu0 0
    %850 = vmatprep.subr.bf16.mxu0 0
    %851 = vmatpush1.bf16.msra.mxu0 0
    %852 = vmatprep.subr.bf16.mxu0 0
    %853 = vmatpush1.bf16.msra.mxu0 0
    %854 = vmatprep.mubr.bf16.mxu0 0
    %855 = vmatmul.mubr.bf16.gmra.mrb[0].mxu0 %v820
    %v856 = vpop.f32.mrb[0].mxu0
    %v857 = vadd.f32 0.0, %v856
    %v858 = vpop.f32.mrb[0].mxu0
    %v859 = vpop.f32.mrb[0].mxu0
    %v860 = vadd.f32 0.0, %v859
    %v861 = vpop.f32.mrb[0].mxu0
    %862 = vdwg.mxu0
    %v863 = vpack.c.bf16 %v860, %v857
    %v866 = vunpack.c.l.b16 %v367
    %v867 = vunpack.c.l.b16 %v368
    %v868 = vpack.c.b16 %v867, %v866
    %v871 = vsel %vm389, %v863, 0
    %873 = vmatprep.subr.bf16.mxu0 0
    %874 = vmatpush1.bf16.msra.mxu0 %v868
    %875 = vmatprep.subr.bf16.mxu0 0
    %876 = vmatpush1.bf16.msra.mxu0 0
    %877 = vmatprep.subr.bf16.mxu0 0
    %878 = vmatpush1.bf16.msra.mxu0 0
    %879 = vmatprep.subr.bf16.mxu0 0
    %880 = vmatpush1.bf16.msra.mxu0 0
    %881 = vmatprep.subr.bf16.mxu0 0
    %882 = vmatpush1.bf16.msra.mxu0 0
    %883 = vmatprep.subr.bf16.mxu0 0
    %884 = vmatpush1.bf16.msra.mxu0 0
    %885 = vmatprep.subr.bf16.mxu0 0
    %886 = vmatpush1.bf16.msra.mxu0 0
    %887 = vmatprep.subr.bf16.mxu0 0
    %888 = vmatpush1.bf16.msra.mxu0 0
    %889 = vmatprep.subr.bf16.mxu0 0
    %890 = vmatpush1.bf16.msra.mxu0 0
    %891 = vmatprep.subr.bf16.mxu0 0
    %892 = vmatpush1.bf16.msra.mxu0 0
    %893 = vmatprep.subr.bf16.mxu0 0
    %894 = vmatpush1.bf16.msra.mxu0 0
    %895 = vmatprep.subr.bf16.mxu0 0
    %896 = vmatpush1.bf16.msra.mxu0 0
    %897 = vmatprep.subr.bf16.mxu0 0
    %898 = vmatpush1.bf16.msra.mxu0 0
    %899 = vmatprep.subr.bf16.mxu0 0
    %900 = vmatpush1.bf16.msra.mxu0 0
    %901 = vmatprep.subr.bf16.mxu0 0
    %902 = vmatpush1.bf16.msra.mxu0 0
    %903 = vmatprep.subr.bf16.mxu0 0
    %904 = vmatpush1.bf16.msra.mxu0 0
    %905 = vmatprep.mubr.bf16.mxu0 0
    %906 = vmatmul.mubr.bf16.gmra.mrb[0].mxu0 %v871
    %v907 = vpop.f32.mrb[0].mxu0
    %v908 = vadd.f32 0.0, %v907
    %v909 = vpop.f32.mrb[0].mxu0
    %v910 = vpop.f32.mrb[0].mxu0
    %v911 = vadd.f32 0.0, %v910
    %v912 = vpop.f32.mrb[0].mxu0
    %913 = vdwg.mxu0
    %v914 = vadd.f32 %v732, %v908
    %v915 = vadd.f32 %v735, %v911
    %916 = vrot.lane.b32.xlu0 %v357, 80
    %v917 = vpop.permute.xlu0 %916
    %918 = vrot.lane.b32.xlu0 %v358, 80
    %v919 = vpop.permute.xlu0 %918
    %v921 = vsel %vm389, %v917, 0
    %v924 = vsel %vm389, %v919, 0
    %926 = vmatprep.subr.bf16.mxu0 0
    %927 = vmatpush1.bf16.xpose.msra.mxu0 %v924
    %928 = vmatprep.subr.bf16.mxu0 0
    %929 = vmatpush1.bf16.xpose.msra.mxu0 0
    %930 = vmatprep.subr.bf16.mxu0 0
    %931 = vmatpush1.bf16.xpose.msra.mxu0 0
    %932 = vmatprep.subr.bf16.mxu0 0
    %933 = vmatpush1.bf16.xpose.msra.mxu0 0
    %934 = vmatprep.subr.bf16.mxu0 0
    %935 = vmatpush1.bf16.xpose.msra.mxu0 0
    %936 = vmatprep.subr.bf16.mxu0 0
    %937 = vmatpush1.bf16.xpose.msra.mxu0 0
    %938 = vmatprep.subr.bf16.mxu0 0
    %939 = vmatpush1.bf16.xpose.msra.mxu0 0
    %940 = vmatprep.subr.bf16.mxu0 0
    %941 = vmatpush1.bf16.xpose.msra.mxu0 0
    %942 = vmatprep.subr.bf16.mxu0 0
    %943 = vmatpush1.bf16.xpose.msra.mxu0 0
    %944 = vmatprep.subr.bf16.mxu0 0
    %945 = vmatpush1.bf16.xpose.msra.mxu0 0
    %946 = vmatprep.subr.bf16.mxu0 0
    %947 = vmatpush1.bf16.xpose.msra.mxu0 0
    %948 = vmatprep.subr.bf16.mxu0 0
    %949 = vmatpush1.bf16.xpose.msra.mxu0 0
    %950 = vmatprep.subr.bf16.mxu0 0
    %951 = vmatpush1.bf16.xpose.msra.mxu0 0
    %952 = vmatprep.subr.bf16.mxu0 0
    %953 = vmatpush1.bf16.xpose.msra.mxu0 0
    %954 = vmatprep.subr.bf16.mxu0 0
    %955 = vmatpush1.bf16.xpose.msra.mxu0 0
    %956 = vmatprep.subr.bf16.mxu0 0
    %957 = vmatpush1.bf16.xpose.msra.mxu0 0
    %958 = vmatprep.mubr.bf16.mxu0 0
    %959 = vmatmul.mubr.bf16.gmra.mrb[0].mxu0 %v921
    %v960 = vpop.f32.mrb[0].mxu0
    %v961 = vadd.f32 0.0, %v960
    %v962 = vpop.f32.mrb[0].mxu0
    %v963 = vpop.f32.mrb[0].mxu0
    %v964 = vadd.f32 0.0, %v963
    %v965 = vpop.f32.mrb[0].mxu0
    %966 = vdwg.mxu0
    %v967 = vmul.f32 %v961, %v385
    %v968 = vmul.f32 %v964, %v385
    %v969 = vadd.f32 %v967, %v388
    %v970 = vadd.f32 %v968, %v388
    %v971 = vsel %vm389, %v969, -inf
    %972 = vmax.xlane.f32.xlu0 %v971
    %v973 = vpop.xlane.xlu0 %972
    %v974 = vsel %vm389, %v970, -inf
    %975 = vmax.xlane.f32.xlu0 %v974
    %v976 = vpop.xlane.xlu0 %975
    %v977 = vsub.f32 %v969, %v973
    %v978 = vsub.f32 %v970, %v976
    %v979 = vmul.f32 %v977, 1.442695
    %v980 = vpow.pop %v979
    %v981 = vmul.f32 %v978, 1.442695
    %v982 = vpow.pop %v981
    %v983 = vsel %vm389, %v980, 0.0
    %984 = vadd.xlane.f32.xlu0 %v983
    %v985 = vpop.xlane.xlu0 %984
    %v986 = vsel %vm389, %v982, 0.0
    %987 = vadd.xlane.f32.xlu0 %v986
    %v988 = vpop.xlane.xlu0 %987
    %v989 = vrcp.pop %v985
    %v990 = vmul.f32 %v980, %v989
    %v991 = vrcp.pop %v988
    %v992 = vmul.f32 %v982, %v991
    %v993 = vpack.c.bf16 %v992, %v990
    %994 = vrot.lane.b32.xlu0 %v359, 80
    %v995 = vpop.permute.xlu0 %994
    %v998 = vsel %vm389, %v993, 0
    %1000 = vmatprep.subr.bf16.mxu0 0
    %1001 = vmatpush1.bf16.msra.mxu0 %v995
    %1002 = vmatprep.subr.bf16.mxu0 0
    %1003 = vmatpush1.bf16.msra.mxu0 0
    %1004 = vmatprep.subr.bf16.mxu0 0
    %1005 = vmatpush1.bf16.msra.mxu0 0
    %1006 = vmatprep.subr.bf16.mxu0 0
    %1007 = vmatpush1.bf16.msra.mxu0 0
    %1008 = vmatprep.subr.bf16.mxu0 0
    %1009 = vmatpush1.bf16.msra.mxu0 0
    %1010 = vmatprep.subr.bf16.mxu0 0
    %1011 = vmatpush1.bf16.msra.mxu0 0
    %1012 = vmatprep.subr.bf16.mxu0 0
    %1013 = vmatpush1.bf16.msra.mxu0 0
    %1014 = vmatprep.subr.bf16.mxu0 0
    %1015 = vmatpush1.bf16.msra.mxu0 0
    %1016 = vmatprep.subr.bf16.mxu0 0
    %1017 = vmatpush1.bf16.msra.mxu0 0
    %1018 = vmatprep.subr.bf16.mxu0 0
    %1019 = vmatpush1.bf16.msra.mxu0 0
    %1020 = vmatprep.subr.bf16.mxu0 0
    %1021 = vmatpush1.bf16.msra.mxu0 0
    %1022 = vmatprep.subr.bf16.mxu0 0
    %1023 = vmatpush1.bf16.msra.mxu0 0
    %1024 = vmatprep.subr.bf16.mxu0 0
    %1025 = vmatpush1.bf16.msra.mxu0 0
    %1026 = vmatprep.subr.bf16.mxu0 0
    %1027 = vmatpush1.bf16.msra.mxu0 0
    %1028 = vmatprep.subr.bf16.mxu0 0
    %1029 = vmatpush1.bf16.msra.mxu0 0
    %1030 = vmatprep.subr.bf16.mxu0 0
    %1031 = vmatpush1.bf16.msra.mxu0 0
    %1032 = vmatprep.mubr.bf16.mxu0 0
    %1033 = vmatmul.mubr.bf16.gmra.mrb[0].mxu0 %v998
    %v1034 = vpop.f32.mrb[0].mxu0
    %v1035 = vadd.f32 0.0, %v1034
    %v1036 = vpop.f32.mrb[0].mxu0
    %v1037 = vpop.f32.mrb[0].mxu0
    %v1038 = vadd.f32 0.0, %v1037
    %v1039 = vpop.f32.mrb[0].mxu0
    %1040 = vdwg.mxu0
    %v1041 = vpack.c.bf16 %v1038, %v1035
    %v1044 = vunpack.c.l.b16 %v369
    %v1045 = vunpack.c.l.b16 %v370
    %v1046 = vpack.c.b16 %v1045, %v1044
    %v1049 = vsel %vm389, %v1041, 0
    %1051 = vmatprep.subr.bf16.mxu0 0
    %1052 = vmatpush1.bf16.msra.mxu0 %v1046
    %1053 = vmatprep.subr.bf16.mxu0 0
    %1054 = vmatpush1.bf16.msra.mxu0 0
    %1055 = vmatprep.subr.bf16.mxu0 0
    %1056 = vmatpush1.bf16.msra.mxu0 0
    %1057 = vmatprep.subr.bf16.mxu0 0
    %1058 = vmatpush1.bf16.msra.mxu0 0
    %1059 = vmatprep.subr.bf16.mxu0 0
    %1060 = vmatpush1.bf16.msra.mxu0 0
    %1061 = vmatprep.subr.bf16.mxu0 0
    %1062 = vmatpush1.bf16.msra.mxu0 0
    %1063 = vmatprep.subr.bf16.mxu0 0
    %1064 = vmatpush1.bf16.msra.mxu0 0
    %1065 = vmatprep.subr.bf16.mxu0 0
    %1066 = vmatpush1.bf16.msra.mxu0 0
    %1067 = vmatprep.subr.bf16.mxu0 0
    %1068 = vmatpush1.bf16.msra.mxu0 0
    %1069 = vmatprep.subr.bf16.mxu0 0
    %1070 = vmatpush1.bf16.msra.mxu0 0
    %1071 = vmatprep.subr.bf16.mxu0 0
    %1072 = vmatpush1.bf16.msra.mxu0 0
    %1073 = vmatprep.subr.bf16.mxu0 0
    %1074 = vmatpush1.bf16.msra.mxu0 0
    %1075 = vmatprep.subr.bf16.mxu0 0
    %1076 = vmatpush1.bf16.msra.mxu0 0
    %1077 = vmatprep.subr.bf16.mxu0 0
    %1078 = vmatpush1.bf16.msra.mxu0 0
    %1079 = vmatprep.subr.bf16.mxu0 0
    %1080 = vmatpush1.bf16.msra.mxu0 0
    %1081 = vmatprep.subr.bf16.mxu0 0
    %1082 = vmatpush1.bf16.msra.mxu0 0
    %1083 = vmatprep.mubr.bf16.mxu0 0
    %1084 = vmatmul.mubr.bf16.gmra.mrb[0].mxu0 %v1049
    %v1085 = vpop.f32.mrb[0].mxu0
    %v1086 = vadd.f32 0.0, %v1085
    %v1087 = vpop.f32.mrb[0].mxu0
    %v1088 = vpop.f32.mrb[0].mxu0
    %v1089 = vadd.f32 0.0, %v1088
    %v1090 = vpop.f32.mrb[0].mxu0
    %1091 = vdwg.mxu0
    %v1092 = vadd.f32 %v914, %v1086
    %v1093 = vadd.f32 %v915, %v1089
    %1094 = vrot.lane.b32.xlu0 %v357, 64
    %v1095 = vpop.permute.xlu0 %1094
    %1096 = vrot.lane.b32.xlu0 %v358, 64
    %v1097 = vpop.permute.xlu0 %1096
    %v1099 = vsel %vm389, %v1095, 0
    %v1102 = vsel %vm389, %v1097, 0
    %1104 = vmatprep.subr.bf16.mxu0 0
    %1105 = vmatpush1.bf16.xpose.msra.mxu0 %v1102
    %1106 = vmatprep.subr.bf16.mxu0 0
    %1107 = vmatpush1.bf16.xpose.msra.mxu0 0
    %1108 = vmatprep.subr.bf16.mxu0 0
    %1109 = vmatpush1.bf16.xpose.msra.mxu0 0
    %1110 = vmatprep.subr.bf16.mxu0 0
    %1111 = vmatpush1.bf16.xpose.msra.mxu0 0
    %1112 = vmatprep.subr.bf16.mxu0 0
    %1113 = vmatpush1.bf16.xpose.msra.mxu0 0
    %1114 = vmatprep.subr.bf16.mxu0 0
    %1115 = vmatpush1.bf16.xpose.msra.mxu0 0
    %1116 = vmatprep.subr.bf16.mxu0 0
    %1117 = vmatpush1.bf16.xpose.msra.mxu0 0
    %1118 = vmatprep.subr.bf16.mxu0 0
    %1119 = vmatpush1.bf16.xpose.msra.mxu0 0
    %1120 = vmatprep.subr.bf16.mxu0 0
    %1121 = vmatpush1.bf16.xpose.msra.mxu0 0
    %1122 = vmatprep.subr.bf16.mxu0 0
    %1123 = vmatpush1.bf16.xpose.msra.mxu0 0
    %1124 = vmatprep.subr.bf16.mxu0 0
    %1125 = vmatpush1.bf16.xpose.msra.mxu0 0
    %1126 = vmatprep.subr.bf16.mxu0 0
    %1127 = vmatpush1.bf16.xpose.msra.mxu0 0
    %1128 = vmatprep.subr.bf16.mxu0 0
    %1129 = vmatpush1.bf16.xpose.msra.mxu0 0
    %1130 = vmatprep.subr.bf16.mxu0 0
    %1131 = vmatpush1.bf16.xpose.msra.mxu0 0
    %1132 = vmatprep.subr.bf16.mxu0 0
    %1133 = vmatpush1.bf16.xpose.msra.mxu0 0
    %1134 = vmatprep.subr.bf16.mxu0 0
    %1135 = vmatpush1.bf16.xpose.msra.mxu0 0
    %1136 = vmatprep.mubr.bf16.mxu0 0
    %1137 = vmatmul.mubr.bf16.gmra.mrb[0].mxu0 %v1099
    %v1138 = vpop.f32.mrb[0].mxu0
    %v1139 = vadd.f32 0.0, %v1138
    %v1140 = vpop.f32.mrb[0].mxu0
    %v1141 = vpop.f32.mrb[0].mxu0
    %v1142 = vadd.f32 0.0, %v1141
    %v1143 = vpop.f32.mrb[0].mxu0
    %1144 = vdwg.mxu0
    %v1145 = vmul.f32 %v1139, %v385
    %v1146 = vmul.f32 %v1142, %v385
    %v1147 = vadd.f32 %v1145, %v388
    %v1148 = vadd.f32 %v1146, %v388
    %v1149 = vsel %vm389, %v1147, -inf
    %1150 = vmax.xlane.f32.xlu0 %v1149
    %v1151 = vpop.xlane.xlu0 %1150
    %v1152 = vsel %vm389, %v1148, -inf
    %1153 = vmax.xlane.f32.xlu0 %v1152
    %v1154 = vpop.xlane.xlu0 %1153
    %v1155 = vsub.f32 %v1147, %v1151
    %v1156 = vsub.f32 %v1148, %v1154
    %v1157 = vmul.f32 %v1155, 1.442695
    %v1158 = vpow.pop %v1157
    %v1159 = vmul.f32 %v1156, 1.442695
    %v1160 = vpow.pop %v1159
    %v1161 = vsel %vm389, %v1158, 0.0
    %1162 = vadd.xlane.f32.xlu0 %v1161
    %v1163 = vpop.xlane.xlu0 %1162
    %v1164 = vsel %vm389, %v1160, 0.0
    %1165 = vadd.xlane.f32.xlu0 %v1164
    %v1166 = vpop.xlane.xlu0 %1165
    %v1167 = vrcp.pop %v1163
    %v1168 = vmul.f32 %v1158, %v1167
    %v1169 = vrcp.pop %v1166
    %v1170 = vmul.f32 %v1160, %v1169
    %v1171 = vpack.c.bf16 %v1170, %v1168
    %1172 = vrot.lane.b32.xlu0 %v359, 64
    %v1173 = vpop.permute.xlu0 %1172
    %v1176 = vsel %vm389, %v1171, 0
    %1178 = vmatprep.subr.bf16.mxu0 0
    %1179 = vmatpush1.bf16.msra.mxu0 %v1173
    %1180 = vmatprep.subr.bf16.mxu0 0
    %1181 = vmatpush1.bf16.msra.mxu0 0
    %1182 = vmatprep.subr.bf16.mxu0 0
    %1183 = vmatpush1.bf16.msra.mxu0 0
    %1184 = vmatprep.subr.bf16.mxu0 0
    %1185 = vmatpush1.bf16.msra.mxu0 0
    %1186 = vmatprep.subr.bf16.mxu0 0
    %1187 = vmatpush1.bf16.msra.mxu0 0
    %1188 = vmatprep.subr.bf16.mxu0 0
    %1189 = vmatpush1.bf16.msra.mxu0 0
    %1190 = vmatprep.subr.bf16.mxu0 0
    %1191 = vmatpush1.bf16.msra.mxu0 0
    %1192 = vmatprep.subr.bf16.mxu0 0
    %1193 = vmatpush1.bf16.msra.mxu0 0
    %1194 = vmatprep.subr.bf16.mxu0 0
    %1195 = vmatpush1.bf16.msra.mxu0 0
    %1196 = vmatprep.subr.bf16.mxu0 0
    %1197 = vmatpush1.bf16.msra.mxu0 0
    %1198 = vmatprep.subr.bf16.mxu0 0
    %1199 = vmatpush1.bf16.msra.mxu0 0
    %1200 = vmatprep.subr.bf16.mxu0 0
    %1201 = vmatpush1.bf16.msra.mxu0 0
    %1202 = vmatprep.subr.bf16.mxu0 0
    %1203 = vmatpush1.bf16.msra.mxu0 0
    %1204 = vmatprep.subr.bf16.mxu0 0
    %1205 = vmatpush1.bf16.msra.mxu0 0
    %1206 = vmatprep.subr.bf16.mxu0 0
    %1207 = vmatpush1.bf16.msra.mxu0 0
    %1208 = vmatprep.subr.bf16.mxu0 0
    %1209 = vmatpush1.bf16.msra.mxu0 0
    %1210 = vmatprep.mubr.bf16.mxu0 0
    %1211 = vmatmul.mubr.bf16.gmra.mrb[0].mxu0 %v1176
    %v1212 = vpop.f32.mrb[0].mxu0
    %v1213 = vadd.f32 0.0, %v1212
    %v1214 = vpop.f32.mrb[0].mxu0
    %v1215 = vpop.f32.mrb[0].mxu0
    %v1216 = vadd.f32 0.0, %v1215
    %v1217 = vpop.f32.mrb[0].mxu0
    %1218 = vdwg.mxu0
    %v1219 = vpack.c.bf16 %v1216, %v1213
    %v1222 = vunpack.c.l.b16 %v371
    %v1223 = vunpack.c.l.b16 %v372
    %v1224 = vpack.c.b16 %v1223, %v1222
    %v1227 = vsel %vm389, %v1219, 0
    %1229 = vmatprep.subr.bf16.mxu0 0
    %1230 = vmatpush1.bf16.msra.mxu0 %v1224
    %1231 = vmatprep.subr.bf16.mxu0 0
    %1232 = vmatpush1.bf16.msra.mxu0 0
    %1233 = vmatprep.subr.bf16.mxu0 0
    %1234 = vmatpush1.bf16.msra.mxu0 0
    %1235 = vmatprep.subr.bf16.mxu0 0
    %1236 = vmatpush1.bf16.msra.mxu0 0
    %1237 = vmatprep.subr.bf16.mxu0 0
    %1238 = vmatpush1.bf16.msra.mxu0 0
    %1239 = vmatprep.subr.bf16.mxu0 0
    %1240 = vmatpush1.bf16.msra.mxu0 0
    %1241 = vmatprep.subr.bf16.mxu0 0
    %1242 = vmatpush1.bf16.msra.mxu0 0
    %1243 = vmatprep.subr.bf16.mxu0 0
    %1244 = vmatpush1.bf16.msra.mxu0 0
    %1245 = vmatprep.subr.bf16.mxu0 0
    %1246 = vmatpush1.bf16.msra.mxu0 0
    %1247 = vmatprep.subr.bf16.mxu0 0
    %1248 = vmatpush1.bf16.msra.mxu0 0
    %1249 = vmatprep.subr.bf16.mxu0 0
    %1250 = vmatpush1.bf16.msra.mxu0 0
    %1251 = vmatprep.subr.bf16.mxu0 0
    %1252 = vmatpush1.bf16.msra.mxu0 0
    %1253 = vmatprep.subr.bf16.mxu0 0
    %1254 = vmatpush1.bf16.msra.mxu0 0
    %1255 = vmatprep.subr.bf16.mxu0 0
    %1256 = vmatpush1.bf16.msra.mxu0 0
    %1257 = vmatprep.subr.bf16.mxu0 0
    %1258 = vmatpush1.bf16.msra.mxu0 0
    %1259 = vmatprep.subr.bf16.mxu0 0
    %1260 = vmatpush1.bf16.msra.mxu0 0
    %1261 = vmatprep.mubr.bf16.mxu0 0
    %1262 = vmatmul.mubr.bf16.gmra.mrb[0].mxu0 %v1227
    %v1263 = vpop.f32.mrb[0].mxu0
    %v1264 = vadd.f32 0.0, %v1263
    %v1265 = vpop.f32.mrb[0].mxu0
    %v1266 = vpop.f32.mrb[0].mxu0
    %v1267 = vadd.f32 0.0, %v1266
    %v1268 = vpop.f32.mrb[0].mxu0
    %1269 = vdwg.mxu0
    %v1270 = vadd.f32 %v1092, %v1264
    %v1271 = vadd.f32 %v1093, %v1267
    %1272 = vrot.lane.b32.xlu0 %v357, 48
    %v1273 = vpop.permute.xlu0 %1272
    %1274 = vrot.lane.b32.xlu0 %v358, 48
    %v1275 = vpop.permute.xlu0 %1274
    %v1277 = vsel %vm389, %v1273, 0
    %v1280 = vsel %vm389, %v1275, 0
    %1282 = vmatprep.subr.bf16.mxu0 0
    %1283 = vmatpush1.bf16.xpose.msra.mxu0 %v1280
    %1284 = vmatprep.subr.bf16.mxu0 0
    %1285 = vmatpush1.bf16.xpose.msra.mxu0 0
    %1286 = vmatprep.subr.bf16.mxu0 0
    %1287 = vmatpush1.bf16.xpose.msra.mxu0 0
    %1288 = vmatprep.subr.bf16.mxu0 0
    %1289 = vmatpush1.bf16.xpose.msra.mxu0 0
    %1290 = vmatprep.subr.bf16.mxu0 0
    %1291 = vmatpush1.bf16.xpose.msra.mxu0 0
    %1292 = vmatprep.subr.bf16.mxu0 0
    %1293 = vmatpush1.bf16.xpose.msra.mxu0 0
    %1294 = vmatprep.subr.bf16.mxu0 0
    %1295 = vmatpush1.bf16.xpose.msra.mxu0 0
    %1296 = vmatprep.subr.bf16.mxu0 0
    %1297 = vmatpush1.bf16.xpose.msra.mxu0 0
    %1298 = vmatprep.subr.bf16.mxu0 0
    %1299 = vmatpush1.bf16.xpose.msra.mxu0 0
    %1300 = vmatprep.subr.bf16.mxu0 0
    %1301 = vmatpush1.bf16.xpose.msra.mxu0 0
    %1302 = vmatprep.subr.bf16.mxu0 0
    %1303 = vmatpush1.bf16.xpose.msra.mxu0 0
    %1304 = vmatprep.subr.bf16.mxu0 0
    %1305 = vmatpush1.bf16.xpose.msra.mxu0 0
    %1306 = vmatprep.subr.bf16.mxu0 0
    %1307 = vmatpush1.bf16.xpose.msra.mxu0 0
    %1308 = vmatprep.subr.bf16.mxu0 0
    %1309 = vmatpush1.bf16.xpose.msra.mxu0 0
    %1310 = vmatprep.subr.bf16.mxu0 0
    %1311 = vmatpush1.bf16.xpose.msra.mxu0 0
    %1312 = vmatprep.subr.bf16.mxu0 0
    %1313 = vmatpush1.bf16.xpose.msra.mxu0 0
    %1314 = vmatprep.mubr.bf16.mxu0 0
    %1315 = vmatmul.mubr.bf16.gmra.mrb[0].mxu0 %v1277
    %v1316 = vpop.f32.mrb[0].mxu0
    %v1317 = vadd.f32 0.0, %v1316
    %v1318 = vpop.f32.mrb[0].mxu0
    %v1319 = vpop.f32.mrb[0].mxu0
    %v1320 = vadd.f32 0.0, %v1319
    %v1321 = vpop.f32.mrb[0].mxu0
    %1322 = vdwg.mxu0
    %v1323 = vmul.f32 %v1317, %v385
    %v1324 = vmul.f32 %v1320, %v385
    %v1325 = vadd.f32 %v1323, %v388
    %v1326 = vadd.f32 %v1324, %v388
    %v1327 = vsel %vm389, %v1325, -inf
    %1328 = vmax.xlane.f32.xlu0 %v1327
    %v1329 = vpop.xlane.xlu0 %1328
    %v1330 = vsel %vm389, %v1326, -inf
    %1331 = vmax.xlane.f32.xlu0 %v1330
    %v1332 = vpop.xlane.xlu0 %1331
    %v1333 = vsub.f32 %v1325, %v1329
    %v1334 = vsub.f32 %v1326, %v1332
    %v1335 = vmul.f32 %v1333, 1.442695
    %v1336 = vpow.pop %v1335
    %v1337 = vmul.f32 %v1334, 1.442695
    %v1338 = vpow.pop %v1337
    %v1339 = vsel %vm389, %v1336, 0.0
    %1340 = vadd.xlane.f32.xlu0 %v1339
    %v1341 = vpop.xlane.xlu0 %1340
    %v1342 = vsel %vm389, %v1338, 0.0
    %1343 = vadd.xlane.f32.xlu0 %v1342
    %v1344 = vpop.xlane.xlu0 %1343
    %v1345 = vrcp.pop %v1341
    %v1346 = vmul.f32 %v1336, %v1345
    %v1347 = vrcp.pop %v1344
    %v1348 = vmul.f32 %v1338, %v1347
    %v1349 = vpack.c.bf16 %v1348, %v1346
    %1350 = vrot.lane.b32.xlu0 %v359, 48
    %v1351 = vpop.permute.xlu0 %1350
    %v1354 = vsel %vm389, %v1349, 0
    %1356 = vmatprep.subr.bf16.mxu0 0
    %1357 = vmatpush1.bf16.msra.mxu0 %v1351
    %1358 = vmatprep.subr.bf16.mxu0 0
    %1359 = vmatpush1.bf16.msra.mxu0 0
    %1360 = vmatprep.subr.bf16.mxu0 0
    %1361 = vmatpush1.bf16.msra.mxu0 0
    %1362 = vmatprep.subr.bf16.mxu0 0
    %1363 = vmatpush1.bf16.msra.mxu0 0
    %1364 = vmatprep.subr.bf16.mxu0 0
    %1365 = vmatpush1.bf16.msra.mxu0 0
    %1366 = vmatprep.subr.bf16.mxu0 0
    %1367 = vmatpush1.bf16.msra.mxu0 0
    %1368 = vmatprep.subr.bf16.mxu0 0
    %1369 = vmatpush1.bf16.msra.mxu0 0
    %1370 = vmatprep.subr.bf16.mxu0 0
    %1371 = vmatpush1.bf16.msra.mxu0 0
    %1372 = vmatprep.subr.bf16.mxu0 0
    %1373 = vmatpush1.bf16.msra.mxu0 0
    %1374 = vmatprep.subr.bf16.mxu0 0
    %1375 = vmatpush1.bf16.msra.mxu0 0
    %1376 = vmatprep.subr.bf16.mxu0 0
    %1377 = vmatpush1.bf16.msra.mxu0 0
    %1378 = vmatprep.subr.bf16.mxu0 0
    %1379 = vmatpush1.bf16.msra.mxu0 0
    %1380 = vmatprep.subr.bf16.mxu0 0
    %1381 = vmatpush1.bf16.msra.mxu0 0
    %1382 = vmatprep.subr.bf16.mxu0 0
    %1383 = vmatpush1.bf16.msra.mxu0 0
    %1384 = vmatprep.subr.bf16.mxu0 0
    %1385 = vmatpush1.bf16.msra.mxu0 0
    %1386 = vmatprep.subr.bf16.mxu0 0
    %1387 = vmatpush1.bf16.msra.mxu0 0
    %1388 = vmatprep.mubr.bf16.mxu0 0
    %1389 = vmatmul.mubr.bf16.gmra.mrb[0].mxu0 %v1354
    %v1390 = vpop.f32.mrb[0].mxu0
    %v1391 = vadd.f32 0.0, %v1390
    %v1392 = vpop.f32.mrb[0].mxu0
    %v1393 = vpop.f32.mrb[0].mxu0
    %v1394 = vadd.f32 0.0, %v1393
    %v1395 = vpop.f32.mrb[0].mxu0
    %1396 = vdwg.mxu0
    %v1397 = vpack.c.bf16 %v1394, %v1391
    %v1400 = vunpack.c.l.b16 %v373
    %v1401 = vunpack.c.l.b16 %v374
    %v1402 = vpack.c.b16 %v1401, %v1400
    %v1405 = vsel %vm389, %v1397, 0
    %1407 = vmatprep.subr.bf16.mxu0 0
    %1408 = vmatpush1.bf16.msra.mxu0 %v1402
    %1409 = vmatprep.subr.bf16.mxu0 0
    %1410 = vmatpush1.bf16.msra.mxu0 0
    %1411 = vmatprep.subr.bf16.mxu0 0
    %1412 = vmatpush1.bf16.msra.mxu0 0
    %1413 = vmatprep.subr.bf16.mxu0 0
    %1414 = vmatpush1.bf16.msra.mxu0 0
    %1415 = vmatprep.subr.bf16.mxu0 0
    %1416 = vmatpush1.bf16.msra.mxu0 0
    %1417 = vmatprep.subr.bf16.mxu0 0
    %1418 = vmatpush1.bf16.msra.mxu0 0
    %1419 = vmatprep.subr.bf16.mxu0 0
    %1420 = vmatpush1.bf16.msra.mxu0 0
    %1421 = vmatprep.subr.bf16.mxu0 0
    %1422 = vmatpush1.bf16.msra.mxu0 0
    %1423 = vmatprep.subr.bf16.mxu0 0
    %1424 = vmatpush1.bf16.msra.mxu0 0
    %1425 = vmatprep.subr.bf16.mxu0 0
    %1426 = vmatpush1.bf16.msra.mxu0 0
    %1427 = vmatprep.subr.bf16.mxu0 0
    %1428 = vmatpush1.bf16.msra.mxu0 0
    %1429 = vmatprep.subr.bf16.mxu0 0
    %1430 = vmatpush1.bf16.msra.mxu0 0
    %1431 = vmatprep.subr.bf16.mxu0 0
    %1432 = vmatpush1.bf16.msra.mxu0 0
    %1433 = vmatprep.subr.bf16.mxu0 0
    %1434 = vmatpush1.bf16.msra.mxu0 0
    %1435 = vmatprep.subr.bf16.mxu0 0
    %1436 = vmatpush1.bf16.msra.mxu0 0
    %1437 = vmatprep.subr.bf16.mxu0 0
    %1438 = vmatpush1.bf16.msra.mxu0 0
    %1439 = vmatprep.mubr.bf16.mxu0 0
    %1440 = vmatmul.mubr.bf16.gmra.mrb[0].mxu0 %v1405
    %v1441 = vpop.f32.mrb[0].mxu0
    %v1442 = vadd.f32 0.0, %v1441
    %v1443 = vpop.f32.mrb[0].mxu0
    %v1444 = vpop.f32.mrb[0].mxu0
    %v1445 = vadd.f32 0.0, %v1444
    %v1446 = vpop.f32.mrb[0].mxu0
    %1447 = vdwg.mxu0
    %v1448 = vadd.f32 %v1270, %v1442
    %v1449 = vadd.f32 %v1271, %v1445
    %1450 = vrot.lane.b32.xlu0 %v357, 32
    %v1451 = vpop.permute.xlu0 %1450
    %1452 = vrot.lane.b32.xlu0 %v358, 32
    %v1453 = vpop.permute.xlu0 %1452
    %v1455 = vsel %vm389, %v1451, 0
    %v1458 = vsel %vm389, %v1453, 0
    %1460 = vmatprep.subr.bf16.mxu0 0
    %1461 = vmatpush1.bf16.xpose.msra.mxu0 %v1458
    %1462 = vmatprep.subr.bf16.mxu0 0
    %1463 = vmatpush1.bf16.xpose.msra.mxu0 0
    %1464 = vmatprep.subr.bf16.mxu0 0
    %1465 = vmatpush1.bf16.xpose.msra.mxu0 0
    %1466 = vmatprep.subr.bf16.mxu0 0
    %1467 = vmatpush1.bf16.xpose.msra.mxu0 0
    %1468 = vmatprep.subr.bf16.mxu0 0
    %1469 = vmatpush1.bf16.xpose.msra.mxu0 0
    %1470 = vmatprep.subr.bf16.mxu0 0
    %1471 = vmatpush1.bf16.xpose.msra.mxu0 0
    %1472 = vmatprep.subr.bf16.mxu0 0
    %1473 = vmatpush1.bf16.xpose.msra.mxu0 0
    %1474 = vmatprep.subr.bf16.mxu0 0
    %1475 = vmatpush1.bf16.xpose.msra.mxu0 0
    %1476 = vmatprep.subr.bf16.mxu0 0
    %1477 = vmatpush1.bf16.xpose.msra.mxu0 0
    %1478 = vmatprep.subr.bf16.mxu0 0
    %1479 = vmatpush1.bf16.xpose.msra.mxu0 0
    %1480 = vmatprep.subr.bf16.mxu0 0
    %1481 = vmatpush1.bf16.xpose.msra.mxu0 0
    %1482 = vmatprep.subr.bf16.mxu0 0
    %1483 = vmatpush1.bf16.xpose.msra.mxu0 0
    %1484 = vmatprep.subr.bf16.mxu0 0
    %1485 = vmatpush1.bf16.xpose.msra.mxu0 0
    %1486 = vmatprep.subr.bf16.mxu0 0
    %1487 = vmatpush1.bf16.xpose.msra.mxu0 0
    %1488 = vmatprep.subr.bf16.mxu0 0
    %1489 = vmatpush1.bf16.xpose.msra.mxu0 0
    %1490 = vmatprep.subr.bf16.mxu0 0
    %1491 = vmatpush1.bf16.xpose.msra.mxu0 0
    %1492 = vmatprep.mubr.bf16.mxu0 0
    %1493 = vmatmul.mubr.bf16.gmra.mrb[0].mxu0 %v1455
    %v1494 = vpop.f32.mrb[0].mxu0
    %v1495 = vadd.f32 0.0, %v1494
    %v1496 = vpop.f32.mrb[0].mxu0
    %v1497 = vpop.f32.mrb[0].mxu0
    %v1498 = vadd.f32 0.0, %v1497
    %v1499 = vpop.f32.mrb[0].mxu0
    %1500 = vdwg.mxu0
    %v1501 = vmul.f32 %v1495, %v385
    %v1502 = vmul.f32 %v1498, %v385
    %v1503 = vadd.f32 %v1501, %v388
    %v1504 = vadd.f32 %v1502, %v388
    %v1505 = vsel %vm389, %v1503, -inf
    %1506 = vmax.xlane.f32.xlu0 %v1505
    %v1507 = vpop.xlane.xlu0 %1506
    %v1508 = vsel %vm389, %v1504, -inf
    %1509 = vmax.xlane.f32.xlu0 %v1508
    %v1510 = vpop.xlane.xlu0 %1509
    %v1511 = vsub.f32 %v1503, %v1507
    %v1512 = vsub.f32 %v1504, %v1510
    %v1513 = vmul.f32 %v1511, 1.442695
    %v1514 = vpow.pop %v1513
    %v1515 = vmul.f32 %v1512, 1.442695
    %v1516 = vpow.pop %v1515
    %v1517 = vsel %vm389, %v1514, 0.0
    %1518 = vadd.xlane.f32.xlu0 %v1517
    %v1519 = vpop.xlane.xlu0 %1518
    %v1520 = vsel %vm389, %v1516, 0.0
    %1521 = vadd.xlane.f32.xlu0 %v1520
    %v1522 = vpop.xlane.xlu0 %1521
    %v1523 = vrcp.pop %v1519
    %v1524 = vmul.f32 %v1514, %v1523
    %v1525 = vrcp.pop %v1522
    %v1526 = vmul.f32 %v1516, %v1525
    %v1527 = vpack.c.bf16 %v1526, %v1524
    %1528 = vrot.lane.b32.xlu0 %v359, 32
    %v1529 = vpop.permute.xlu0 %1528
    %v1532 = vsel %vm389, %v1527, 0
    %1534 = vmatprep.subr.bf16.mxu0 0
    %1535 = vmatpush1.bf16.msra.mxu0 %v1529
    %1536 = vmatprep.subr.bf16.mxu0 0
    %1537 = vmatpush1.bf16.msra.mxu0 0
    %1538 = vmatprep.subr.bf16.mxu0 0
    %1539 = vmatpush1.bf16.msra.mxu0 0
    %1540 = vmatprep.subr.bf16.mxu0 0
    %1541 = vmatpush1.bf16.msra.mxu0 0
    %1542 = vmatprep.subr.bf16.mxu0 0
    %1543 = vmatpush1.bf16.msra.mxu0 0
    %1544 = vmatprep.subr.bf16.mxu0 0
    %1545 = vmatpush1.bf16.msra.mxu0 0
    %1546 = vmatprep.subr.bf16.mxu0 0
    %1547 = vmatpush1.bf16.msra.mxu0 0
    %1548 = vmatprep.subr.bf16.mxu0 0
    %1549 = vmatpush1.bf16.msra.mxu0 0
    %1550 = vmatprep.subr.bf16.mxu0 0
    %1551 = vmatpush1.bf16.msra.mxu0 0
    %1552 = vmatprep.subr.bf16.mxu0 0
    %1553 = vmatpush1.bf16.msra.mxu0 0
    %1554 = vmatprep.subr.bf16.mxu0 0
    %1555 = vmatpush1.bf16.msra.mxu0 0
    %1556 = vmatprep.subr.bf16.mxu0 0
    %1557 = vmatpush1.bf16.msra.mxu0 0
    %1558 = vmatprep.subr.bf16.mxu0 0
    %1559 = vmatpush1.bf16.msra.mxu0 0
    %1560 = vmatprep.subr.bf16.mxu0 0
    %1561 = vmatpush1.bf16.msra.mxu0 0
    %1562 = vmatprep.subr.bf16.mxu0 0
    %1563 = vmatpush1.bf16.msra.mxu0 0
    %1564 = vmatprep.subr.bf16.mxu0 0
    %1565 = vmatpush1.bf16.msra.mxu0 0
    %1566 = vmatprep.mubr.bf16.mxu0 0
    %1567 = vmatmul.mubr.bf16.gmra.mrb[0].mxu0 %v1532
    %v1568 = vpop.f32.mrb[0].mxu0
    %v1569 = vadd.f32 0.0, %v1568
    %v1570 = vpop.f32.mrb[0].mxu0
    %v1571 = vpop.f32.mrb[0].mxu0
    %v1572 = vadd.f32 0.0, %v1571
    %v1573 = vpop.f32.mrb[0].mxu0
    %1574 = vdwg.mxu0
    %v1575 = vpack.c.bf16 %v1572, %v1569
    %v1578 = vunpack.c.l.b16 %v375
    %v1579 = vunpack.c.l.b16 %v376
    %v1580 = vpack.c.b16 %v1579, %v1578
    %v1583 = vsel %vm389, %v1575, 0
    %1585 = vmatprep.subr.bf16.mxu0 0
    %1586 = vmatpush1.bf16.msra.mxu0 %v1580
    %1587 = vmatprep.subr.bf16.mxu0 0
    %1588 = vmatpush1.bf16.msra.mxu0 0
    %1589 = vmatprep.subr.bf16.mxu0 0
    %1590 = vmatpush1.bf16.msra.mxu0 0
    %1591 = vmatprep.subr.bf16.mxu0 0
    %1592 = vmatpush1.bf16.msra.mxu0 0
    %1593 = vmatprep.subr.bf16.mxu0 0
    %1594 = vmatpush1.bf16.msra.mxu0 0
    %1595 = vmatprep.subr.bf16.mxu0 0
    %1596 = vmatpush1.bf16.msra.mxu0 0
    %1597 = vmatprep.subr.bf16.mxu0 0
    %1598 = vmatpush1.bf16.msra.mxu0 0
    %1599 = vmatprep.subr.bf16.mxu0 0
    %1600 = vmatpush1.bf16.msra.mxu0 0
    %1601 = vmatprep.subr.bf16.mxu0 0
    %1602 = vmatpush1.bf16.msra.mxu0 0
    %1603 = vmatprep.subr.bf16.mxu0 0
    %1604 = vmatpush1.bf16.msra.mxu0 0
    %1605 = vmatprep.subr.bf16.mxu0 0
    %1606 = vmatpush1.bf16.msra.mxu0 0
    %1607 = vmatprep.subr.bf16.mxu0 0
    %1608 = vmatpush1.bf16.msra.mxu0 0
    %1609 = vmatprep.subr.bf16.mxu0 0
    %1610 = vmatpush1.bf16.msra.mxu0 0
    %1611 = vmatprep.subr.bf16.mxu0 0
    %1612 = vmatpush1.bf16.msra.mxu0 0
    %1613 = vmatprep.subr.bf16.mxu0 0
    %1614 = vmatpush1.bf16.msra.mxu0 0
    %1615 = vmatprep.subr.bf16.mxu0 0
    %1616 = vmatpush1.bf16.msra.mxu0 0
    %1617 = vmatprep.mubr.bf16.mxu0 0
    %1618 = vmatmul.mubr.bf16.gmra.mrb[0].mxu0 %v1583
    %v1619 = vpop.f32.mrb[0].mxu0
    %v1620 = vadd.f32 0.0, %v1619
    %v1621 = vpop.f32.mrb[0].mxu0
    %v1622 = vpop.f32.mrb[0].mxu0
    %v1623 = vadd.f32 0.0, %v1622
    %v1624 = vpop.f32.mrb[0].mxu0
    %1625 = vdwg.mxu0
    %v1626 = vadd.f32 %v1448, %v1620
    %v1627 = vadd.f32 %v1449, %v1623
    %1628 = vrot.lane.b32.xlu0 %v357, 16
    %v1629 = vpop.permute.xlu0 %1628
    %1630 = vrot.lane.b32.xlu0 %v358, 16
    %v1631 = vpop.permute.xlu0 %1630
    %v1633 = vsel %vm389, %v1629, 0
    %v1636 = vsel %vm389, %v1631, 0
    %1638 = vmatprep.subr.bf16.mxu0 0
    %1639 = vmatpush1.bf16.xpose.msra.mxu0 %v1636
    %1640 = vmatprep.subr.bf16.mxu0 0
    %1641 = vmatpush1.bf16.xpose.msra.mxu0 0
    %1642 = vmatprep.subr.bf16.mxu0 0
    %1643 = vmatpush1.bf16.xpose.msra.mxu0 0
    %1644 = vmatprep.subr.bf16.mxu0 0
    %1645 = vmatpush1.bf16.xpose.msra.mxu0 0
    %1646 = vmatprep.subr.bf16.mxu0 0
    %1647 = vmatpush1.bf16.xpose.msra.mxu0 0
    %1648 = vmatprep.subr.bf16.mxu0 0
    %1649 = vmatpush1.bf16.xpose.msra.mxu0 0
    %1650 = vmatprep.subr.bf16.mxu0 0
    %1651 = vmatpush1.bf16.xpose.msra.mxu0 0
    %1652 = vmatprep.subr.bf16.mxu0 0
    %1653 = vmatpush1.bf16.xpose.msra.mxu0 0
    %1654 = vmatprep.subr.bf16.mxu0 0
    %1655 = vmatpush1.bf16.xpose.msra.mxu0 0
    %1656 = vmatprep.subr.bf16.mxu0 0
    %1657 = vmatpush1.bf16.xpose.msra.mxu0 0
    %1658 = vmatprep.subr.bf16.mxu0 0
    %1659 = vmatpush1.bf16.xpose.msra.mxu0 0
    %1660 = vmatprep.subr.bf16.mxu0 0
    %1661 = vmatpush1.bf16.xpose.msra.mxu0 0
    %1662 = vmatprep.subr.bf16.mxu0 0
    %1663 = vmatpush1.bf16.xpose.msra.mxu0 0
    %1664 = vmatprep.subr.bf16.mxu0 0
    %1665 = vmatpush1.bf16.xpose.msra.mxu0 0
    %1666 = vmatprep.subr.bf16.mxu0 0
    %1667 = vmatpush1.bf16.xpose.msra.mxu0 0
    %1668 = vmatprep.subr.bf16.mxu0 0
    %1669 = vmatpush1.bf16.xpose.msra.mxu0 0
    %1670 = vmatprep.mubr.bf16.mxu0 0
    %1671 = vmatmul.mubr.bf16.gmra.mrb[0].mxu0 %v1633
    %v1672 = vpop.f32.mrb[0].mxu0
    %v1673 = vadd.f32 0.0, %v1672
    %v1674 = vpop.f32.mrb[0].mxu0
    %v1675 = vpop.f32.mrb[0].mxu0
    %v1676 = vadd.f32 0.0, %v1675
    %v1677 = vpop.f32.mrb[0].mxu0
    %1678 = vdwg.mxu0
    %v1679 = vmul.f32 %v1673, %v385
    %v1680 = vmul.f32 %v1676, %v385
    %v1681 = vadd.f32 %v1679, %v388
    %v1682 = vadd.f32 %v1680, %v388
    %v1683 = vsel %vm389, %v1681, -inf
    %1684 = vmax.xlane.f32.xlu0 %v1683
    %v1685 = vpop.xlane.xlu0 %1684
    %v1686 = vsel %vm389, %v1682, -inf
    %1687 = vmax.xlane.f32.xlu0 %v1686
    %v1688 = vpop.xlane.xlu0 %1687
    %v1689 = vsub.f32 %v1681, %v1685
    %v1690 = vsub.f32 %v1682, %v1688
    %v1691 = vmul.f32 %v1689, 1.442695
    %v1692 = vpow.pop %v1691
    %v1693 = vmul.f32 %v1690, 1.442695
    %v1694 = vpow.pop %v1693
    %v1695 = vsel %vm389, %v1692, 0.0
    %1696 = vadd.xlane.f32.xlu0 %v1695
    %v1697 = vpop.xlane.xlu0 %1696
    %v1698 = vsel %vm389, %v1694, 0.0
    %1699 = vadd.xlane.f32.xlu0 %v1698
    %v1700 = vpop.xlane.xlu0 %1699
    %v1701 = vrcp.pop %v1697
    %v1702 = vmul.f32 %v1692, %v1701
    %v1703 = vrcp.pop %v1700
    %v1704 = vmul.f32 %v1694, %v1703
    %v1705 = vpack.c.bf16 %v1704, %v1702
    %1706 = vrot.lane.b32.xlu0 %v359, 16
    %v1707 = vpop.permute.xlu0 %1706
    %v1710 = vsel %vm389, %v1705, 0
    %1712 = vmatprep.subr.bf16.mxu0 0
    %1713 = vmatpush1.bf16.msra.mxu0 %v1707
    %1714 = vmatprep.subr.bf16.mxu0 0
    %1715 = vmatpush1.bf16.msra.mxu0 0
    %1716 = vmatprep.subr.bf16.mxu0 0
    %1717 = vmatpush1.bf16.msra.mxu0 0
    %1718 = vmatprep.subr.bf16.mxu0 0
    %1719 = vmatpush1.bf16.msra.mxu0 0
    %1720 = vmatprep.subr.bf16.mxu0 0
    %1721 = vmatpush1.bf16.msra.mxu0 0
    %1722 = vmatprep.subr.bf16.mxu0 0
    %1723 = vmatpush1.bf16.msra.mxu0 0
    %1724 = vmatprep.subr.bf16.mxu0 0
    %1725 = vmatpush1.bf16.msra.mxu0 0
    %1726 = vmatprep.subr.bf16.mxu0 0
    %1727 = vmatpush1.bf16.msra.mxu0 0
    %1728 = vmatprep.subr.bf16.mxu0 0
    %1729 = vmatpush1.bf16.msra.mxu0 0
    %1730 = vmatprep.subr.bf16.mxu0 0
    %1731 = vmatpush1.bf16.msra.mxu0 0
    %1732 = vmatprep.subr.bf16.mxu0 0
    %1733 = vmatpush1.bf16.msra.mxu0 0
    %1734 = vmatprep.subr.bf16.mxu0 0
    %1735 = vmatpush1.bf16.msra.mxu0 0
    %1736 = vmatprep.subr.bf16.mxu0 0
    %1737 = vmatpush1.bf16.msra.mxu0 0
    %1738 = vmatprep.subr.bf16.mxu0 0
    %1739 = vmatpush1.bf16.msra.mxu0 0
    %1740 = vmatprep.subr.bf16.mxu0 0
    %1741 = vmatpush1.bf16.msra.mxu0 0
    %1742 = vmatprep.subr.bf16.mxu0 0
    %1743 = vmatpush1.bf16.msra.mxu0 0
    %1744 = vmatprep.mubr.bf16.mxu0 0
    %1745 = vmatmul.mubr.bf16.gmra.mrb[0].mxu0 %v1710
    %v1746 = vpop.f32.mrb[0].mxu0
    %v1747 = vadd.f32 0.0, %v1746
    %v1748 = vpop.f32.mrb[0].mxu0
    %v1749 = vpop.f32.mrb[0].mxu0
    %v1750 = vadd.f32 0.0, %v1749
    %v1751 = vpop.f32.mrb[0].mxu0
    %1752 = vdwg.mxu0
    %v1753 = vpack.c.bf16 %v1750, %v1747
    %v1756 = vunpack.c.l.b16 %v377
    %v1757 = vunpack.c.l.b16 %v378
    %v1758 = vpack.c.b16 %v1757, %v1756
    %v1761 = vsel %vm389, %v1753, 0
    %1763 = vmatprep.subr.bf16.mxu0 0
    %1764 = vmatpush1.bf16.msra.mxu0 %v1758
    %1765 = vmatprep.subr.bf16.mxu0 0
    %1766 = vmatpush1.bf16.msra.mxu0 0
    %1767 = vmatprep.subr.bf16.mxu0 0
    %1768 = vmatpush1.bf16.msra.mxu0 0
    %1769 = vmatprep.subr.bf16.mxu0 0
    %1770 = vmatpush1.bf16.msra.mxu0 0
    %1771 = vmatprep.subr.bf16.mxu0 0
    %1772 = vmatpush1.bf16.msra.mxu0 0
    %1773 = vmatprep.subr.bf16.mxu0 0
    %1774 = vmatpush1.bf16.msra.mxu0 0
    %1775 = vmatprep.subr.bf16.mxu0 0
    %1776 = vmatpush1.bf16.msra.mxu0 0
    %1777 = vmatprep.subr.bf16.mxu0 0
    %1778 = vmatpush1.bf16.msra.mxu0 0
    %1779 = vmatprep.subr.bf16.mxu0 0
    %1780 = vmatpush1.bf16.msra.mxu0 0
    %1781 = vmatprep.subr.bf16.mxu0 0
    %1782 = vmatpush1.bf16.msra.mxu0 0
    %1783 = vmatprep.subr.bf16.mxu0 0
    %1784 = vmatpush1.bf16.msra.mxu0 0
    %1785 = vmatprep.subr.bf16.mxu0 0
    %1786 = vmatpush1.bf16.msra.mxu0 0
    %1787 = vmatprep.subr.bf16.mxu0 0
    %1788 = vmatpush1.bf16.msra.mxu0 0
    %1789 = vmatprep.subr.bf16.mxu0 0
    %1790 = vmatpush1.bf16.msra.mxu0 0
    %1791 = vmatprep.subr.bf16.mxu0 0
    %1792 = vmatpush1.bf16.msra.mxu0 0
    %1793 = vmatprep.subr.bf16.mxu0 0
    %1794 = vmatpush1.bf16.msra.mxu0 0
    %1795 = vmatprep.mubr.bf16.mxu0 0
    %1796 = vmatmul.mubr.bf16.gmra.mrb[0].mxu0 %v1761
    %v1797 = vpop.f32.mrb[0].mxu0
    %v1798 = vadd.f32 0.0, %v1797
    %v1799 = vpop.f32.mrb[0].mxu0
    %v1800 = vpop.f32.mrb[0].mxu0
    %v1801 = vadd.f32 0.0, %v1800
    %v1802 = vpop.f32.mrb[0].mxu0
    %1803 = vdwg.mxu0
    %v1804 = vadd.f32 %v1626, %v1798
    %v1805 = vadd.f32 %v1627, %v1801
    %v1807 = vlaneseq
    %v1808 = vshrl.u32 %v1807, 7
    %v1809 = vsub.s32 0, %v1808
    %v1810 = vrot.slane %v379, %v1809
    %v1812 = vadd.f32 %v1804, %v1810
    %v1813 = vadd.f32 %v1805, %v1810
    %1814 = vst [vmem:[#allocation8] sm:$0xff] %v1812
    %1815 = vst [vmem:[#allocation8 + $0x8] sm:$0xff] %v1813
    %s1816 = scalar_lea.vmem %s1, 1
    %v1817 = vld [vmem:[%s1816] sm:$0x1]
    %v1819 = vlaneseq
    %v1820 = vshrl.u32 %v1819, 7
    %v1821 = vsub.s32 0, %v1820
    %v1822 = vrot.slane %v1817, %v1821
    %v1824 = vsub.f32 1.0, %v1822
    %v1825 = vmul.f32 %v1824, -1e+15
    %v1827 = vsel %vm389, %v360, 0
    %v1830 = vsel %vm389, %v361, 0
    %1832 = vmatprep.subr.bf16.mxu0 0
    %1833 = vmatpush1.bf16.xpose.msra.mxu0 %v1830
    %1834 = vmatprep.subr.bf16.mxu0 0
    %1835 = vmatpush1.bf16.xpose.msra.mxu0 0
    %1836 = vmatprep.subr.bf16.mxu0 0
    %1837 = vmatpush1.bf16.xpose.msra.mxu0 0
    %1838 = vmatprep.subr.bf16.mxu0 0
    %1839 = vmatpush1.bf16.xpose.msra.mxu0 0
    %1840 = vmatprep.subr.bf16.mxu0 0
    %1841 = vmatpush1.bf16.xpose.msra.mxu0 0
    %1842 = vmatprep.subr.bf16.mxu0 0
    %1843 = vmatpush1.bf16.xpose.msra.mxu0 0
    %1844 = vmatprep.subr.bf16.mxu0 0
    %1845 = vmatpush1.bf16.xpose.msra.mxu0 0
    %1846 = vmatprep.subr.bf16.mxu0 0
    %1847 = vmatpush1.bf16.xpose.msra.mxu0 0
    %1848 = vmatprep.subr.bf16.mxu0 0
    %1849 = vmatpush1.bf16.xpose.msra.mxu0 0
    %1850 = vmatprep.subr.bf16.mxu0 0
    %1851 = vmatpush1.bf16.xpose.msra.mxu0 0
    %1852 = vmatprep.subr.bf16.mxu0 0
    %1853 = vmatpush1.bf16.xpose.msra.mxu0 0
    %1854 = vmatprep.subr.bf16.mxu0 0
    %1855 = vmatpush1.bf16.xpose.msra.mxu0 0
    %1856 = vmatprep.subr.bf16.mxu0 0
    %1857 = vmatpush1.bf16.xpose.msra.mxu0 0
    %1858 = vmatprep.subr.bf16.mxu0 0
    %1859 = vmatpush1.bf16.xpose.msra.mxu0 0
    %1860 = vmatprep.subr.bf16.mxu0 0
    %1861 = vmatpush1.bf16.xpose.msra.mxu0 0
    %1862 = vmatprep.subr.bf16.mxu0 0
    %1863 = vmatpush1.bf16.xpose.msra.mxu0 0
    %1864 = vmatprep.mubr.bf16.mxu0 0
    %1865 = vmatmul.mubr.bf16.gmra.mrb[0].mxu0 %v1827
    %v1866 = vpop.f32.mrb[0].mxu0
    %v1867 = vadd.f32 0.0, %v1866
    %v1868 = vpop.f32.mrb[0].mxu0
    %v1869 = vpop.f32.mrb[0].mxu0
    %v1870 = vadd.f32 0.0, %v1869
    %v1871 = vpop.f32.mrb[0].mxu0
    %1872 = vdwg.mxu0
    %v1873 = vmul.f32 %v1867, %v1822
    %v1874 = vmul.f32 %v1870, %v1822
    %v1875 = vadd.f32 %v1873, %v1825
    %v1876 = vadd.f32 %v1874, %v1825
    %v1877 = vsel %vm389, %v1875, -inf
    %1878 = vmax.xlane.f32.xlu0 %v1877
    %v1879 = vpop.xlane.xlu0 %1878
    %v1880 = vsel %vm389, %v1876, -inf
    %1881 = vmax.xlane.f32.xlu0 %v1880
    %v1882 = vpop.xlane.xlu0 %1881
    %v1883 = vsub.f32 %v1875, %v1879
    %v1884 = vsub.f32 %v1876, %v1882
    %v1885 = vmul.f32 %v1883, 1.442695
    %v1886 = vpow.pop %v1885
    %v1887 = vmul.f32 %v1884, 1.442695
    %v1888 = vpow.pop %v1887
    %v1889 = vsel %vm389, %v1886, 0.0
    %1890 = vadd.xlane.f32.xlu0 %v1889
    %v1891 = vpop.xlane.xlu0 %1890
    %v1892 = vsel %vm389, %v1888, 0.0
    %1893 = vadd.xlane.f32.xlu0 %v1892
    %v1894 = vpop.xlane.xlu0 %1893
    %v1895 = vrcp.pop %v1891
    %v1896 = vmul.f32 %v1886, %v1895
    %v1897 = vrcp.pop %v1894
    %v1898 = vmul.f32 %v1888, %v1897
    %v1899 = vpack.c.bf16 %v1898, %v1896
    %v1901 = vsel %vm389, %v1899, 0
    %1903 = vmatprep.subr.bf16.mxu0 0
    %1904 = vmatpush1.bf16.msra.mxu0 %v362
    %1905 = vmatprep.subr.bf16.mxu0 0
    %1906 = vmatpush1.bf16.msra.mxu0 0
    %1907 = vmatprep.subr.bf16.mxu0 0
    %1908 = vmatpush1.bf16.msra.mxu0 0
    %1909 = vmatprep.subr.bf16.mxu0 0
    %1910 = vmatpush1.bf16.msra.mxu0 0
    %1911 = vmatprep.subr.bf16.mxu0 0
    %1912 = vmatpush1.bf16.msra.mxu0 0
    %1913 = vmatprep.subr.bf16.mxu0 0
    %1914 = vmatpush1.bf16.msra.mxu0 0
    %1915 = vmatprep.subr.bf16.mxu0 0
    %1916 = vmatpush1.bf16.msra.mxu0 0
    %1917 = vmatprep.subr.bf16.mxu0 0
    %1918 = vmatpush1.bf16.msra.mxu0 0
    %1919 = vmatprep.subr.bf16.mxu0 0
    %1920 = vmatpush1.bf16.msra.mxu0 0
    %1921 = vmatprep.subr.bf16.mxu0 0
    %1922 = vmatpush1.bf16.msra.mxu0 0
    %1923 = vmatprep.subr.bf16.mxu0 0
    %1924 = vmatpush1.bf16.msra.mxu0 0
    %1925 = vmatprep.subr.bf16.mxu0 0
    %1926 = vmatpush1.bf16.msra.mxu0 0
    %1927 = vmatprep.subr.bf16.mxu0 0
    %1928 = vmatpush1.bf16.msra.mxu0 0
    %1929 = vmatprep.subr.bf16.mxu0 0
    %1930 = vmatpush1.bf16.msra.mxu0 0
    %1931 = vmatprep.subr.bf16.mxu0 0
    %1932 = vmatpush1.bf16.msra.mxu0 0
    %1933 = vmatprep.subr.bf16.mxu0 0
    %1934 = vmatpush1.bf16.msra.mxu0 0
    %1935 = vmatprep.mubr.bf16.mxu0 0
    %1936 = vmatmul.mubr.bf16.gmra.mrb[0].mxu0 %v1901
    %v1937 = vpop.f32.mrb[0].mxu0
    %v1938 = vadd.f32 0.0, %v1937
    %v1939 = vpop.f32.mrb[0].mxu0
    %v1940 = vpop.f32.mrb[0].mxu0
    %v1941 = vadd.f32 0.0, %v1940
    %v1942 = vpop.f32.mrb[0].mxu0
    %1943 = vdwg.mxu0
    %v1944 = vpack.c.bf16 %v1941, %v1938
    %1946 = vrot.lane.b32.xlu0 %v360, 112
    %v1947 = vpop.permute.xlu0 %1946
    %1949 = vrot.lane.b32.xlu0 %v361, 112
    %v1950 = vpop.permute.xlu0 %1949
    %v1952 = vsel %vm389, %v1947, 0
    %v1955 = vsel %vm389, %v1950, 0
    %1957 = vmatprep.subr.bf16.mxu0 0
    %1958 = vmatpush1.bf16.xpose.msra.mxu0 %v1955
    %1959 = vmatprep.subr.bf16.mxu0 0
    %1960 = vmatpush1.bf16.xpose.msra.mxu0 0
    %1961 = vmatprep.subr.bf16.mxu0 0
    %1962 = vmatpush1.bf16.xpose.msra.mxu0 0
    %1963 = vmatprep.subr.bf16.mxu0 0
    %1964 = vmatpush1.bf16.xpose.msra.mxu0 0
    %1965 = vmatprep.subr.bf16.mxu0 0
    %1966 = vmatpush1.bf16.xpose.msra.mxu0 0
    %1967 = vmatprep.subr.bf16.mxu0 0
    %1968 = vmatpush1.bf16.xpose.msra.mxu0 0
    %1969 = vmatprep.subr.bf16.mxu0 0
    %1970 = vmatpush1.bf16.xpose.msra.mxu0 0
    %1971 = vmatprep.subr.bf16.mxu0 0
    %1972 = vmatpush1.bf16.xpose.msra.mxu0 0
    %1973 = vmatprep.subr.bf16.mxu0 0
    %1974 = vmatpush1.bf16.xpose.msra.mxu0 0
    %1975 = vmatprep.subr.bf16.mxu0 0
    %1976 = vmatpush1.bf16.xpose.msra.mxu0 0
    %1977 = vmatprep.subr.bf16.mxu0 0
    %1978 = vmatpush1.bf16.xpose.msra.mxu0 0
    %1979 = vmatprep.subr.bf16.mxu0 0
    %1980 = vmatpush1.bf16.xpose.msra.mxu0 0
    %1981 = vmatprep.subr.bf16.mxu0 0
    %1982 = vmatpush1.bf16.xpose.msra.mxu0 0
    %1983 = vmatprep.subr.bf16.mxu0 0
    %1984 = vmatpush1.bf16.xpose.msra.mxu0 0
    %1985 = vmatprep.subr.bf16.mxu0 0
    %1986 = vmatpush1.bf16.xpose.msra.mxu0 0
    %1987 = vmatprep.subr.bf16.mxu0 0
    %1988 = vmatpush1.bf16.xpose.msra.mxu0 0
    %1989 = vmatprep.mubr.bf16.mxu0 0
    %1990 = vmatmul.mubr.bf16.gmra.mrb[0].mxu0 %v1952
    %v1991 = vpop.f32.mrb[0].mxu0
    %v1992 = vadd.f32 0.0, %v1991
    %v1993 = vpop.f32.mrb[0].mxu0
    %v1994 = vpop.f32.mrb[0].mxu0
    %v1995 = vadd.f32 0.0, %v1994
    %v1996 = vpop.f32.mrb[0].mxu0
    %1997 = vdwg.mxu0
    %v1998 = vmul.f32 %v1992, %v1822
    %v1999 = vmul.f32 %v1995, %v1822
    %v2000 = vadd.f32 %v1998, %v1825
    %v2001 = vadd.f32 %v1999, %v1825
    %v2002 = vsel %vm389, %v2000, -inf
    %2003 = vmax.xlane.f32.xlu0 %v2002
    %v2004 = vpop.xlane.xlu0 %2003
    %v2005 = vsel %vm389, %v2001, -inf
    %2006 = vmax.xlane.f32.xlu0 %v2005
    %v2007 = vpop.xlane.xlu0 %2006
    %v2008 = vsub.f32 %v2000, %v2004
    %v2009 = vsub.f32 %v2001, %v2007
    %v2010 = vmul.f32 %v2008, 1.442695
    %v2011 = vpow.pop %v2010
    %v2012 = vmul.f32 %v2009, 1.442695
    %v2013 = vpow.pop %v2012
    %v2014 = vsel %vm389, %v2011, 0.0
    %2015 = vadd.xlane.f32.xlu0 %v2014
    %v2016 = vpop.xlane.xlu0 %2015
    %v2017 = vsel %vm389, %v2013, 0.0
    %2018 = vadd.xlane.f32.xlu0 %v2017
    %v2019 = vpop.xlane.xlu0 %2018
    %v2020 = vrcp.pop %v2016
    %v2021 = vmul.f32 %v2011, %v2020
    %v2022 = vrcp.pop %v2019
    %v2023 = vmul.f32 %v2013, %v2022
    %v2024 = vpack.c.bf16 %v2023, %v2021
    %2026 = vrot.lane.b32.xlu0 %v362, 112
    %v2027 = vpop.permute.xlu0 %2026
    %v2030 = vsel %vm389, %v2024, 0
    %2032 = vmatprep.subr.bf16.mxu0 0
    %2033 = vmatpush1.bf16.msra.mxu0 %v2027
    %2034 = vmatprep.subr.bf16.mxu0 0
    %2035 = vmatpush1.bf16.msra.mxu0 0
    %2036 = vmatprep.subr.bf16.mxu0 0
    %2037 = vmatpush1.bf16.msra.mxu0 0
    %2038 = vmatprep.subr.bf16.mxu0 0
    %2039 = vmatpush1.bf16.msra.mxu0 0
    %2040 = vmatprep.subr.bf16.mxu0 0
    %2041 = vmatpush1.bf16.msra.mxu0 0
    %2042 = vmatprep.subr.bf16.mxu0 0
    %2043 = vmatpush1.bf16.msra.mxu0 0
    %2044 = vmatprep.subr.bf16.mxu0 0
    %2045 = vmatpush1.bf16.msra.mxu0 0
    %2046 = vmatprep.subr.bf16.mxu0 0
    %2047 = vmatpush1.bf16.msra.mxu0 0
    %2048 = vmatprep.subr.bf16.mxu0 0
    %2049 = vmatpush1.bf16.msra.mxu0 0
    %2050 = vmatprep.subr.bf16.mxu0 0
    %2051 = vmatpush1.bf16.msra.mxu0 0
    %2052 = vmatprep.subr.bf16.mxu0 0
    %2053 = vmatpush1.bf16.msra.mxu0 0
    %2054 = vmatprep.subr.bf16.mxu0 0
    %2055 = vmatpush1.bf16.msra.mxu0 0
    %2056 = vmatprep.subr.bf16.mxu0 0
    %2057 = vmatpush1.bf16.msra.mxu0 0
    %2058 = vmatprep.subr.bf16.mxu0 0
    %2059 = vmatpush1.bf16.msra.mxu0 0
    %2060 = vmatprep.subr.bf16.mxu0 0
    %2061 = vmatpush1.bf16.msra.mxu0 0
    %2062 = vmatprep.subr.bf16.mxu0 0
    %2063 = vmatpush1.bf16.msra.mxu0 0
    %2064 = vmatprep.mubr.bf16.mxu0 0
    %2065 = vmatmul.mubr.bf16.gmra.mrb[0].mxu0 %v2030
    %v2066 = vpop.f32.mrb[0].mxu0
    %v2067 = vadd.f32 0.0, %v2066
    %v2068 = vpop.f32.mrb[0].mxu0
    %v2069 = vpop.f32.mrb[0].mxu0
    %v2070 = vadd.f32 0.0, %v2069
    %v2071 = vpop.f32.mrb[0].mxu0
    %2072 = vdwg.mxu0
    %v2073 = vpack.c.bf16 %v2070, %v2067
    %v2075 = vsel %vm389, %v2073, 0
    %2077 = vmatprep.subr.bf16.mxu0 0
    %2078 = vmatpush1.bf16.msra.mxu0 %v642
    %2079 = vmatprep.subr.bf16.mxu0 0
    %2080 = vmatpush1.bf16.msra.mxu0 0
    %2081 = vmatprep.subr.bf16.mxu0 0
    %2082 = vmatpush1.bf16.msra.mxu0 0
    %2083 = vmatprep.subr.bf16.mxu0 0
    %2084 = vmatpush1.bf16.msra.mxu0 0
    %2085 = vmatprep.subr.bf16.mxu0 0
    %2086 = vmatpush1.bf16.msra.mxu0 0
    %2087 = vmatprep.subr.bf16.mxu0 0
    %2088 = vmatpush1.bf16.msra.mxu0 0
    %2089 = vmatprep.subr.bf16.mxu0 0
    %2090 = vmatpush1.bf16.msra.mxu0 0
    %2091 = vmatprep.subr.bf16.mxu0 0
    %2092 = vmatpush1.bf16.msra.mxu0 0
    %2093 = vmatprep.subr.bf16.mxu0 0
    %2094 = vmatpush1.bf16.msra.mxu0 0
    %2095 = vmatprep.subr.bf16.mxu0 0
    %2096 = vmatpush1.bf16.msra.mxu0 0
    %2097 = vmatprep.subr.bf16.mxu0 0
    %2098 = vmatpush1.bf16.msra.mxu0 0
    %2099 = vmatprep.subr.bf16.mxu0 0
    %2100 = vmatpush1.bf16.msra.mxu0 0
    %2101 = vmatprep.subr.bf16.mxu0 0
    %2102 = vmatpush1.bf16.msra.mxu0 0
    %2103 = vmatprep.subr.bf16.mxu0 0
    %2104 = vmatpush1.bf16.msra.mxu0 0
    %2105 = vmatprep.subr.bf16.mxu0 0
    %2106 = vmatpush1.bf16.msra.mxu0 0
    %2107 = vmatprep.subr.bf16.mxu0 0
    %2108 = vmatpush1.bf16.msra.mxu0 0
    %2109 = vmatprep.mubr.bf16.mxu0 0
    %2110 = vmatmul.mubr.bf16.gmra.mrb[0].mxu0 %v2075
    %v2111 = vpop.f32.mrb[0].mxu0
    %v2112 = vadd.f32 0.0, %v2111
    %v2113 = vpop.f32.mrb[0].mxu0
    %v2114 = vpop.f32.mrb[0].mxu0
    %v2115 = vadd.f32 0.0, %v2114
    %v2116 = vpop.f32.mrb[0].mxu0
    %2117 = vdwg.mxu0
    %v2119 = vsel %vm389, %v1944, 0
    %2121 = vmatprep.subr.bf16.mxu0 0
    %2122 = vmatpush1.bf16.msra.mxu0 %v692
    %2123 = vmatprep.subr.bf16.mxu0 0
    %2124 = vmatpush1.bf16.msra.mxu0 0
    %2125 = vmatprep.subr.bf16.mxu0 0
    %2126 = vmatpush1.bf16.msra.mxu0 0
    %2127 = vmatprep.subr.bf16.mxu0 0
    %2128 = vmatpush1.bf16.msra.mxu0 0
    %2129 = vmatprep.subr.bf16.mxu0 0
    %2130 = vmatpush1.bf16.msra.mxu0 0
    %2131 = vmatprep.subr.bf16.mxu0 0
    %2132 = vmatpush1.bf16.msra.mxu0 0
    %2133 = vmatprep.subr.bf16.mxu0 0
    %2134 = vmatpush1.bf16.msra.mxu0 0
    %2135 = vmatprep.subr.bf16.mxu0 0
    %2136 = vmatpush1.bf16.msra.mxu0 0
    %2137 = vmatprep.subr.bf16.mxu0 0
    %2138 = vmatpush1.bf16.msra.mxu0 0
    %2139 = vmatprep.subr.bf16.mxu0 0
    %2140 = vmatpush1.bf16.msra.mxu0 0
    %2141 = vmatprep.subr.bf16.mxu0 0
    %2142 = vmatpush1.bf16.msra.mxu0 0
    %2143 = vmatprep.subr.bf16.mxu0 0
    %2144 = vmatpush1.bf16.msra.mxu0 0
    %2145 = vmatprep.subr.bf16.mxu0 0
    %2146 = vmatpush1.bf16.msra.mxu0 0
    %2147 = vmatprep.subr.bf16.mxu0 0
    %2148 = vmatpush1.bf16.msra.mxu0 0
    %2149 = vmatprep.subr.bf16.mxu0 0
    %2150 = vmatpush1.bf16.msra.mxu0 0
    %2151 = vmatprep.subr.bf16.mxu0 0
    %2152 = vmatpush1.bf16.msra.mxu0 0
    %2153 = vmatprep.mubr.bf16.mxu0 0
    %2154 = vmatmul.mubr.bf16.gmra.mrb[0].mxu0 %v2119
    %v2155 = vpop.f32.mrb[0].mxu0
    %v2156 = vadd.f32 %v2112, %v2155
    %v2157 = vpop.f32.mrb[0].mxu0
    %v2158 = vpop.f32.mrb[0].mxu0
    %v2159 = vadd.f32 %v2115, %v2158
    %v2160 = vpop.f32.mrb[0].mxu0
    %2161 = vdwg.mxu0
    %2162 = vrot.lane.b32.xlu0 %v360, 96
    %v2163 = vpop.permute.xlu0 %2162
    %2164 = vrot.lane.b32.xlu0 %v361, 96
    %v2165 = vpop.permute.xlu0 %2164
    %v2167 = vsel %vm389, %v2163, 0
    %v2170 = vsel %vm389, %v2165, 0
    %2172 = vmatprep.subr.bf16.mxu0 0
    %2173 = vmatpush1.bf16.xpose.msra.mxu0 %v2170
    %2174 = vmatprep.subr.bf16.mxu0 0
    %2175 = vmatpush1.bf16.xpose.msra.mxu0 0
    %2176 = vmatprep.subr.bf16.mxu0 0
    %2177 = vmatpush1.bf16.xpose.msra.mxu0 0
    %2178 = vmatprep.subr.bf16.mxu0 0
    %2179 = vmatpush1.bf16.xpose.msra.mxu0 0
    %2180 = vmatprep.subr.bf16.mxu0 0
    %2181 = vmatpush1.bf16.xpose.msra.mxu0 0
    %2182 = vmatprep.subr.bf16.mxu0 0
    %2183 = vmatpush1.bf16.xpose.msra.mxu0 0
    %2184 = vmatprep.subr.bf16.mxu0 0
    %2185 = vmatpush1.bf16.xpose.msra.mxu0 0
    %2186 = vmatprep.subr.bf16.mxu0 0
    %2187 = vmatpush1.bf16.xpose.msra.mxu0 0
    %2188 = vmatprep.subr.bf16.mxu0 0
    %2189 = vmatpush1.bf16.xpose.msra.mxu0 0
    %2190 = vmatprep.subr.bf16.mxu0 0
    %2191 = vmatpush1.bf16.xpose.msra.mxu0 0
    %2192 = vmatprep.subr.bf16.mxu0 0
    %2193 = vmatpush1.bf16.xpose.msra.mxu0 0
    %2194 = vmatprep.subr.bf16.mxu0 0
    %2195 = vmatpush1.bf16.xpose.msra.mxu0 0
    %2196 = vmatprep.subr.bf16.mxu0 0
    %2197 = vmatpush1.bf16.xpose.msra.mxu0 0
    %2198 = vmatprep.subr.bf16.mxu0 0
    %2199 = vmatpush1.bf16.xpose.msra.mxu0 0
    %2200 = vmatprep.subr.bf16.mxu0 0
    %2201 = vmatpush1.bf16.xpose.msra.mxu0 0
    %2202 = vmatprep.subr.bf16.mxu0 0
    %2203 = vmatpush1.bf16.xpose.msra.mxu0 0
    %2204 = vmatprep.mubr.bf16.mxu0 0
    %2205 = vmatmul.mubr.bf16.gmra.mrb[0].mxu0 %v2167
    %v2206 = vpop.f32.mrb[0].mxu0
    %v2207 = vadd.f32 0.0, %v2206
    %v2208 = vpop.f32.mrb[0].mxu0
    %v2209 = vpop.f32.mrb[0].mxu0
    %v2210 = vadd.f32 0.0, %v2209
    %v2211 = vpop.f32.mrb[0].mxu0
    %2212 = vdwg.mxu0
    %v2213 = vmul.f32 %v2207, %v1822
    %v2214 = vmul.f32 %v2210, %v1822
    %v2215 = vadd.f32 %v2213, %v1825
    %v2216 = vadd.f32 %v2214, %v1825
    %v2217 = vsel %vm389, %v2215, -inf
    %2218 = vmax.xlane.f32.xlu0 %v2217
    %v2219 = vpop.xlane.xlu0 %2218
    %v2220 = vsel %vm389, %v2216, -inf
    %2221 = vmax.xlane.f32.xlu0 %v2220
    %v2222 = vpop.xlane.xlu0 %2221
    %v2223 = vsub.f32 %v2215, %v2219
    %v2224 = vsub.f32 %v2216, %v2222
    %v2225 = vmul.f32 %v2223, 1.442695
    %v2226 = vpow.pop %v2225
    %v2227 = vmul.f32 %v2224, 1.442695
    %v2228 = vpow.pop %v2227
    %v2229 = vsel %vm389, %v2226, 0.0
    %2230 = vadd.xlane.f32.xlu0 %v2229
    %v2231 = vpop.xlane.xlu0 %2230
    %v2232 = vsel %vm389, %v2228, 0.0
    %2233 = vadd.xlane.f32.xlu0 %v2232
    %v2234 = vpop.xlane.xlu0 %2233
    %v2235 = vrcp.pop %v2231
    %v2236 = vmul.f32 %v2226, %v2235
    %v2237 = vrcp.pop %v2234
    %v2238 = vmul.f32 %v2228, %v2237
    %v2239 = vpack.c.bf16 %v2238, %v2236
    %2240 = vrot.lane.b32.xlu0 %v362, 96
    %v2241 = vpop.permute.xlu0 %2240
    %v2244 = vsel %vm389, %v2239, 0
    %2246 = vmatprep.subr.bf16.mxu0 0
    %2247 = vmatpush1.bf16.msra.mxu0 %v2241
    %2248 = vmatprep.subr.bf16.mxu0 0
    %2249 = vmatpush1.bf16.msra.mxu0 0
    %2250 = vmatprep.subr.bf16.mxu0 0
    %2251 = vmatpush1.bf16.msra.mxu0 0
    %2252 = vmatprep.subr.bf16.mxu0 0
    %2253 = vmatpush1.bf16.msra.mxu0 0
    %2254 = vmatprep.subr.bf16.mxu0 0
    %2255 = vmatpush1.bf16.msra.mxu0 0
    %2256 = vmatprep.subr.bf16.mxu0 0
    %2257 = vmatpush1.bf16.msra.mxu0 0
    %2258 = vmatprep.subr.bf16.mxu0 0
    %2259 = vmatpush1.bf16.msra.mxu0 0
    %2260 = vmatprep.subr.bf16.mxu0 0
    %2261 = vmatpush1.bf16.msra.mxu0 0
    %2262 = vmatprep.subr.bf16.mxu0 0
    %2263 = vmatpush1.bf16.msra.mxu0 0
    %2264 = vmatprep.subr.bf16.mxu0 0
    %2265 = vmatpush1.bf16.msra.mxu0 0
    %2266 = vmatprep.subr.bf16.mxu0 0
    %2267 = vmatpush1.bf16.msra.mxu0 0
    %2268 = vmatprep.subr.bf16.mxu0 0
    %2269 = vmatpush1.bf16.msra.mxu0 0
    %2270 = vmatprep.subr.bf16.mxu0 0
    %2271 = vmatpush1.bf16.msra.mxu0 0
    %2272 = vmatprep.subr.bf16.mxu0 0
    %2273 = vmatpush1.bf16.msra.mxu0 0
    %2274 = vmatprep.subr.bf16.mxu0 0
    %2275 = vmatpush1.bf16.msra.mxu0 0
    %2276 = vmatprep.subr.bf16.mxu0 0
    %2277 = vmatpush1.bf16.msra.mxu0 0
    %2278 = vmatprep.mubr.bf16.mxu0 0
    %2279 = vmatmul.mubr.bf16.gmra.mrb[0].mxu0 %v2244
    %v2280 = vpop.f32.mrb[0].mxu0
    %v2281 = vadd.f32 0.0, %v2280
    %v2282 = vpop.f32.mrb[0].mxu0
    %v2283 = vpop.f32.mrb[0].mxu0
    %v2284 = vadd.f32 0.0, %v2283
    %v2285 = vpop.f32.mrb[0].mxu0
    %2286 = vdwg.mxu0
    %v2287 = vpack.c.bf16 %v2284, %v2281
    %v2289 = vsel %vm389, %v2287, 0
    %2291 = vmatprep.subr.bf16.mxu0 0
    %2292 = vmatpush1.bf16.msra.mxu0 %v868
    %2293 = vmatprep.subr.bf16.mxu0 0
    %2294 = vmatpush1.bf16.msra.mxu0 0
    %2295 = vmatprep.subr.bf16.mxu0 0
    %2296 = vmatpush1.bf16.msra.mxu0 0
    %2297 = vmatprep.subr.bf16.mxu0 0
    %2298 = vmatpush1.bf16.msra.mxu0 0
    %2299 = vmatprep.subr.bf16.mxu0 0
    %2300 = vmatpush1.bf16.msra.mxu0 0
    %2301 = vmatprep.subr.bf16.mxu0 0
    %2302 = vmatpush1.bf16.msra.mxu0 0
    %2303 = vmatprep.subr.bf16.mxu0 0
    %2304 = vmatpush1.bf16.msra.mxu0 0
    %2305 = vmatprep.subr.bf16.mxu0 0
    %2306 = vmatpush1.bf16.msra.mxu0 0
    %2307 = vmatprep.subr.bf16.mxu0 0
    %2308 = vmatpush1.bf16.msra.mxu0 0
    %2309 = vmatprep.subr.bf16.mxu0 0
    %2310 = vmatpush1.bf16.msra.mxu0 0
    %2311 = vmatprep.subr.bf16.mxu0 0
    %2312 = vmatpush1.bf16.msra.mxu0 0
    %2313 = vmatprep.subr.bf16.mxu0 0
    %2314 = vmatpush1.bf16.msra.mxu0 0
    %2315 = vmatprep.subr.bf16.mxu0 0
    %2316 = vmatpush1.bf16.msra.mxu0 0
    %2317 = vmatprep.subr.bf16.mxu0 0
    %2318 = vmatpush1.bf16.msra.mxu0 0
    %2319 = vmatprep.subr.bf16.mxu0 0
    %2320 = vmatpush1.bf16.msra.mxu0 0
    %2321 = vmatprep.subr.bf16.mxu0 0
    %2322 = vmatpush1.bf16.msra.mxu0 0
    %2323 = vmatprep.mubr.bf16.mxu0 0
    %2324 = vmatmul.mubr.bf16.gmra.mrb[0].mxu0 %v2289
    %v2325 = vpop.f32.mrb[0].mxu0
    %v2326 = vadd.f32 0.0, %v2325
    %v2327 = vpop.f32.mrb[0].mxu0
    %v2328 = vpop.f32.mrb[0].mxu0
    %v2329 = vadd.f32 0.0, %v2328
    %v2330 = vpop.f32.mrb[0].mxu0
    %2331 = vdwg.mxu0
    %v2332 = vadd.f32 %v2156, %v2326
    %v2333 = vadd.f32 %v2159, %v2329
    %2334 = vrot.lane.b32.xlu0 %v360, 80
    %v2335 = vpop.permute.xlu0 %2334
    %2336 = vrot.lane.b32.xlu0 %v361, 80
    %v2337 = vpop.permute.xlu0 %2336
    %v2339 = vsel %vm389, %v2335, 0
    %v2342 = vsel %vm389, %v2337, 0
    %2344 = vmatprep.subr.bf16.mxu0 0
    %2345 = vmatpush1.bf16.xpose.msra.mxu0 %v2342
    %2346 = vmatprep.subr.bf16.mxu0 0
    %2347 = vmatpush1.bf16.xpose.msra.mxu0 0
    %2348 = vmatprep.subr.bf16.mxu0 0
    %2349 = vmatpush1.bf16.xpose.msra.mxu0 0
    %2350 = vmatprep.subr.bf16.mxu0 0
    %2351 = vmatpush1.bf16.xpose.msra.mxu0 0
    %2352 = vmatprep.subr.bf16.mxu0 0
    %2353 = vmatpush1.bf16.xpose.msra.mxu0 0
    %2354 = vmatprep.subr.bf16.mxu0 0
    %2355 = vmatpush1.bf16.xpose.msra.mxu0 0
    %2356 = vmatprep.subr.bf16.mxu0 0
    %2357 = vmatpush1.bf16.xpose.msra.mxu0 0
    %2358 = vmatprep.subr.bf16.mxu0 0
    %2359 = vmatpush1.bf16.xpose.msra.mxu0 0
    %2360 = vmatprep.subr.bf16.mxu0 0
    %2361 = vmatpush1.bf16.xpose.msra.mxu0 0
    %2362 = vmatprep.subr.bf16.mxu0 0
    %2363 = vmatpush1.bf16.xpose.msra.mxu0 0
    %2364 = vmatprep.subr.bf16.mxu0 0
    %2365 = vmatpush1.bf16.xpose.msra.mxu0 0
    %2366 = vmatprep.subr.bf16.mxu0 0
    %2367 = vmatpush1.bf16.xpose.msra.mxu0 0
    %2368 = vmatprep.subr.bf16.mxu0 0
    %2369 = vmatpush1.bf16.xpose.msra.mxu0 0
    %2370 = vmatprep.subr.bf16.mxu0 0
    %2371 = vmatpush1.bf16.xpose.msra.mxu0 0
    %2372 = vmatprep.subr.bf16.mxu0 0
    %2373 = vmatpush1.bf16.xpose.msra.mxu0 0
    %2374 = vmatprep.subr.bf16.mxu0 0
    %2375 = vmatpush1.bf16.xpose.msra.mxu0 0
    %2376 = vmatprep.mubr.bf16.mxu0 0
    %2377 = vmatmul.mubr.bf16.gmra.mrb[0].mxu0 %v2339
    %v2378 = vpop.f32.mrb[0].mxu0
    %v2379 = vadd.f32 0.0, %v2378
    %v2380 = vpop.f32.mrb[0].mxu0
    %v2381 = vpop.f32.mrb[0].mxu0
    %v2382 = vadd.f32 0.0, %v2381
    %v2383 = vpop.f32.mrb[0].mxu0
    %2384 = vdwg.mxu0
    %v2385 = vmul.f32 %v2379, %v1822
    %v2386 = vmul.f32 %v2382, %v1822
    %v2387 = vadd.f32 %v2385, %v1825
    %v2388 = vadd.f32 %v2386, %v1825
    %v2389 = vsel %vm389, %v2387, -inf
    %2390 = vmax.xlane.f32.xlu0 %v2389
    %v2391 = vpop.xlane.xlu0 %2390
    %v2392 = vsel %vm389, %v2388, -inf
    %2393 = vmax.xlane.f32.xlu0 %v2392
    %v2394 = vpop.xlane.xlu0 %2393
    %v2395 = vsub.f32 %v2387, %v2391
    %v2396 = vsub.f32 %v2388, %v2394
    %v2397 = vmul.f32 %v2395, 1.442695
    %v2398 = vpow.pop %v2397
    %v2399 = vmul.f32 %v2396, 1.442695
    %v2400 = vpow.pop %v2399
    %v2401 = vsel %vm389, %v2398, 0.0
    %2402 = vadd.xlane.f32.xlu0 %v2401
    %v2403 = vpop.xlane.xlu0 %2402
    %v2404 = vsel %vm389, %v2400, 0.0
    %2405 = vadd.xlane.f32.xlu0 %v2404
    %v2406 = vpop.xlane.xlu0 %2405
    %v2407 = vrcp.pop %v2403
    %v2408 = vmul.f32 %v2398, %v2407
    %v2409 = vrcp.pop %v2406
    %v2410 = vmul.f32 %v2400, %v2409
    %v2411 = vpack.c.bf16 %v2410, %v2408
    %2412 = vrot.lane.b32.xlu0 %v362, 80
    %v2413 = vpop.permute.xlu0 %2412
    %v2416 = vsel %vm389, %v2411, 0
    %2418 = vmatprep.subr.bf16.mxu0 0
    %2419 = vmatpush1.bf16.msra.mxu0 %v2413
    %2420 = vmatprep.subr.bf16.mxu0 0
    %2421 = vmatpush1.bf16.msra.mxu0 0
    %2422 = vmatprep.subr.bf16.mxu0 0
    %2423 = vmatpush1.bf16.msra.mxu0 0
    %2424 = vmatprep.subr.bf16.mxu0 0
    %2425 = vmatpush1.bf16.msra.mxu0 0
    %2426 = vmatprep.subr.bf16.mxu0 0
    %2427 = vmatpush1.bf16.msra.mxu0 0
    %2428 = vmatprep.subr.bf16.mxu0 0
    %2429 = vmatpush1.bf16.msra.mxu0 0
    %2430 = vmatprep.subr.bf16.mxu0 0
    %2431 = vmatpush1.bf16.msra.mxu0 0
    %2432 = vmatprep.subr.bf16.mxu0 0
    %2433 = vmatpush1.bf16.msra.mxu0 0
    %2434 = vmatprep.subr.bf16.mxu0 0
    %2435 = vmatpush1.bf16.msra.mxu0 0
    %2436 = vmatprep.subr.bf16.mxu0 0
    %2437 = vmatpush1.bf16.msra.mxu0 0
    %2438 = vmatprep.subr.bf16.mxu0 0
    %2439 = vmatpush1.bf16.msra.mxu0 0
    %2440 = vmatprep.subr.bf16.mxu0 0
    %2441 = vmatpush1.bf16.msra.mxu0 0
    %2442 = vmatprep.subr.bf16.mxu0 0
    %2443 = vmatpush1.bf16.msra.mxu0 0
    %2444 = vmatprep.subr.bf16.mxu0 0
    %2445 = vmatpush1.bf16.msra.mxu0 0
    %2446 = vmatprep.subr.bf16.mxu0 0
    %2447 = vmatpush1.bf16.msra.mxu0 0
    %2448 = vmatprep.subr.bf16.mxu0 0
    %2449 = vmatpush1.bf16.msra.mxu0 0
    %2450 = vmatprep.mubr.bf16.mxu0 0
    %2451 = vmatmul.mubr.bf16.gmra.mrb[0].mxu0 %v2416
    %v2452 = vpop.f32.mrb[0].mxu0
    %v2453 = vadd.f32 0.0, %v2452
    %v2454 = vpop.f32.mrb[0].mxu0
    %v2455 = vpop.f32.mrb[0].mxu0
    %v2456 = vadd.f32 0.0, %v2455
    %v2457 = vpop.f32.mrb[0].mxu0
    %2458 = vdwg.mxu0
    %v2459 = vpack.c.bf16 %v2456, %v2453
    %v2461 = vsel %vm389, %v2459, 0
    %2463 = vmatprep.subr.bf16.mxu0 0
    %2464 = vmatpush1.bf16.msra.mxu0 %v1046
    %2465 = vmatprep.subr.bf16.mxu0 0
    %2466 = vmatpush1.bf16.msra.mxu0 0
    %2467 = vmatprep.subr.bf16.mxu0 0
    %2468 = vmatpush1.bf16.msra.mxu0 0
    %2469 = vmatprep.subr.bf16.mxu0 0
    %2470 = vmatpush1.bf16.msra.mxu0 0
    %2471 = vmatprep.subr.bf16.mxu0 0
    %2472 = vmatpush1.bf16.msra.mxu0 0
    %2473 = vmatprep.subr.bf16.mxu0 0
    %2474 = vmatpush1.bf16.msra.mxu0 0
    %2475 = vmatprep.subr.bf16.mxu0 0
    %2476 = vmatpush1.bf16.msra.mxu0 0
    %2477 = vmatprep.subr.bf16.mxu0 0
    %2478 = vmatpush1.bf16.msra.mxu0 0
    %2479 = vmatprep.subr.bf16.mxu0 0
    %2480 = vmatpush1.bf16.msra.mxu0 0
    %2481 = vmatprep.subr.bf16.mxu0 0
    %2482 = vmatpush1.bf16.msra.mxu0 0
    %2483 = vmatprep.subr.bf16.mxu0 0
    %2484 = vmatpush1.bf16.msra.mxu0 0
    %2485 = vmatprep.subr.bf16.mxu0 0
    %2486 = vmatpush1.bf16.msra.mxu0 0
    %2487 = vmatprep.subr.bf16.mxu0 0
    %2488 = vmatpush1.bf16.msra.mxu0 0
    %2489 = vmatprep.subr.bf16.mxu0 0
    %2490 = vmatpush1.bf16.msra.mxu0 0
    %2491 = vmatprep.subr.bf16.mxu0 0
    %2492 = vmatpush1.bf16.msra.mxu0 0
    %2493 = vmatprep.subr.bf16.mxu0 0
    %2494 = vmatpush1.bf16.msra.mxu0 0
    %2495 = vmatprep.mubr.bf16.mxu0 0
    %2496 = vmatmul.mubr.bf16.gmra.mrb[0].mxu0 %v2461
    %v2497 = vpop.f32.mrb[0].mxu0
    %v2498 = vadd.f32 0.0, %v2497
    %v2499 = vpop.f32.mrb[0].mxu0
    %v2500 = vpop.f32.mrb[0].mxu0
    %v2501 = vadd.f32 0.0, %v2500
    %v2502 = vpop.f32.mrb[0].mxu0
    %2503 = vdwg.mxu0
    %v2504 = vadd.f32 %v2332, %v2498
    %v2505 = vadd.f32 %v2333, %v2501
    %2506 = vrot.lane.b32.xlu0 %v360, 64
    %v2507 = vpop.permute.xlu0 %2506
    %2508 = vrot.lane.b32.xlu0 %v361, 64
    %v2509 = vpop.permute.xlu0 %2508
    %v2511 = vsel %vm389, %v2507, 0
    %v2514 = vsel %vm389, %v2509, 0
    %2516 = vmatprep.subr.bf16.mxu0 0
    %2517 = vmatpush1.bf16.xpose.msra.mxu0 %v2514
    %2518 = vmatprep.subr.bf16.mxu0 0
    %2519 = vmatpush1.bf16.xpose.msra.mxu0 0
    %2520 = vmatprep.subr.bf16.mxu0 0
    %2521 = vmatpush1.bf16.xpose.msra.mxu0 0
    %2522 = vmatprep.subr.bf16.mxu0 0
    %2523 = vmatpush1.bf16.xpose.msra.mxu0 0
    %2524 = vmatprep.subr.bf16.mxu0 0
    %2525 = vmatpush1.bf16.xpose.msra.mxu0 0
    %2526 = vmatprep.subr.bf16.mxu0 0
    %2527 = vmatpush1.bf16.xpose.msra.mxu0 0
    %2528 = vmatprep.subr.bf16.mxu0 0
    %2529 = vmatpush1.bf16.xpose.msra.mxu0 0
    %2530 = vmatprep.subr.bf16.mxu0 0
    %2531 = vmatpush1.bf16.xpose.msra.mxu0 0
    %2532 = vmatprep.subr.bf16.mxu0 0
    %2533 = vmatpush1.bf16.xpose.msra.mxu0 0
    %2534 = vmatprep.subr.bf16.mxu0 0
    %2535 = vmatpush1.bf16.xpose.msra.mxu0 0
    %2536 = vmatprep.subr.bf16.mxu0 0
    %2537 = vmatpush1.bf16.xpose.msra.mxu0 0
    %2538 = vmatprep.subr.bf16.mxu0 0
    %2539 = vmatpush1.bf16.xpose.msra.mxu0 0
    %2540 = vmatprep.subr.bf16.mxu0 0
    %2541 = vmatpush1.bf16.xpose.msra.mxu0 0
    %2542 = vmatprep.subr.bf16.mxu0 0
    %2543 = vmatpush1.bf16.xpose.msra.mxu0 0
    %2544 = vmatprep.subr.bf16.mxu0 0
    %2545 = vmatpush1.bf16.xpose.msra.mxu0 0
    %2546 = vmatprep.subr.bf16.mxu0 0
    %2547 = vmatpush1.bf16.xpose.msra.mxu0 0
    %2548 = vmatprep.mubr.bf16.mxu0 0
    %2549 = vmatmul.mubr.bf16.gmra.mrb[0].mxu0 %v2511
    %v2550 = vpop.f32.mrb[0].mxu0
    %v2551 = vadd.f32 0.0, %v2550
    %v2552 = vpop.f32.mrb[0].mxu0
    %v2553 = vpop.f32.mrb[0].mxu0
    %v2554 = vadd.f32 0.0, %v2553
    %v2555 = vpop.f32.mrb[0].mxu0
    %2556 = vdwg.mxu0
    %v2557 = vmul.f32 %v2551, %v1822
    %v2558 = vmul.f32 %v2554, %v1822
    %v2559 = vadd.f32 %v2557, %v1825
    %v2560 = vadd.f32 %v2558, %v1825
    %v2561 = vsel %vm389, %v2559, -inf
    %2562 = vmax.xlane.f32.xlu0 %v2561
    %v2563 = vpop.xlane.xlu0 %2562
    %v2564 = vsel %vm389, %v2560, -inf
    %2565 = vmax.xlane.f32.xlu0 %v2564
    %v2566 = vpop.xlane.xlu0 %2565
    %v2567 = vsub.f32 %v2559, %v2563
    %v2568 = vsub.f32 %v2560, %v2566
    %v2569 = vmul.f32 %v2567, 1.442695
    %v2570 = vpow.pop %v2569
    %v2571 = vmul.f32 %v2568, 1.442695
    %v2572 = vpow.pop %v2571
    %v2573 = vsel %vm389, %v2570, 0.0
    %2574 = vadd.xlane.f32.xlu0 %v2573
    %v2575 = vpop.xlane.xlu0 %2574
    %v2576 = vsel %vm389, %v2572, 0.0
    %2577 = vadd.xlane.f32.xlu0 %v2576
    %v2578 = vpop.xlane.xlu0 %2577
    %v2579 = vrcp.pop %v2575
    %v2580 = vmul.f32 %v2570, %v2579
    %v2581 = vrcp.pop %v2578
    %v2582 = vmul.f32 %v2572, %v2581
    %v2583 = vpack.c.bf16 %v2582, %v2580
    %2584 = vrot.lane.b32.xlu0 %v362, 64
    %v2585 = vpop.permute.xlu0 %2584
    %v2588 = vsel %vm389, %v2583, 0
    %2590 = vmatprep.subr.bf16.mxu0 0
    %2591 = vmatpush1.bf16.msra.mxu0 %v2585
    %2592 = vmatprep.subr.bf16.mxu0 0
    %2593 = vmatpush1.bf16.msra.mxu0 0
    %2594 = vmatprep.subr.bf16.mxu0 0
    %2595 = vmatpush1.bf16.msra.mxu0 0
    %2596 = vmatprep.subr.bf16.mxu0 0
    %2597 = vmatpush1.bf16.msra.mxu0 0
    %2598 = vmatprep.subr.bf16.mxu0 0
    %2599 = vmatpush1.bf16.msra.mxu0 0
    %2600 = vmatprep.subr.bf16.mxu0 0
    %2601 = vmatpush1.bf16.msra.mxu0 0
    %2602 = vmatprep.subr.bf16.mxu0 0
    %2603 = vmatpush1.bf16.msra.mxu0 0
    %2604 = vmatprep.subr.bf16.mxu0 0
    %2605 = vmatpush1.bf16.msra.mxu0 0
    %2606 = vmatprep.subr.bf16.mxu0 0
    %2607 = vmatpush1.bf16.msra.mxu0 0
    %2608 = vmatprep.subr.bf16.mxu0 0
    %2609 = vmatpush1.bf16.msra.mxu0 0
    %2610 = vmatprep.subr.bf16.mxu0 0
    %2611 = vmatpush1.bf16.msra.mxu0 0
    %2612 = vmatprep.subr.bf16.mxu0 0
    %2613 = vmatpush1.bf16.msra.mxu0 0
    %2614 = vmatprep.subr.bf16.mxu0 0
    %2615 = vmatpush1.bf16.msra.mxu0 0
    %2616 = vmatprep.subr.bf16.mxu0 0
    %2617 = vmatpush1.bf16.msra.mxu0 0
    %2618 = vmatprep.subr.bf16.mxu0 0
    %2619 = vmatpush1.bf16.msra.mxu0 0
    %2620 = vmatprep.subr.bf16.mxu0 0
    %2621 = vmatpush1.bf16.msra.mxu0 0
    %2622 = vmatprep.mubr.bf16.mxu0 0
    %2623 = vmatmul.mubr.bf16.gmra.mrb[0].mxu0 %v2588
    %v2624 = vpop.f32.mrb[0].mxu0
    %v2625 = vadd.f32 0.0, %v2624
    %v2626 = vpop.f32.mrb[0].mxu0
    %v2627 = vpop.f32.mrb[0].mxu0
    %v2628 = vadd.f32 0.0, %v2627
    %v2629 = vpop.f32.mrb[0].mxu0
    %2630 = vdwg.mxu0
    %v2631 = vpack.c.bf16 %v2628, %v2625
    %v2633 = vsel %vm389, %v2631, 0
    %2635 = vmatprep.subr.bf16.mxu0 0
    %2636 = vmatpush1.bf16.msra.mxu0 %v1224
    %2637 = vmatprep.subr.bf16.mxu0 0
    %2638 = vmatpush1.bf16.msra.mxu0 0
    %2639 = vmatprep.subr.bf16.mxu0 0
    %2640 = vmatpush1.bf16.msra.mxu0 0
    %2641 = vmatprep.subr.bf16.mxu0 0
    %2642 = vmatpush1.bf16.msra.mxu0 0
    %2643 = vmatprep.subr.bf16.mxu0 0
    %2644 = vmatpush1.bf16.msra.mxu0 0
    %2645 = vmatprep.subr.bf16.mxu0 0
    %2646 = vmatpush1.bf16.msra.mxu0 0
    %2647 = vmatprep.subr.bf16.mxu0 0
    %2648 = vmatpush1.bf16.msra.mxu0 0
    %2649 = vmatprep.subr.bf16.mxu0 0
    %2650 = vmatpush1.bf16.msra.mxu0 0
    %2651 = vmatprep.subr.bf16.mxu0 0
    %2652 = vmatpush1.bf16.msra.mxu0 0
    %2653 = vmatprep.subr.bf16.mxu0 0
    %2654 = vmatpush1.bf16.msra.mxu0 0
    %2655 = vmatprep.subr.bf16.mxu0 0
    %2656 = vmatpush1.bf16.msra.mxu0 0
    %2657 = vmatprep.subr.bf16.mxu0 0
    %2658 = vmatpush1.bf16.msra.mxu0 0
    %2659 = vmatprep.subr.bf16.mxu0 0
    %2660 = vmatpush1.bf16.msra.mxu0 0
    %2661 = vmatprep.subr.bf16.mxu0 0
    %2662 = vmatpush1.bf16.msra.mxu0 0
    %2663 = vmatprep.subr.bf16.mxu0 0
    %2664 = vmatpush1.bf16.msra.mxu0 0
    %2665 = vmatprep.subr.bf16.mxu0 0
    %2666 = vmatpush1.bf16.msra.mxu0 0
    %2667 = vmatprep.mubr.bf16.mxu0 0
    %2668 = vmatmul.mubr.bf16.gmra.mrb[0].mxu0 %v2633
    %v2669 = vpop.f32.mrb[0].mxu0
    %v2670 = vadd.f32 0.0, %v2669
    %v2671 = vpop.f32.mrb[0].mxu0
    %v2672 = vpop.f32.mrb[0].mxu0
    %v2673 = vadd.f32 0.0, %v2672
    %v2674 = vpop.f32.mrb[0].mxu0
    %2675 = vdwg.mxu0
    %v2676 = vadd.f32 %v2504, %v2670
    %v2677 = vadd.f32 %v2505, %v2673
    %2678 = vrot.lane.b32.xlu0 %v360, 48
    %v2679 = vpop.permute.xlu0 %2678
    %2680 = vrot.lane.b32.xlu0 %v361, 48
    %v2681 = vpop.permute.xlu0 %2680
    %v2683 = vsel %vm389, %v2679, 0
    %v2686 = vsel %vm389, %v2681, 0
    %2688 = vmatprep.subr.bf16.mxu0 0
    %2689 = vmatpush1.bf16.xpose.msra.mxu0 %v2686
    %2690 = vmatprep.subr.bf16.mxu0 0
    %2691 = vmatpush1.bf16.xpose.msra.mxu0 0
    %2692 = vmatprep.subr.bf16.mxu0 0
    %2693 = vmatpush1.bf16.xpose.msra.mxu0 0
    %2694 = vmatprep.subr.bf16.mxu0 0
    %2695 = vmatpush1.bf16.xpose.msra.mxu0 0
    %2696 = vmatprep.subr.bf16.mxu0 0
    %2697 = vmatpush1.bf16.xpose.msra.mxu0 0
    %2698 = vmatprep.subr.bf16.mxu0 0
    %2699 = vmatpush1.bf16.xpose.msra.mxu0 0
    %2700 = vmatprep.subr.bf16.mxu0 0
    %2701 = vmatpush1.bf16.xpose.msra.mxu0 0
    %2702 = vmatprep.subr.bf16.mxu0 0
    %2703 = vmatpush1.bf16.xpose.msra.mxu0 0
    %2704 = vmatprep.subr.bf16.mxu0 0
    %2705 = vmatpush1.bf16.xpose.msra.mxu0 0
    %2706 = vmatprep.subr.bf16.mxu0 0
    %2707 = vmatpush1.bf16.xpose.msra.mxu0 0
    %2708 = vmatprep.subr.bf16.mxu0 0
    %2709 = vmatpush1.bf16.xpose.msra.mxu0 0
    %2710 = vmatprep.subr.bf16.mxu0 0
    %2711 = vmatpush1.bf16.xpose.msra.mxu0 0
    %2712 = vmatprep.subr.bf16.mxu0 0
    %2713 = vmatpush1.bf16.xpose.msra.mxu0 0
    %2714 = vmatprep.subr.bf16.mxu0 0
    %2715 = vmatpush1.bf16.xpose.msra.mxu0 0
    %2716 = vmatprep.subr.bf16.mxu0 0
    %2717 = vmatpush1.bf16.xpose.msra.mxu0 0
    %2718 = vmatprep.subr.bf16.mxu0 0
    %2719 = vmatpush1.bf16.xpose.msra.mxu0 0
    %2720 = vmatprep.mubr.bf16.mxu0 0
    %2721 = vmatmul.mubr.bf16.gmra.mrb[0].mxu0 %v2683
    %v2722 = vpop.f32.mrb[0].mxu0
    %v2723 = vadd.f32 0.0, %v2722
    %v2724 = vpop.f32.mrb[0].mxu0
    %v2725 = vpop.f32.mrb[0].mxu0
    %v2726 = vadd.f32 0.0, %v2725
    %v2727 = vpop.f32.mrb[0].mxu0
    %2728 = vdwg.mxu0
    %v2729 = vmul.f32 %v2723, %v1822
    %v2730 = vmul.f32 %v2726, %v1822
    %v2731 = vadd.f32 %v2729, %v1825
    %v2732 = vadd.f32 %v2730, %v1825
    %v2733 = vsel %vm389, %v2731, -inf
    %2734 = vmax.xlane.f32.xlu0 %v2733
    %v2735 = vpop.xlane.xlu0 %2734
    %v2736 = vsel %vm389, %v2732, -inf
    %2737 = vmax.xlane.f32.xlu0 %v2736
    %v2738 = vpop.xlane.xlu0 %2737
    %v2739 = vsub.f32 %v2731, %v2735
    %v2740 = vsub.f32 %v2732, %v2738
    %v2741 = vmul.f32 %v2739, 1.442695
    %v2742 = vpow.pop %v2741
    %v2743 = vmul.f32 %v2740, 1.442695
    %v2744 = vpow.pop %v2743
    %v2745 = vsel %vm389, %v2742, 0.0
    %2746 = vadd.xlane.f32.xlu0 %v2745
    %v2747 = vpop.xlane.xlu0 %2746
    %v2748 = vsel %vm389, %v2744, 0.0
    %2749 = vadd.xlane.f32.xlu0 %v2748
    %v2750 = vpop.xlane.xlu0 %2749
    %v2751 = vrcp.pop %v2747
    %v2752 = vmul.f32 %v2742, %v2751
    %v2753 = vrcp.pop %v2750
    %v2754 = vmul.f32 %v2744, %v2753
    %v2755 = vpack.c.bf16 %v2754, %v2752
    %2756 = vrot.lane.b32.xlu0 %v362, 48
    %v2757 = vpop.permute.xlu0 %2756
    %v2760 = vsel %vm389, %v2755, 0
    %2762 = vmatprep.subr.bf16.mxu0 0
    %2763 = vmatpush1.bf16.msra.mxu0 %v2757
    %2764 = vmatprep.subr.bf16.mxu0 0
    %2765 = vmatpush1.bf16.msra.mxu0 0
    %2766 = vmatprep.subr.bf16.mxu0 0
    %2767 = vmatpush1.bf16.msra.mxu0 0
    %2768 = vmatprep.subr.bf16.mxu0 0
    %2769 = vmatpush1.bf16.msra.mxu0 0
    %2770 = vmatprep.subr.bf16.mxu0 0
    %2771 = vmatpush1.bf16.msra.mxu0 0
    %2772 = vmatprep.subr.bf16.mxu0 0
    %2773 = vmatpush1.bf16.msra.mxu0 0
    %2774 = vmatprep.subr.bf16.mxu0 0
    %2775 = vmatpush1.bf16.msra.mxu0 0
    %2776 = vmatprep.subr.bf16.mxu0 0
    %2777 = vmatpush1.bf16.msra.mxu0 0
    %2778 = vmatprep.subr.bf16.mxu0 0
    %2779 = vmatpush1.bf16.msra.mxu0 0
    %2780 = vmatprep.subr.bf16.mxu0 0
    %2781 = vmatpush1.bf16.msra.mxu0 0
    %2782 = vmatprep.subr.bf16.mxu0 0
    %2783 = vmatpush1.bf16.msra.mxu0 0
    %2784 = vmatprep.subr.bf16.mxu0 0
    %2785 = vmatpush1.bf16.msra.mxu0 0
    %2786 = vmatprep.subr.bf16.mxu0 0
    %2787 = vmatpush1.bf16.msra.mxu0 0
    %2788 = vmatprep.subr.bf16.mxu0 0
    %2789 = vmatpush1.bf16.msra.mxu0 0
    %2790 = vmatprep.subr.bf16.mxu0 0
    %2791 = vmatpush1.bf16.msra.mxu0 0
    %2792 = vmatprep.subr.bf16.mxu0 0
    %2793 = vmatpush1.bf16.msra.mxu0 0
    %2794 = vmatprep.mubr.bf16.mxu0 0
    %2795 = vmatmul.mubr.bf16.gmra.mrb[0].mxu0 %v2760
    %v2796 = vpop.f32.mrb[0].mxu0
    %v2797 = vadd.f32 0.0, %v2796
    %v2798 = vpop.f32.mrb[0].mxu0
    %v2799 = vpop.f32.mrb[0].mxu0
    %v2800 = vadd.f32 0.0, %v2799
    %v2801 = vpop.f32.mrb[0].mxu0
    %2802 = vdwg.mxu0
    %v2803 = vpack.c.bf16 %v2800, %v2797
    %v2805 = vsel %vm389, %v2803, 0
    %2807 = vmatprep.subr.bf16.mxu0 0
    %2808 = vmatpush1.bf16.msra.mxu0 %v1402
    %2809 = vmatprep.subr.bf16.mxu0 0
    %2810 = vmatpush1.bf16.msra.mxu0 0
    %2811 = vmatprep.subr.bf16.mxu0 0
    %2812 = vmatpush1.bf16.msra.mxu0 0
    %2813 = vmatprep.subr.bf16.mxu0 0
    %2814 = vmatpush1.bf16.msra.mxu0 0
    %2815 = vmatprep.subr.bf16.mxu0 0
    %2816 = vmatpush1.bf16.msra.mxu0 0
    %2817 = vmatprep.subr.bf16.mxu0 0
    %2818 = vmatpush1.bf16.msra.mxu0 0
    %2819 = vmatprep.subr.bf16.mxu0 0
    %2820 = vmatpush1.bf16.msra.mxu0 0
    %2821 = vmatprep.subr.bf16.mxu0 0
    %2822 = vmatpush1.bf16.msra.mxu0 0
    %2823 = vmatprep.subr.bf16.mxu0 0
    %2824 = vmatpush1.bf16.msra.mxu0 0
    %2825 = vmatprep.subr.bf16.mxu0 0
    %2826 = vmatpush1.bf16.msra.mxu0 0
    %2827 = vmatprep.subr.bf16.mxu0 0
    %2828 = vmatpush1.bf16.msra.mxu0 0
    %2829 = vmatprep.subr.bf16.mxu0 0
    %2830 = vmatpush1.bf16.msra.mxu0 0
    %2831 = vmatprep.subr.bf16.mxu0 0
    %2832 = vmatpush1.bf16.msra.mxu0 0
    %2833 = vmatprep.subr.bf16.mxu0 0
    %2834 = vmatpush1.bf16.msra.mxu0 0
    %2835 = vmatprep.subr.bf16.mxu0 0
    %2836 = vmatpush1.bf16.msra.mxu0 0
    %2837 = vmatprep.subr.bf16.mxu0 0
    %2838 = vmatpush1.bf16.msra.mxu0 0
    %2839 = vmatprep.mubr.bf16.mxu0 0
    %2840 = vmatmul.mubr.bf16.gmra.mrb[0].mxu0 %v2805
    %v2841 = vpop.f32.mrb[0].mxu0
    %v2842 = vadd.f32 0.0, %v2841
    %v2843 = vpop.f32.mrb[0].mxu0
    %v2844 = vpop.f32.mrb[0].mxu0
    %v2845 = vadd.f32 0.0, %v2844
    %v2846 = vpop.f32.mrb[0].mxu0
    %2847 = vdwg.mxu0
    %v2848 = vadd.f32 %v2676, %v2842
    %v2849 = vadd.f32 %v2677, %v2845
    %2850 = vrot.lane.b32.xlu0 %v360, 32
    %v2851 = vpop.permute.xlu0 %2850
    %2852 = vrot.lane.b32.xlu0 %v361, 32
    %v2853 = vpop.permute.xlu0 %2852
    %v2855 = vsel %vm389, %v2851, 0
    %v2858 = vsel %vm389, %v2853, 0
    %2860 = vmatprep.subr.bf16.mxu0 0
    %2861 = vmatpush1.bf16.xpose.msra.mxu0 %v2858
    %2862 = vmatprep.subr.bf16.mxu0 0
    %2863 = vmatpush1.bf16.xpose.msra.mxu0 0
    %2864 = vmatprep.subr.bf16.mxu0 0
    %2865 = vmatpush1.bf16.xpose.msra.mxu0 0
    %2866 = vmatprep.subr.bf16.mxu0 0
    %2867 = vmatpush1.bf16.xpose.msra.mxu0 0
    %2868 = vmatprep.subr.bf16.mxu0 0
    %2869 = vmatpush1.bf16.xpose.msra.mxu0 0
    %2870 = vmatprep.subr.bf16.mxu0 0
    %2871 = vmatpush1.bf16.xpose.msra.mxu0 0
    %2872 = vmatprep.subr.bf16.mxu0 0
    %2873 = vmatpush1.bf16.xpose.msra.mxu0 0
    %2874 = vmatprep.subr.bf16.mxu0 0
    %2875 = vmatpush1.bf16.xpose.msra.mxu0 0
    %2876 = vmatprep.subr.bf16.mxu0 0
    %2877 = vmatpush1.bf16.xpose.msra.mxu0 0
    %2878 = vmatprep.subr.bf16.mxu0 0
    %2879 = vmatpush1.bf16.xpose.msra.mxu0 0
    %2880 = vmatprep.subr.bf16.mxu0 0
    %2881 = vmatpush1.bf16.xpose.msra.mxu0 0
    %2882 = vmatprep.subr.bf16.mxu0 0
    %2883 = vmatpush1.bf16.xpose.msra.mxu0 0
    %2884 = vmatprep.subr.bf16.mxu0 0
    %2885 = vmatpush1.bf16.xpose.msra.mxu0 0
    %2886 = vmatprep.subr.bf16.mxu0 0
    %2887 = vmatpush1.bf16.xpose.msra.mxu0 0
    %2888 = vmatprep.subr.bf16.mxu0 0
    %2889 = vmatpush1.bf16.xpose.msra.mxu0 0
    %2890 = vmatprep.subr.bf16.mxu0 0
    %2891 = vmatpush1.bf16.xpose.msra.mxu0 0
    %2892 = vmatprep.mubr.bf16.mxu0 0
    %2893 = vmatmul.mubr.bf16.gmra.mrb[0].mxu0 %v2855
    %v2894 = vpop.f32.mrb[0].mxu0
    %v2895 = vadd.f32 0.0, %v2894
    %v2896 = vpop.f32.mrb[0].mxu0
    %v2897 = vpop.f32.mrb[0].mxu0
    %v2898 = vadd.f32 0.0, %v2897
    %v2899 = vpop.f32.mrb[0].mxu0
    %2900 = vdwg.mxu0
    %v2901 = vmul.f32 %v2895, %v1822
    %v2902 = vmul.f32 %v2898, %v1822
    %v2903 = vadd.f32 %v2901, %v1825
    %v2904 = vadd.f32 %v2902, %v1825
    %v2905 = vsel %vm389, %v2903, -inf
    %2906 = vmax.xlane.f32.xlu0 %v2905
    %v2907 = vpop.xlane.xlu0 %2906
    %v2908 = vsel %vm389, %v2904, -inf
    %2909 = vmax.xlane.f32.xlu0 %v2908
    %v2910 = vpop.xlane.xlu0 %2909
    %v2911 = vsub.f32 %v2903, %v2907
    %v2912 = vsub.f32 %v2904, %v2910
    %v2913 = vmul.f32 %v2911, 1.442695
    %v2914 = vpow.pop %v2913
    %v2915 = vmul.f32 %v2912, 1.442695
    %v2916 = vpow.pop %v2915
    %v2917 = vsel %vm389, %v2914, 0.0
    %2918 = vadd.xlane.f32.xlu0 %v2917
    %v2919 = vpop.xlane.xlu0 %2918
    %v2920 = vsel %vm389, %v2916, 0.0
    %2921 = vadd.xlane.f32.xlu0 %v2920
    %v2922 = vpop.xlane.xlu0 %2921
    %v2923 = vrcp.pop %v2919
    %v2924 = vmul.f32 %v2914, %v2923
    %v2925 = vrcp.pop %v2922
    %v2926 = vmul.f32 %v2916, %v2925
    %v2927 = vpack.c.bf16 %v2926, %v2924
    %2928 = vrot.lane.b32.xlu0 %v362, 32
    %v2929 = vpop.permute.xlu0 %2928
    %v2932 = vsel %vm389, %v2927, 0
    %2934 = vmatprep.subr.bf16.mxu0 0
    %2935 = vmatpush1.bf16.msra.mxu0 %v2929
    %2936 = vmatprep.subr.bf16.mxu0 0
    %2937 = vmatpush1.bf16.msra.mxu0 0
    %2938 = vmatprep.subr.bf16.mxu0 0
    %2939 = vmatpush1.bf16.msra.mxu0 0
    %2940 = vmatprep.subr.bf16.mxu0 0
    %2941 = vmatpush1.bf16.msra.mxu0 0
    %2942 = vmatprep.subr.bf16.mxu0 0
    %2943 = vmatpush1.bf16.msra.mxu0 0
    %2944 = vmatprep.subr.bf16.mxu0 0
    %2945 = vmatpush1.bf16.msra.mxu0 0
    %2946 = vmatprep.subr.bf16.mxu0 0
    %2947 = vmatpush1.bf16.msra.mxu0 0
    %2948 = vmatprep.subr.bf16.mxu0 0
    %2949 = vmatpush1.bf16.msra.mxu0 0
    %2950 = vmatprep.subr.bf16.mxu0 0
    %2951 = vmatpush1.bf16.msra.mxu0 0
    %2952 = vmatprep.subr.bf16.mxu0 0
    %2953 = vmatpush1.bf16.msra.mxu0 0
    %2954 = vmatprep.subr.bf16.mxu0 0
    %2955 = vmatpush1.bf16.msra.mxu0 0
    %2956 = vmatprep.subr.bf16.mxu0 0
    %2957 = vmatpush1.bf16.msra.mxu0 0
    %2958 = vmatprep.subr.bf16.mxu0 0
    %2959 = vmatpush1.bf16.msra.mxu0 0
    %2960 = vmatprep.subr.bf16.mxu0 0
    %2961 = vmatpush1.bf16.msra.mxu0 0
    %2962 = vmatprep.subr.bf16.mxu0 0
    %2963 = vmatpush1.bf16.msra.mxu0 0
    %2964 = vmatprep.subr.bf16.mxu0 0
    %2965 = vmatpush1.bf16.msra.mxu0 0
    %2966 = vmatprep.mubr.bf16.mxu0 0
    %2967 = vmatmul.mubr.bf16.gmra.mrb[0].mxu0 %v2932
    %v2968 = vpop.f32.mrb[0].mxu0
    %v2969 = vadd.f32 0.0, %v2968
    %v2970 = vpop.f32.mrb[0].mxu0
    %v2971 = vpop.f32.mrb[0].mxu0
    %v2972 = vadd.f32 0.0, %v2971
    %v2973 = vpop.f32.mrb[0].mxu0
    %2974 = vdwg.mxu0
    %v2975 = vpack.c.bf16 %v2972, %v2969
    %v2977 = vsel %vm389, %v2975, 0
    %2979 = vmatprep.subr.bf16.mxu0 0
    %2980 = vmatpush1.bf16.msra.mxu0 %v1580
    %2981 = vmatprep.subr.bf16.mxu0 0
    %2982 = vmatpush1.bf16.msra.mxu0 0
    %2983 = vmatprep.subr.bf16.mxu0 0
    %2984 = vmatpush1.bf16.msra.mxu0 0
    %2985 = vmatprep.subr.bf16.mxu0 0
    %2986 = vmatpush1.bf16.msra.mxu0 0
    %2987 = vmatprep.subr.bf16.mxu0 0
    %2988 = vmatpush1.bf16.msra.mxu0 0
    %2989 = vmatprep.subr.bf16.mxu0 0
    %2990 = vmatpush1.bf16.msra.mxu0 0
    %2991 = vmatprep.subr.bf16.mxu0 0
    %2992 = vmatpush1.bf16.msra.mxu0 0
    %2993 = vmatprep.subr.bf16.mxu0 0
    %2994 = vmatpush1.bf16.msra.mxu0 0
    %2995 = vmatprep.subr.bf16.mxu0 0
    %2996 = vmatpush1.bf16.msra.mxu0 0
    %2997 = vmatprep.subr.bf16.mxu0 0
    %2998 = vmatpush1.bf16.msra.mxu0 0
    %2999 = vmatprep.subr.bf16.mxu0 0
    %3000 = vmatpush1.bf16.msra.mxu0 0
    %3001 = vmatprep.subr.bf16.mxu0 0
    %3002 = vmatpush1.bf16.msra.mxu0 0
    %3003 = vmatprep.subr.bf16.mxu0 0
    %3004 = vmatpush1.bf16.msra.mxu0 0
    %3005 = vmatprep.subr.bf16.mxu0 0
    %3006 = vmatpush1.bf16.msra.mxu0 0
    %3007 = vmatprep.subr.bf16.mxu0 0
    %3008 = vmatpush1.bf16.msra.mxu0 0
    %3009 = vmatprep.subr.bf16.mxu0 0
    %3010 = vmatpush1.bf16.msra.mxu0 0
    %3011 = vmatprep.mubr.bf16.mxu0 0
    %3012 = vmatmul.mubr.bf16.gmra.mrb[0].mxu0 %v2977
    %v3013 = vpop.f32.mrb[0].mxu0
    %v3014 = vadd.f32 0.0, %v3013
    %v3015 = vpop.f32.mrb[0].mxu0
    %v3016 = vpop.f32.mrb[0].mxu0
    %v3017 = vadd.f32 0.0, %v3016
    %v3018 = vpop.f32.mrb[0].mxu0
    %3019 = vdwg.mxu0
    %v3020 = vadd.f32 %v2848, %v3014
    %v3021 = vadd.f32 %v2849, %v3017
    %3022 = vrot.lane.b32.xlu0 %v360, 16
    %v3023 = vpop.permute.xlu0 %3022
    %3024 = vrot.lane.b32.xlu0 %v361, 16
    %v3025 = vpop.permute.xlu0 %3024
    %v3027 = vsel %vm389, %v3023, 0
    %v3030 = vsel %vm389, %v3025, 0
    %3032 = vmatprep.subr.bf16.mxu0 0
    %3033 = vmatpush1.bf16.xpose.msra.mxu0 %v3030
    %3034 = vmatprep.subr.bf16.mxu0 0
    %3035 = vmatpush1.bf16.xpose.msra.mxu0 0
    %3036 = vmatprep.subr.bf16.mxu0 0
    %3037 = vmatpush1.bf16.xpose.msra.mxu0 0
    %3038 = vmatprep.subr.bf16.mxu0 0
    %3039 = vmatpush1.bf16.xpose.msra.mxu0 0
    %3040 = vmatprep.subr.bf16.mxu0 0
    %3041 = vmatpush1.bf16.xpose.msra.mxu0 0
    %3042 = vmatprep.subr.bf16.mxu0 0
    %3043 = vmatpush1.bf16.xpose.msra.mxu0 0
    %3044 = vmatprep.subr.bf16.mxu0 0
    %3045 = vmatpush1.bf16.xpose.msra.mxu0 0
    %3046 = vmatprep.subr.bf16.mxu0 0
    %3047 = vmatpush1.bf16.xpose.msra.mxu0 0
    %3048 = vmatprep.subr.bf16.mxu0 0
    %3049 = vmatpush1.bf16.xpose.msra.mxu0 0
    %3050 = vmatprep.subr.bf16.mxu0 0
    %3051 = vmatpush1.bf16.xpose.msra.mxu0 0
    %3052 = vmatprep.subr.bf16.mxu0 0
    %3053 = vmatpush1.bf16.xpose.msra.mxu0 0
    %3054 = vmatprep.subr.bf16.mxu0 0
    %3055 = vmatpush1.bf16.xpose.msra.mxu0 0
    %3056 = vmatprep.subr.bf16.mxu0 0
    %3057 = vmatpush1.bf16.xpose.msra.mxu0 0
    %3058 = vmatprep.subr.bf16.mxu0 0
    %3059 = vmatpush1.bf16.xpose.msra.mxu0 0
    %3060 = vmatprep.subr.bf16.mxu0 0
    %3061 = vmatpush1.bf16.xpose.msra.mxu0 0
    %3062 = vmatprep.subr.bf16.mxu0 0
    %3063 = vmatpush1.bf16.xpose.msra.mxu0 0
    %3064 = vmatprep.mubr.bf16.mxu0 0
    %3065 = vmatmul.mubr.bf16.gmra.mrb[0].mxu0 %v3027
    %v3066 = vpop.f32.mrb[0].mxu0
    %v3067 = vadd.f32 0.0, %v3066
    %v3068 = vpop.f32.mrb[0].mxu0
    %v3069 = vpop.f32.mrb[0].mxu0
    %v3070 = vadd.f32 0.0, %v3069
    %v3071 = vpop.f32.mrb[0].mxu0
    %3072 = vdwg.mxu0
    %v3073 = vmul.f32 %v3067, %v1822
    %v3074 = vmul.f32 %v3070, %v1822
    %v3075 = vadd.f32 %v3073, %v1825
    %v3076 = vadd.f32 %v3074, %v1825
    %v3077 = vsel %vm389, %v3075, -inf
    %3078 = vmax.xlane.f32.xlu0 %v3077
    %v3079 = vpop.xlane.xlu0 %3078
    %v3080 = vsel %vm389, %v3076, -inf
    %3081 = vmax.xlane.f32.xlu0 %v3080
    %v3082 = vpop.xlane.xlu0 %3081
    %v3083 = vsub.f32 %v3075, %v3079
    %v3084 = vsub.f32 %v3076, %v3082
    %v3085 = vmul.f32 %v3083, 1.442695
    %v3086 = vpow.pop %v3085
    %v3087 = vmul.f32 %v3084, 1.442695
    %v3088 = vpow.pop %v3087
    %v3089 = vsel %vm389, %v3086, 0.0
    %3090 = vadd.xlane.f32.xlu0 %v3089
    %v3091 = vpop.xlane.xlu0 %3090
    %v3092 = vsel %vm389, %v3088, 0.0
    %3093 = vadd.xlane.f32.xlu0 %v3092
    %v3094 = vpop.xlane.xlu0 %3093
    %v3095 = vrcp.pop %v3091
    %v3096 = vmul.f32 %v3086, %v3095
    %v3097 = vrcp.pop %v3094
    %v3098 = vmul.f32 %v3088, %v3097
    %v3099 = vpack.c.bf16 %v3098, %v3096
    %3100 = vrot.lane.b32.xlu0 %v362, 16
    %v3101 = vpop.permute.xlu0 %3100
    %v3104 = vsel %vm389, %v3099, 0
    %3106 = vmatprep.subr.bf16.mxu0 0
    %3107 = vmatpush1.bf16.msra.mxu0 %v3101
    %3108 = vmatprep.subr.bf16.mxu0 0
    %3109 = vmatpush1.bf16.msra.mxu0 0
    %3110 = vmatprep.subr.bf16.mxu0 0
    %3111 = vmatpush1.bf16.msra.mxu0 0
    %3112 = vmatprep.subr.bf16.mxu0 0
    %3113 = vmatpush1.bf16.msra.mxu0 0
    %3114 = vmatprep.subr.bf16.mxu0 0
    %3115 = vmatpush1.bf16.msra.mxu0 0
    %3116 = vmatprep.subr.bf16.mxu0 0
    %3117 = vmatpush1.bf16.msra.mxu0 0
    %3118 = vmatprep.subr.bf16.mxu0 0
    %3119 = vmatpush1.bf16.msra.mxu0 0
    %3120 = vmatprep.subr.bf16.mxu0 0
    %3121 = vmatpush1.bf16.msra.mxu0 0
    %3122 = vmatprep.subr.bf16.mxu0 0
    %3123 = vmatpush1.bf16.msra.mxu0 0
    %3124 = vmatprep.subr.bf16.mxu0 0
    %3125 = vmatpush1.bf16.msra.mxu0 0
    %3126 = vmatprep.subr.bf16.mxu0 0
    %3127 = vmatpush1.bf16.msra.mxu0 0
    %3128 = vmatprep.subr.bf16.mxu0 0
    %3129 = vmatpush1.bf16.msra.mxu0 0
    %3130 = vmatprep.subr.bf16.mxu0 0
    %3131 = vmatpush1.bf16.msra.mxu0 0
    %3132 = vmatprep.subr.bf16.mxu0 0
    %3133 = vmatpush1.bf16.msra.mxu0 0
    %3134 = vmatprep.subr.bf16.mxu0 0
    %3135 = vmatpush1.bf16.msra.mxu0 0
    %3136 = vmatprep.subr.bf16.mxu0 0
    %3137 = vmatpush1.bf16.msra.mxu0 0
    %3138 = vmatprep.mubr.bf16.mxu0 0
    %3139 = vmatmul.mubr.bf16.gmra.mrb[0].mxu0 %v3104
    %v3140 = vpop.f32.mrb[0].mxu0
    %v3141 = vadd.f32 0.0, %v3140
    %v3142 = vpop.f32.mrb[0].mxu0
    %v3143 = vpop.f32.mrb[0].mxu0
    %v3144 = vadd.f32 0.0, %v3143
    %v3145 = vpop.f32.mrb[0].mxu0
    %3146 = vdwg.mxu0
    %v3147 = vpack.c.bf16 %v3144, %v3141
    %v3149 = vsel %vm389, %v3147, 0
    %3151 = vmatprep.subr.bf16.mxu0 0
    %3152 = vmatpush1.bf16.msra.mxu0 %v1758
    %3153 = vmatprep.subr.bf16.mxu0 0
    %3154 = vmatpush1.bf16.msra.mxu0 0
    %3155 = vmatprep.subr.bf16.mxu0 0
    %3156 = vmatpush1.bf16.msra.mxu0 0
    %3157 = vmatprep.subr.bf16.mxu0 0
    %3158 = vmatpush1.bf16.msra.mxu0 0
    %3159 = vmatprep.subr.bf16.mxu0 0
    %3160 = vmatpush1.bf16.msra.mxu0 0
    %3161 = vmatprep.subr.bf16.mxu0 0
    %3162 = vmatpush1.bf16.msra.mxu0 0
    %3163 = vmatprep.subr.bf16.mxu0 0
    %3164 = vmatpush1.bf16.msra.mxu0 0
    %3165 = vmatprep.subr.bf16.mxu0 0
    %3166 = vmatpush1.bf16.msra.mxu0 0
    %3167 = vmatprep.subr.bf16.mxu0 0
    %3168 = vmatpush1.bf16.msra.mxu0 0
    %3169 = vmatprep.subr.bf16.mxu0 0
    %3170 = vmatpush1.bf16.msra.mxu0 0
    %3171 = vmatprep.subr.bf16.mxu0 0
    %3172 = vmatpush1.bf16.msra.mxu0 0
    %3173 = vmatprep.subr.bf16.mxu0 0
    %3174 = vmatpush1.bf16.msra.mxu0 0
    %3175 = vmatprep.subr.bf16.mxu0 0
    %3176 = vmatpush1.bf16.msra.mxu0 0
    %3177 = vmatprep.subr.bf16.mxu0 0
    %3178 = vmatpush1.bf16.msra.mxu0 0
    %3179 = vmatprep.subr.bf16.mxu0 0
    %3180 = vmatpush1.bf16.msra.mxu0 0
    %3181 = vmatprep.subr.bf16.mxu0 0
    %3182 = vmatpush1.bf16.msra.mxu0 0
    %3183 = vmatprep.mubr.bf16.mxu0 0
    %3184 = vmatmul.mubr.bf16.gmra.mrb[0].mxu0 %v3149
    %v3185 = vpop.f32.mrb[0].mxu0
    %v3186 = vadd.f32 0.0, %v3185
    %v3187 = vpop.f32.mrb[0].mxu0
    %v3188 = vpop.f32.mrb[0].mxu0
    %v3189 = vadd.f32 0.0, %v3188
    %v3190 = vpop.f32.mrb[0].mxu0
    %3191 = vdwg.mxu0
    %v3192 = vadd.f32 %v3020, %v3186
    %v3193 = vadd.f32 %v3021, %v3189
    %v3194 = vadd.f32 %v3192, %v1810
    %v3195 = vadd.f32 %v3193, %v1810
    %s3196 = scalar_lea.vmem [#allocation8], 16
    %3197 = vst [vmem:[%s3196] sm:$0xff] %v3194
    %3198 = vst [vmem:[%s3196 + $0x8] sm:$0xff] %v3195
    // Predicated region
    $region38: #{multi_head_attention.1} parent=1 // pred_check
      _
    $region39: #{multi_head_attention.1} parent=1 // pred_check_branch
      %3200 = sbr.rel (0) target = $region41
    $region40: #{multi_head_attention.1} parent=1 // pred_region
      %s3202 = ssub.s32 512, 512
      %3203 = vsyncadd [#allocation4], %s3202
      %s3204 = sshll.u32 [#allocation8], 4
      %s3205 = int_to_ptr.vmem [resolvable:$true] %s3204
      %3210 = dma.vmem_to_hbm [thread:$0]  %s3205, 512, %s6, [#allocation4], 128, 128, 8
    $region41: #{multi_head_attention.1} parent=1 // pred_fallthru
      _
    // Predicated region
    $region42: #{multi_head_attention.1} parent=1 // pred_check
      _
    $region43: #{multi_head_attention.1} parent=1 // pred_check_branch
      %3212 = sbr.rel (0) target = $region45
    $region44: #{multi_head_attention.1} parent=1 // pred_region
      %3213 = dma.done [#allocation4], 512
    $region45: #{multi_head_attention.1} parent=1 // pred_fallthru
      _
    %3214 = vsyncpa [#allocation3], 1
    %3215 = vsyncpa [#allocation6], 1
    %3216 = vsyncpa [#allocation4], 1

</llo_original>
